<compile_context>
chip_gen: v5e
topology: v5e:2x2
jax: 0.10.0
libtpu: 0.0.40
codegen_flags: <defaults>
</compile_context>

<pallas_src>
import functools

import jax
import jax.numpy as jnp
from jax.experimental import pallas as pl
from jax.experimental.pallas import tpu as pltpu


# ----------------------------------------------------------------------------
# Pallas kernel: tiled (im2col patches) @ (conv weight) with f32 accumulator,
# bias folded into the init, fused LeakyReLU epilogue.
# ----------------------------------------------------------------------------
def _conv_mm_kernel(p_ref, w_ref, b_ref, o_ref, acc_ref, *, apply_act,
                    neg_slope):
    k = pl.program_id(2)

    @pl.when(k == 0)
    def _init():
        # Bias folded into the accumulator init (saves a VPU add + broadcast
        # per output element in the epilogue).
        acc_ref[...] = jnp.broadcast_to(b_ref[...], acc_ref.shape)

    acc_ref[...] += jnp.dot(p_ref[...], w_ref[...],
                            preferred_element_type=jnp.float32)

    @pl.when(k == pl.num_programs(2) - 1)
    def _finalize():
        acc = acc_ref[...]
        if apply_act:
            acc = jnp.where(acc >= 0.0, acc, neg_slope * acc)
        o_ref[...] = acc.astype(o_ref.dtype)


def _round_up(x, m):
    return ((x + m - 1) // m) * m


def _pick_tile(dim, candidates):
    for c in candidates:
        if dim % c == 0:
            return c
    return candidates[-1]


def _pallas_matmul_bias_act(patches, w_mat, bias_row, apply_act,
                            neg_slope=0.2, out_dtype=jnp.bfloat16):
    """patches: (M, Kp) bf16, w_mat: (Kp, Np) bf16, bias_row: (1, Np) f32.

    Np is a multiple of 128.  Kp is either small (single full-extent K block,
    no HBM zero padding) or a multiple of 128 (tiled K with genuine zero
    padding so it contributes 0 to the dot).  M is left ragged and handled
    via a pl.cdiv grid (OOB rows produce garbage rows whose stores are
    dropped)."""
    M, Kp = patches.shape
    Kp2, Np = w_mat.shape
    assert Kp == Kp2 and Np % 128 == 0

    # --- tile selection -----------------------------------------------------
    TM = 512 if M >= 512 else M                      # full-M block if small
    TN = _pick_tile(Np, (1024, 512, 256, 128))
    if Kp <= 2048:
        TK = Kp                                      # single full-extent K block
    else:
        assert Kp % 128 == 0
        TK = _pick_tile(Kp, (2048, 1024, 512, 256, 128))

    # v7x megacore: guarantee >=2 blocks on the parallel (i, j) axes where
    # possible so both TensorCores get work.
    if pl.cdiv(M, TM) * (Np // TN) < 2:
        if TN > 128:
            TN //= 2
        elif TM >= 16 and TM % 16 == 0:
            TM //= 2

    grid = (pl.cdiv(M, TM), Np // TN, Kp // TK)

    cost = pl.CostEstimate(
        flops=2 * M * Kp * Np,
        transcendentals=0,
        bytes_accessed=(patches.size * patches.dtype.itemsize
                        + w_mat.size * w_mat.dtype.itemsize
                        + M * Np * jnp.dtype(out_dtype).itemsize),
    )

    out = pl.pallas_call(
        functools.partial(_conv_mm_kernel, apply_act=apply_act,
                          neg_slope=neg_slope),
        out_shape=jax.ShapeDtypeStruct((M, Np), out_dtype),
        grid_spec=pltpu.PrefetchScalarGridSpec(
            num_scalar_prefetch=0,
            grid=grid,
            in_specs=[
                pl.BlockSpec((TM, TK), lambda i, j, k: (i, k)),
                pl.BlockSpec((TK, TN), lambda i, j, k: (k, j)),
                pl.BlockSpec((1, TN), lambda i, j, k: (0, j)),
            ],
            out_specs=pl.BlockSpec((TM, TN), lambda i, j, k: (i, j)),
            scratch_shapes=[pltpu.VMEM((TM, TN), jnp.float32)],
        ),
        compiler_params=pltpu.CompilerParams(
            dimension_semantics=("parallel", "parallel", "arbitrary"),
            vmem_limit_bytes=48 * 1024 * 1024,
            # Let XLA fuse the im2col (pad/slice/concat) producer into the
            # patches input instead of materializing the 9x tensor in HBM.
            allow_input_fusion=[True, False, False],
        ),
        cost_estimate=cost,
    )(patches, w_mat, bias_row)
    return out


# ----------------------------------------------------------------------------
# Conv2d(kernel=3x3, padding=1, stride=s) via tap-major im2col + Pallas matmul
# ----------------------------------------------------------------------------
def _conv3x3(x_nhwc, weight_ocik, bias, stride, apply_act, out_dtype):
    """x_nhwc: (N, H, W, Cin) bf16; weight_ocik: (Cout, Cin, 3, 3) PyTorch."""
    N, H, W, Cin = x_nhwc.shape
    Cout = weight_ocik.shape[0]
    Ho = (H + 2 - 3) // stride + 1
    Wo = (W + 2 - 3) // stride + 1
    K = Cin * 9
    # Pad K in HBM only when the contraction must be tiled; small-K layers
    # (notably layer 0) use a single full-extent K block -> no zero padding.
    Kp = _round_up(K, 128) if (K > 2048 and K % 128 != 0) else K
    Np = _round_up(Cout, 128)

    xb = x_nhwc if x_nhwc.dtype == jnp.bfloat16 else x_nhwc.astype(jnp.bfloat16)
    xp = jnp.pad(xb, ((0, 0), (1, 1), (1, 1), (0, 0)))

    # Tap-major im2col built in bf16; any K padding is folded into the single
    # concatenate so the patch tensor is materialized at most once.
    taps = []
    for dy in range(3):
        for dx in range(3):
            taps.append(xp[:, dy:dy + (Ho - 1) * stride + 1:stride,
                           dx:dx + (Wo - 1) * stride + 1:stride, :])
    if Kp > K:
        taps.append(jnp.zeros((N, Ho, Wo, Kp - K), jnp.bfloat16))
    patches = jnp.concatenate(taps, axis=-1).reshape(N * Ho * Wo, Kp)

    # Reorder the (small) weight once to tap-major rows matching the patches:
    # (Cout, Cin, 3, 3) -> (3, 3, Cin, Cout) -> (9*Cin, Cout), then pad.
    w_mat = weight_ocik.transpose(2, 3, 1, 0).reshape(K, Cout)
    w_pad = jnp.pad(w_mat, ((0, Kp - K), (0, Np - Cout))).astype(jnp.bfloat16)
    b_pad = jnp.pad(bias.reshape(1, -1),
                    ((0, 0), (0, Np - Cout))).astype(jnp.float32)

    out = _pallas_matmul_bias_act(patches, w_pad, b_pad, apply_act,
                                  out_dtype=out_dtype)
    if Np != Cout:
        out = out[:, :Cout]
    return out.reshape(N, Ho, Wo, Cout)


# ----------------------------------------------------------------------------
# Parameter construction (deterministic), including spectral normalization
# ----------------------------------------------------------------------------
def _spectral_normalize(weight, n_iters=10):
    """Divide weight by its top singular value (PyTorch spectral_norm
    semantics, power iteration on the (Cout, -1) reshaped weight)."""
    # TODO(synk): PyTorch keeps persistent u/v buffers with 1 iteration per
    # forward; here we run 10 fresh iterations at param-build time.
    Cout = weight.shape[0]
    w2d = weight.reshape(Cout, -1)
    v = jnp.ones((w2d.shape[1],), jnp.float32) / jnp.sqrt(w2d.shape[1])
    for _ in range(n_iters):
        u = w2d @ v
        u = u / (jnp.linalg.norm(u) + 1e-12)
        v = w2d.T @ u
        v = v / (jnp.linalg.norm(v) + 1e-12)
    sigma = u @ (w2d @ v)
    return weight / (sigma + 1e-12)


def make_params(in_channels, hidden_channels, key):
    # Layer configs: (C_in, C_out, stride, spectral_norm, leaky_relu)
    layer_defs = [
        (in_channels, hidden_channels, 1, True, True),
        (hidden_channels, hidden_channels * 2, 2, True, True),
        (hidden_channels * 2, hidden_channels * 4, 1, True, True),
        (hidden_channels * 4, hidden_channels * 8, 2, True, True),
        (hidden_channels * 8, hidden_channels * 16, 1, True, True),
        (hidden_channels * 16, hidden_channels * 32, 2, True, True),
        (hidden_channels * 32, 1, 1, False, False),
    ]
    params = []
    cfg = []
    for i, (cin, cout, stride, sn, act) in enumerate(layer_defs):
        kw, kb = jax.random.split(jax.random.fold_in(key, i))
        w = 0.05 * jax.random.normal(kw, (cout, cin, 3, 3), jnp.float32)
        b = 0.01 * jax.random.normal(kb, (cout,), jnp.float32)
        if sn:
            w = _spectral_normalize(w)
        params.append((w, b))
        cfg.append((stride, act))
    return tuple(params), tuple(cfg)


# ----------------------------------------------------------------------------
# Forward pass matching FrequencyDiscriminator.forward
# ----------------------------------------------------------------------------
@functools.partial(jax.jit, static_argnums=(2,))
def frequency_discriminator_forward(x_nchw, params, cfg):
    """params: tuple of (weight, bias); cfg: tuple of (stride, act)."""
    # NCHW -> NHWC internal layout; cast to bf16 once at the entry.
    x = jnp.transpose(x_nchw, (0, 2, 3, 1)).astype(jnp.bfloat16)
    hiddens = []
    n_layers = len(params)
    for idx, ((w, b), (stride, act)) in enumerate(zip(params, cfg)):
        last = idx == n_layers - 1
        # Intermediate activations stay bf16 (halves activation HBM traffic);
        # the final returned layer is produced in f32 by the kernel.
        out_dtype = jnp.float32 if last else jnp.bfloat16
        x = _conv3x3(x, w, b, stride, act, out_dtype)
        # One NCHW transpose per returned hidden (PyTorch layout); f32 cast
        # happens at this boundary only (bf16 read, f32 write).
        hiddens.append(jnp.transpose(x, (0, 3, 1, 2)).astype(jnp.float32))
    return hiddens[-1], hiddens[:-1]


if __name__ == "__main__":
    key = jax.random.PRNGKey(0)
    in_channels = 4
    hidden_channels = 8          # small stand-in for the default 512
    N, H, W = 2, 16, 16

    kx, kp = jax.random.split(key)
    x = jax.random.normal(kx, (N, in_channels, H, W), jnp.float32)
    params, cfg = make_params(in_channels, hidden_channels, kp)

    out, hiddens = frequency_discriminator_forward(x, params, cfg)
    out = jax.block_until_ready(out)
    for h in hiddens:
        jax.block_until_ready(h)

    # Basic shape sanity (stride pattern 1,2,1,2,1,2,1 on 16x16 -> 2x2).
    assert out.shape == (N, 1, 2, 2), out.shape
    assert out.dtype == jnp.float32
    assert len(hiddens) == 6
    assert hiddens[0].shape == (N, hidden_channels, 16, 16)
    assert hiddens[-1].shape == (N, hidden_channels * 32, 2, 2)
    assert all(h.dtype == jnp.float32 for h in hiddens)
    assert bool(jnp.all(jnp.isfinite(out)))

    print("KERNEL_OK")
</pallas_src>

<mosaic_0001>
module attributes {stable_mosaic.version = 11 : i64} {
  func.func @_conv_mm_kernel(%arg0: i32, %arg1: i32, %arg2: i32, %arg3: memref<256x36xbf16, #tpu.memory_space<vmem>>, %arg4: memref<36x128xbf16, #tpu.memory_space<vmem>>, %arg5: memref<1x128xf32, #tpu.memory_space<vmem>>, %arg6: memref<256x128xbf16, #tpu.memory_space<vmem>>, %arg7: memref<256x128xf32, #tpu.memory_space<vmem>>) attributes {dimension_semantics = [#tpu.dimension_semantics<parallel>, #tpu.dimension_semantics<parallel>, #tpu.dimension_semantics<arbitrary>], iteration_bounds = array<i64: 2, 1, 1>, scalar_prefetch = 0 : i64, scratch_operands = 1 : i64, tpu.core_type = #tpu.core_type<tc>, window_params = [{transform_indices = @transform_0, window_bounds = array<i64: 256, 36>}, {transform_indices = @transform_1, window_bounds = array<i64: 36, 128>}, {transform_indices = @transform_2, window_bounds = array<i64: 1, 128>}, {transform_indices = @transform_3, window_bounds = array<i64: 256, 128>}]} {
    %c0_i32 = arith.constant 0 : i32
    %0 = arith.cmpi eq, %arg2, %c0_i32 : i32
    %1 = arith.extui %0 : i1 to i32
    %c0_i32_0 = arith.constant 0 : i32
    %2 = arith.cmpi ne, %1, %c0_i32_0 : i32
    scf.if %2 {
      %c0_10 = arith.constant 0 : index
      %c0_11 = arith.constant 0 : index
      %12 = vector.load %arg5[%c0_10, %c0_11] : memref<1x128xf32, #tpu.memory_space<vmem>>, vector<1x128xf32>
      %13 = vector.shape_cast %12 : vector<1x128xf32> to vector<1x128xf32>
      %14 = vector.broadcast %13 : vector<1x128xf32> to vector<256x128xf32>
      %c0_12 = arith.constant 0 : index
      %c0_13 = arith.constant 0 : index
      %15 = vector.load %arg7[%c0_12, %c0_13] : memref<256x128xf32, #tpu.memory_space<vmem>>, vector<256x128xf32>
      tpu.vector_store %arg7[%c0_12, %c0_13], %14 {strides = array<i32>} : memref<256x128xf32, #tpu.memory_space<vmem>>, vector<256x128xf32>,
    } else {
    }
    %c0 = arith.constant 0 : index
    %c0_1 = arith.constant 0 : index
    %3 = vector.load %arg7[%c0, %c0_1] : memref<256x128xf32, #tpu.memory_space<vmem>>, vector<256x128xf32>
    %c0_2 = arith.constant 0 : index
    %c0_3 = arith.constant 0 : index
    %4 = vector.load %arg3[%c0_2, %c0_3] : memref<256x36xbf16, #tpu.memory_space<vmem>>, vector<256x36xbf16>
    %c0_4 = arith.constant 0 : index
    %c0_5 = arith.constant 0 : index
    %5 = vector.load %arg4[%c0_4, %c0_5] : memref<36x128xbf16, #tpu.memory_space<vmem>>, vector<36x128xbf16>
    %cst = arith.constant dense<0.000000e+00> : vector<256x128xf32>
    %6 = tpu.matmul %4, %5, %cst {dimension_numbers = #tpu.dot_dimension_numbers<[1], [0], [0], [1], [0, 0, 1, 1], [], []>} : vector<256x36xbf16>, vector<36x128xbf16>, vector<256x128xf32> -> vector<256x128xf32>
    %7 = arith.addf %3, %6 : vector<256x128xf32>
    %c0_6 = arith.constant 0 : index
    %c0_7 = arith.constant 0 : index
    %8 = vector.load %arg7[%c0_6, %c0_7] : memref<256x128xf32, #tpu.memory_space<vmem>>, vector<256x128xf32>
    tpu.vector_store %arg7[%c0_6, %c0_7], %7 {strides = array<i32>} : memref<256x128xf32, #tpu.memory_space<vmem>>, vector<256x128xf32>,
    %c0_i32_8 = arith.constant 0 : i32
    %9 = arith.cmpi eq, %arg2, %c0_i32_8 : i32
    %10 = arith.extui %9 : i1 to i32
    %c0_i32_9 = arith.constant 0 : i32
    %11 = arith.cmpi ne, %10, %c0_i32_9 : i32
    scf.if %11 {
      %c0_10 = arith.constant 0 : index
      %c0_11 = arith.constant 0 : index
      %12 = vector.load %arg7[%c0_10, %c0_11] : memref<256x128xf32, #tpu.memory_space<vmem>>, vector<256x128xf32>
      %cst_12 = arith.constant 0.000000e+00 : f32
      %13 = vector.broadcast %cst_12 : f32 to vector<256x128xf32>
      %14 = arith.cmpf oge, %12, %13 : vector<256x128xf32>
      %cst_13 = arith.constant 2.000000e-01 : f32
      %15 = vector.broadcast %cst_13 : f32 to vector<256x128xf32>
      %16 = arith.mulf %15, %12 : vector<256x128xf32>
      %17 = arith.select %14, %12, %16 : vector<256x128xi1>, vector<256x128xf32>
      %18 = arith.truncf %17 : vector<256x128xf32> to vector<256x128xbf16>
      %c0_14 = arith.constant 0 : index
      %c0_15 = arith.constant 0 : index
      %19 = vector.load %arg6[%c0_14, %c0_15] : memref<256x128xbf16, #tpu.memory_space<vmem>>, vector<256x128xbf16>
      tpu.vector_store %arg6[%c0_14, %c0_15], %18 {strides = array<i32>} : memref<256x128xbf16, #tpu.memory_space<vmem>>, vector<256x128xbf16>,
    } else {
    }
    return
  }
  func.func @transform_0(%arg0: i32, %arg1: i32, %arg2: i32) -> (i32, i32) {
    %c0_i32 = arith.constant 0 : i32
    return %arg0, %arg2 : i32, i32
  }
  func.func @transform_1(%arg0: i32, %arg1: i32, %arg2: i32) -> (i32, i32) {
    %c0_i32 = arith.constant 0 : i32
    return %arg2, %arg1 : i32, i32
  }
  func.func @transform_2(%arg0: i32, %arg1: i32, %arg2: i32) -> (i32, i32) {
    %c0_i32 = arith.constant 0 : i32
    %c0_i32_0 = arith.constant 0 : i32
    return %c0_i32, %arg1 : i32, i32
  }
  func.func @transform_3(%arg0: i32, %arg1: i32, %arg2: i32) -> (i32, i32) {
    %c0_i32 = arith.constant 0 : i32
    return %arg0, %arg1 : i32, i32
  }
}

module attributes {stable_mosaic.version = 11 : i64} {
  func.func @_conv_mm_kernel(%arg0: i32, %arg1: i32, %arg2: i32, %arg3: memref<64x72xbf16, #tpu.memory_space<vmem>>, %arg4: memref<72x128xbf16, #tpu.memory_space<vmem>>, %arg5: memref<1x128xf32, #tpu.memory_space<vmem>>, %arg6: memref<64x128xbf16, #tpu.memory_space<vmem>>, %arg7: memref<64x128xf32, #tpu.memory_space<vmem>>) attributes {dimension_semantics = [#tpu.dimension_semantics<parallel>, #tpu.dimension_semantics<parallel>, #tpu.dimension_semantics<arbitrary>], iteration_bounds = array<i64: 2, 1, 1>, scalar_prefetch = 0 : i64, scratch_operands = 1 : i64, tpu.core_type = #tpu.core_type<tc>, window_params = [{transform_indices = @transform_0, window_bounds = array<i64: 64, 72>}, {transform_indices = @transform_1, window_bounds = array<i64: 72, 128>}, {transform_indices = @transform_2, window_bounds = array<i64: 1, 128>}, {transform_indices = @transform_3, window_bounds = array<i64: 64, 128>}]} {
    %c0_i32 = arith.constant 0 : i32
    %0 = arith.cmpi eq, %arg2, %c0_i32 : i32
    %1 = arith.extui %0 : i1 to i32
    %c0_i32_0 = arith.constant 0 : i32
    %2 = arith.cmpi ne, %1, %c0_i32_0 : i32
    scf.if %2 {
      %c0_10 = arith.constant 0 : index
      %c0_11 = arith.constant 0 : index
      %12 = vector.load %arg5[%c0_10, %c0_11] : memref<1x128xf32, #tpu.memory_space<vmem>>, vector<1x128xf32>
      %13 = vector.shape_cast %12 : vector<1x128xf32> to vector<1x128xf32>
      %14 = vector.broadcast %13 : vector<1x128xf32> to vector<64x128xf32>
      %c0_12 = arith.constant 0 : index
      %c0_13 = arith.constant 0 : index
      %15 = vector.load %arg7[%c0_12, %c0_13] : memref<64x128xf32, #tpu.memory_space<vmem>>, vector<64x128xf32>
      tpu.vector_store %arg7[%c0_12, %c0_13], %14 {strides = array<i32>} : memref<64x128xf32, #tpu.memory_space<vmem>>, vector<64x128xf32>,
    } else {
    }
    %c0 = arith.constant 0 : index
    %c0_1 = arith.constant 0 : index
    %3 = vector.load %arg7[%c0, %c0_1] : memref<64x128xf32, #tpu.memory_space<vmem>>, vector<64x128xf32>
    %c0_2 = arith.constant 0 : index
    %c0_3 = arith.constant 0 : index
    %4 = vector.load %arg3[%c0_2, %c0_3] : memref<64x72xbf16, #tpu.memory_space<vmem>>, vector<64x72xbf16>
    %c0_4 = arith.constant 0 : index
    %c0_5 = arith.constant 0 : index
    %5 = vector.load %arg4[%c0_4, %c0_5] : memref<72x128xbf16, #tpu.memory_space<vmem>>, vector<72x128xbf16>
    %cst = arith.constant dense<0.000000e+00> : vector<64x128xf32>
    %6 = tpu.matmul %4, %5, %cst {dimension_numbers = #tpu.dot_dimension_numbers<[1], [0], [0], [1], [0, 0, 1, 1], [], []>} : vector<64x72xbf16>, vector<72x128xbf16>, vector<64x128xf32> -> vector<64x128xf32>
    %7 = arith.addf %3, %6 : vector<64x128xf32>
    %c0_6 = arith.constant 0 : index
    %c0_7 = arith.constant 0 : index
    %8 = vector.load %arg7[%c0_6, %c0_7] : memref<64x128xf32, #tpu.memory_space<vmem>>, vector<64x128xf32>
    tpu.vector_store %arg7[%c0_6, %c0_7], %7 {strides = array<i32>} : memref<64x128xf32, #tpu.memory_space<vmem>>, vector<64x128xf32>,
    %c0_i32_8 = arith.constant 0 : i32
    %9 = arith.cmpi eq, %arg2, %c0_i32_8 : i32
    %10 = arith.extui %9 : i1 to i32
    %c0_i32_9 = arith.constant 0 : i32
    %11 = arith.cmpi ne, %10, %c0_i32_9 : i32
    scf.if %11 {
      %c0_10 = arith.constant 0 : index
      %c0_11 = arith.constant 0 : index
      %12 = vector.load %arg7[%c0_10, %c0_11] : memref<64x128xf32, #tpu.memory_space<vmem>>, vector<64x128xf32>
      %cst_12 = arith.constant 0.000000e+00 : f32
      %13 = vector.broadcast %cst_12 : f32 to vector<64x128xf32>
      %14 = arith.cmpf oge, %12, %13 : vector<64x128xf32>
      %cst_13 = arith.constant 2.000000e-01 : f32
      %15 = vector.broadcast %cst_13 : f32 to vector<64x128xf32>
      %16 = arith.mulf %15, %12 : vector<64x128xf32>
      %17 = arith.select %14, %12, %16 : vector<64x128xi1>, vector<64x128xf32>
      %18 = arith.truncf %17 : vector<64x128xf32> to vector<64x128xbf16>
      %c0_14 = arith.constant 0 : index
      %c0_15 = arith.constant 0 : index
      %19 = vector.load %arg6[%c0_14, %c0_15] : memref<64x128xbf16, #tpu.memory_space<vmem>>, vector<64x128xbf16>
      tpu.vector_store %arg6[%c0_14, %c0_15], %18 {strides = array<i32>} : memref<64x128xbf16, #tpu.memory_space<vmem>>, vector<64x128xbf16>,
    } else {
    }
    return
  }
  func.func @transform_0(%arg0: i32, %arg1: i32, %arg2: i32) -> (i32, i32) {
    %c0_i32 = arith.constant 0 : i32
    return %arg0, %arg2 : i32, i32
  }
  func.func @transform_1(%arg0: i32, %arg1: i32, %arg2: i32) -> (i32, i32) {
    %c0_i32 = arith.constant 0 : i32
    return %arg2, %arg1 : i32, i32
  }
  func.func @transform_2(%arg0: i32, %arg1: i32, %arg2: i32) -> (i32, i32) {
    %c0_i32 = arith.constant 0 : i32
    %c0_i32_0 = arith.constant 0 : i32
    return %c0_i32, %arg1 : i32, i32
  }
  func.func @transform_3(%arg0: i32, %arg1: i32, %arg2: i32) -> (i32, i32) {
    %c0_i32 = arith.constant 0 : i32
    return %arg0, %arg1 : i32, i32
  }
}

module attributes {stable_mosaic.version = 11 : i64} {
  func.func @_conv_mm_kernel(%arg0: i32, %arg1: i32, %arg2: i32, %arg3: memref<64x144xbf16, #tpu.memory_space<vmem>>, %arg4: memref<144x128xbf16, #tpu.memory_space<vmem>>, %arg5: memref<1x128xf32, #tpu.memory_space<vmem>>, %arg6: memref<64x128xbf16, #tpu.memory_space<vmem>>, %arg7: memref<64x128xf32, #tpu.memory_space<vmem>>) attributes {dimension_semantics = [#tpu.dimension_semantics<parallel>, #tpu.dimension_semantics<parallel>, #tpu.dimension_semantics<arbitrary>], iteration_bounds = array<i64: 2, 1, 1>, scalar_prefetch = 0 : i64, scratch_operands = 1 : i64, tpu.core_type = #tpu.core_type<tc>, window_params = [{transform_indices = @transform_0, window_bounds = array<i64: 64, 144>}, {transform_indices = @transform_1, window_bounds = array<i64: 144, 128>}, {transform_indices = @transform_2, window_bounds = array<i64: 1, 128>}, {transform_indices = @transform_3, window_bounds = array<i64: 64, 128>}]} {
    %c0_i32 = arith.constant 0 : i32
    %0 = arith.cmpi eq, %arg2, %c0_i32 : i32
    %1 = arith.extui %0 : i1 to i32
    %c0_i32_0 = arith.constant 0 : i32
    %2 = arith.cmpi ne, %1, %c0_i32_0 : i32
    scf.if %2 {
      %c0_10 = arith.constant 0 : index
      %c0_11 = arith.constant 0 : index
      %12 = vector.load %arg5[%c0_10, %c0_11] : memref<1x128xf32, #tpu.memory_space<vmem>>, vector<1x128xf32>
      %13 = vector.shape_cast %12 : vector<1x128xf32> to vector<1x128xf32>
      %14 = vector.broadcast %13 : vector<1x128xf32> to vector<64x128xf32>
      %c0_12 = arith.constant 0 : index
      %c0_13 = arith.constant 0 : index
      %15 = vector.load %arg7[%c0_12, %c0_13] : memref<64x128xf32, #tpu.memory_space<vmem>>, vector<64x128xf32>
      tpu.vector_store %arg7[%c0_12, %c0_13], %14 {strides = array<i32>} : memref<64x128xf32, #tpu.memory_space<vmem>>, vector<64x128xf32>,
    } else {
    }
    %c0 = arith.constant 0 : index
    %c0_1 = arith.constant 0 : index
    %3 = vector.load %arg7[%c0, %c0_1] : memref<64x128xf32, #tpu.memory_space<vmem>>, vector<64x128xf32>
    %c0_2 = arith.constant 0 : index
    %c0_3 = arith.constant 0 : index
    %4 = vector.load %arg3[%c0_2, %c0_3] : memref<64x144xbf16, #tpu.memory_space<vmem>>, vector<64x144xbf16>
    %c0_4 = arith.constant 0 : index
    %c0_5 = arith.constant 0 : index
    %5 = vector.load %arg4[%c0_4, %c0_5] : memref<144x128xbf16, #tpu.memory_space<vmem>>, vector<144x128xbf16>
    %cst = arith.constant dense<0.000000e+00> : vector<64x128xf32>
    %6 = tpu.matmul %4, %5, %cst {dimension_numbers = #tpu.dot_dimension_numbers<[1], [0], [0], [1], [0, 0, 1, 1], [], []>} : vector<64x144xbf16>, vector<144x128xbf16>, vector<64x128xf32> -> vector<64x128xf32>
    %7 = arith.addf %3, %6 : vector<64x128xf32>
    %c0_6 = arith.constant 0 : index
    %c0_7 = arith.constant 0 : index
    %8 = vector.load %arg7[%c0_6, %c0_7] : memref<64x128xf32, #tpu.memory_space<vmem>>, vector<64x128xf32>
    tpu.vector_store %arg7[%c0_6, %c0_7], %7 {strides = array<i32>} : memref<64x128xf32, #tpu.memory_space<vmem>>, vector<64x128xf32>,
    %c0_i32_8 = arith.constant 0 : i32
    %9 = arith.cmpi eq, %arg2, %c0_i32_8 : i32
    %10 = arith.extui %9 : i1 to i32
    %c0_i32_9 = arith.constant 0 : i32
    %11 = arith.cmpi ne, %10, %c0_i32_9 : i32
    scf.if %11 {
      %c0_10 = arith.constant 0 : index
      %c0_11 = arith.constant 0 : index
      %12 = vector.load %arg7[%c0_10, %c0_11] : memref<64x128xf32, #tpu.memory_space<vmem>>, vector<64x128xf32>
      %cst_12 = arith.constant 0.000000e+00 : f32
      %13 = vector.broadcast %cst_12 : f32 to vector<64x128xf32>
      %14 = arith.cmpf oge, %12, %13 : vector<64x128xf32>
      %cst_13 = arith.constant 2.000000e-01 : f32
      %15 = vector.broadcast %cst_13 : f32 to vector<64x128xf32>
      %16 = arith.mulf %15, %12 : vector<64x128xf32>
      %17 = arith.select %14, %12, %16 : vector<64x128xi1>, vector<64x128xf32>
      %18 = arith.truncf %17 : vector<64x128xf32> to vector<64x128xbf16>
      %c0_14 = arith.constant 0 : index
      %c0_15 = arith.constant 0 : index
      %19 = vector.load %arg6[%c0_14, %c0_15] : memref<64x128xbf16, #tpu.memory_space<vmem>>, vector<64x128xbf16>
      tpu.vector_store %arg6[%c0_14, %c0_15], %18 {strides = array<i32>} : memref<64x128xbf16, #tpu.memory_space<vmem>>, vector<64x128xbf16>,
    } else {
    }
    return
  }
  func.func @transform_0(%arg0: i32, %arg1: i32, %arg2: i32) -> (i32, i32) {
    %c0_i32 = arith.constant 0 : i32
    return %arg0, %arg2 : i32, i32
  }
  func.func @transform_1(%arg0: i32, %arg1: i32, %arg2: i32) -> (i32, i32) {
    %c0_i32 = arith.constant 0 : i32
    return %arg2, %arg1 : i32, i32
  }
  func.func @transform_2(%arg0: i32, %arg1: i32, %arg2: i32) -> (i32, i32) {
    %c0_i32 = arith.constant 0 : i32
    %c0_i32_0 = arith.constant 0 : i32
    return %c0_i32, %arg1 : i32, i32
  }
  func.func @transform_3(%arg0: i32, %arg1: i32, %arg2: i32) -> (i32, i32) {
    %c0_i32 = arith.constant 0 : i32
    return %arg0, %arg1 : i32, i32
  }
}

module attributes {stable_mosaic.version = 11 : i64} {
  func.func @_conv_mm_kernel(%arg0: i32, %arg1: i32, %arg2: i32, %arg3: memref<16x288xbf16, #tpu.memory_space<vmem>>, %arg4: memref<288x128xbf16, #tpu.memory_space<vmem>>, %arg5: memref<1x128xf32, #tpu.memory_space<vmem>>, %arg6: memref<16x128xbf16, #tpu.memory_space<vmem>>, %arg7: memref<16x128xf32, #tpu.memory_space<vmem>>) attributes {dimension_semantics = [#tpu.dimension_semantics<parallel>, #tpu.dimension_semantics<parallel>, #tpu.dimension_semantics<arbitrary>], iteration_bounds = array<i64: 2, 1, 1>, scalar_prefetch = 0 : i64, scratch_operands = 1 : i64, tpu.core_type = #tpu.core_type<tc>, window_params = [{transform_indices = @transform_0, window_bounds = array<i64: 16, 288>}, {transform_indices = @transform_1, window_bounds = array<i64: 288, 128>}, {transform_indices = @transform_2, window_bounds = array<i64: 1, 128>}, {transform_indices = @transform_3, window_bounds = array<i64: 16, 128>}]} {
    %c0_i32 = arith.constant 0 : i32
    %0 = arith.cmpi eq, %arg2, %c0_i32 : i32
    %1 = arith.extui %0 : i1 to i32
    %c0_i32_0 = arith.constant 0 : i32
    %2 = arith.cmpi ne, %1, %c0_i32_0 : i32
    scf.if %2 {
      %c0_10 = arith.constant 0 : index
      %c0_11 = arith.constant 0 : index
      %12 = vector.load %arg5[%c0_10, %c0_11] : memref<1x128xf32, #tpu.memory_space<vmem>>, vector<1x128xf32>
      %13 = vector.shape_cast %12 : vector<1x128xf32> to vector<1x128xf32>
      %14 = vector.broadcast %13 : vector<1x128xf32> to vector<16x128xf32>
      %c0_12 = arith.constant 0 : index
      %c0_13 = arith.constant 0 : index
      %15 = vector.load %arg7[%c0_12, %c0_13] : memref<16x128xf32, #tpu.memory_space<vmem>>, vector<16x128xf32>
      tpu.vector_store %arg7[%c0_12, %c0_13], %14 {strides = array<i32>} : memref<16x128xf32, #tpu.memory_space<vmem>>, vector<16x128xf32>,
    } else {
    }
    %c0 = arith.constant 0 : index
    %c0_1 = arith.constant 0 : index
    %3 = vector.load %arg7[%c0, %c0_1] : memref<16x128xf32, #tpu.memory_space<vmem>>, vector<16x128xf32>
    %c0_2 = arith.constant 0 : index
    %c0_3 = arith.constant 0 : index
    %4 = vector.load %arg3[%c0_2, %c0_3] : memref<16x288xbf16, #tpu.memory_space<vmem>>, vector<16x288xbf16>
    %c0_4 = arith.constant 0 : index
    %c0_5 = arith.constant 0 : index
    %5 = vector.load %arg4[%c0_4, %c0_5] : memref<288x128xbf16, #tpu.memory_space<vmem>>, vector<288x128xbf16>
    %cst = arith.constant dense<0.000000e+00> : vector<16x128xf32>
    %6 = tpu.matmul %4, %5, %cst {dimension_numbers = #tpu.dot_dimension_numbers<[1], [0], [0], [1], [0, 0, 1, 1], [], []>} : vector<16x288xbf16>, vector<288x128xbf16>, vector<16x128xf32> -> vector<16x128xf32>
    %7 = arith.addf %3, %6 : vector<16x128xf32>
    %c0_6 = arith.constant 0 : index
    %c0_7 = arith.constant 0 : index
    %8 = vector.load %arg7[%c0_6, %c0_7] : memref<16x128xf32, #tpu.memory_space<vmem>>, vector<16x128xf32>
    tpu.vector_store %arg7[%c0_6, %c0_7], %7 {strides = array<i32>} : memref<16x128xf32, #tpu.memory_space<vmem>>, vector<16x128xf32>,
    %c0_i32_8 = arith.constant 0 : i32
    %9 = arith.cmpi eq, %arg2, %c0_i32_8 : i32
    %10 = arith.extui %9 : i1 to i32
    %c0_i32_9 = arith.constant 0 : i32
    %11 = arith.cmpi ne, %10, %c0_i32_9 : i32
    scf.if %11 {
      %c0_10 = arith.constant 0 : index
      %c0_11 = arith.constant 0 : index
      %12 = vector.load %arg7[%c0_10, %c0_11] : memref<16x128xf32, #tpu.memory_space<vmem>>, vector<16x128xf32>
      %cst_12 = arith.constant 0.000000e+00 : f32
      %13 = vector.broadcast %cst_12 : f32 to vector<16x128xf32>
      %14 = arith.cmpf oge, %12, %13 : vector<16x128xf32>
      %cst_13 = arith.constant 2.000000e-01 : f32
      %15 = vector.broadcast %cst_13 : f32 to vector<16x128xf32>
      %16 = arith.mulf %15, %12 : vector<16x128xf32>
      %17 = arith.select %14, %12, %16 : vector<16x128xi1>, vector<16x128xf32>
      %18 = arith.truncf %17 : vector<16x128xf32> to vector<16x128xbf16>
      %c0_14 = arith.constant 0 : index
      %c0_15 = arith.constant 0 : index
      %19 = vector.load %arg6[%c0_14, %c0_15] : memref<16x128xbf16, #tpu.memory_space<vmem>>, vector<16x128xbf16>
      tpu.vector_store %arg6[%c0_14, %c0_15], %18 {strides = array<i32>} : memref<16x128xbf16, #tpu.memory_space<vmem>>, vector<16x128xbf16>,
    } else {
    }
    return
  }
  func.func @transform_0(%arg0: i32, %arg1: i32, %arg2: i32) -> (i32, i32) {
    %c0_i32 = arith.constant 0 : i32
    return %arg0, %arg2 : i32, i32
  }
  func.func @transform_1(%arg0: i32, %arg1: i32, %arg2: i32) -> (i32, i32) {
    %c0_i32 = arith.constant 0 : i32
    return %arg2, %arg1 : i32, i32
  }
  func.func @transform_2(%arg0: i32, %arg1: i32, %arg2: i32) -> (i32, i32) {
    %c0_i32 = arith.constant 0 : i32
    %c0_i32_0 = arith.constant 0 : i32
    return %c0_i32, %arg1 : i32, i32
  }
  func.func @transform_3(%arg0: i32, %arg1: i32, %arg2: i32) -> (i32, i32) {
    %c0_i32 = arith.constant 0 : i32
    return %arg0, %arg1 : i32, i32
  }
}

module attributes {stable_mosaic.version = 11 : i64} {
  func.func @_conv_mm_kernel(%arg0: i32, %arg1: i32, %arg2: i32, %arg3: memref<16x576xbf16, #tpu.memory_space<vmem>>, %arg4: memref<576x128xbf16, #tpu.memory_space<vmem>>, %arg5: memref<1x128xf32, #tpu.memory_space<vmem>>, %arg6: memref<16x128xbf16, #tpu.memory_space<vmem>>, %arg7: memref<16x128xf32, #tpu.memory_space<vmem>>) attributes {dimension_semantics = [#tpu.dimension_semantics<parallel>, #tpu.dimension_semantics<parallel>, #tpu.dimension_semantics<arbitrary>], iteration_bounds = array<i64: 2, 1, 1>, scalar_prefetch = 0 : i64, scratch_operands = 1 : i64, tpu.core_type = #tpu.core_type<tc>, window_params = [{transform_indices = @transform_0, window_bounds = array<i64: 16, 576>}, {transform_indices = @transform_1, window_bounds = array<i64: 576, 128>}, {transform_indices = @transform_2, window_bounds = array<i64: 1, 128>}, {transform_indices = @transform_3, window_bounds = array<i64: 16, 128>}]} {
    %c0_i32 = arith.constant 0 : i32
    %0 = arith.cmpi eq, %arg2, %c0_i32 : i32
    %1 = arith.extui %0 : i1 to i32
    %c0_i32_0 = arith.constant 0 : i32
    %2 = arith.cmpi ne, %1, %c0_i32_0 : i32
    scf.if %2 {
      %c0_10 = arith.constant 0 : index
      %c0_11 = arith.constant 0 : index
      %12 = vector.load %arg5[%c0_10, %c0_11] : memref<1x128xf32, #tpu.memory_space<vmem>>, vector<1x128xf32>
      %13 = vector.shape_cast %12 : vector<1x128xf32> to vector<1x128xf32>
      %14 = vector.broadcast %13 : vector<1x128xf32> to vector<16x128xf32>
      %c0_12 = arith.constant 0 : index
      %c0_13 = arith.constant 0 : index
      %15 = vector.load %arg7[%c0_12, %c0_13] : memref<16x128xf32, #tpu.memory_space<vmem>>, vector<16x128xf32>
      tpu.vector_store %arg7[%c0_12, %c0_13], %14 {strides = array<i32>} : memref<16x128xf32, #tpu.memory_space<vmem>>, vector<16x128xf32>,
    } else {
    }
    %c0 = arith.constant 0 : index
    %c0_1 = arith.constant 0 : index
    %3 = vector.load %arg7[%c0, %c0_1] : memref<16x128xf32, #tpu.memory_space<vmem>>, vector<16x128xf32>
    %c0_2 = arith.constant 0 : index
    %c0_3 = arith.constant 0 : index
    %4 = vector.load %arg3[%c0_2, %c0_3] : memref<16x576xbf16, #tpu.memory_space<vmem>>, vector<16x576xbf16>
    %c0_4 = arith.constant 0 : index
    %c0_5 = arith.constant 0 : index
    %5 = vector.load %arg4[%c0_4, %c0_5] : memref<576x128xbf16, #tpu.memory_space<vmem>>, vector<576x128xbf16>
    %cst = arith.constant dense<0.000000e+00> : vector<16x128xf32>
    %6 = tpu.matmul %4, %5, %cst {dimension_numbers = #tpu.dot_dimension_numbers<[1], [0], [0], [1], [0, 0, 1, 1], [], []>} : vector<16x576xbf16>, vector<576x128xbf16>, vector<16x128xf32> -> vector<16x128xf32>
    %7 = arith.addf %3, %6 : vector<16x128xf32>
    %c0_6 = arith.constant 0 : index
    %c0_7 = arith.constant 0 : index
    %8 = vector.load %arg7[%c0_6, %c0_7] : memref<16x128xf32, #tpu.memory_space<vmem>>, vector<16x128xf32>
    tpu.vector_store %arg7[%c0_6, %c0_7], %7 {strides = array<i32>} : memref<16x128xf32, #tpu.memory_space<vmem>>, vector<16x128xf32>,
    %c0_i32_8 = arith.constant 0 : i32
    %9 = arith.cmpi eq, %arg2, %c0_i32_8 : i32
    %10 = arith.extui %9 : i1 to i32
    %c0_i32_9 = arith.constant 0 : i32
    %11 = arith.cmpi ne, %10, %c0_i32_9 : i32
    scf.if %11 {
      %c0_10 = arith.constant 0 : index
      %c0_11 = arith.constant 0 : index
      %12 = vector.load %arg7[%c0_10, %c0_11] : memref<16x128xf32, #tpu.memory_space<vmem>>, vector<16x128xf32>
      %cst_12 = arith.constant 0.000000e+00 : f32
      %13 = vector.broadcast %cst_12 : f32 to vector<16x128xf32>
      %14 = arith.cmpf oge, %12, %13 : vector<16x128xf32>
      %cst_13 = arith.constant 2.000000e-01 : f32
      %15 = vector.broadcast %cst_13 : f32 to vector<16x128xf32>
      %16 = arith.mulf %15, %12 : vector<16x128xf32>
      %17 = arith.select %14, %12, %16 : vector<16x128xi1>, vector<16x128xf32>
      %18 = arith.truncf %17 : vector<16x128xf32> to vector<16x128xbf16>
      %c0_14 = arith.constant 0 : index
      %c0_15 = arith.constant 0 : index
      %19 = vector.load %arg6[%c0_14, %c0_15] : memref<16x128xbf16, #tpu.memory_space<vmem>>, vector<16x128xbf16>
      tpu.vector_store %arg6[%c0_14, %c0_15], %18 {strides = array<i32>} : memref<16x128xbf16, #tpu.memory_space<vmem>>, vector<16x128xbf16>,
    } else {
    }
    return
  }
  func.func @transform_0(%arg0: i32, %arg1: i32, %arg2: i32) -> (i32, i32) {
    %c0_i32 = arith.constant 0 : i32
    return %arg0, %arg2 : i32, i32
  }
  func.func @transform_1(%arg0: i32, %arg1: i32, %arg2: i32) -> (i32, i32) {
    %c0_i32 = arith.constant 0 : i32
    return %arg2, %arg1 : i32, i32
  }
  func.func @transform_2(%arg0: i32, %arg1: i32, %arg2: i32) -> (i32, i32) {
    %c0_i32 = arith.constant 0 : i32
    %c0_i32_0 = arith.constant 0 : i32
    return %c0_i32, %arg1 : i32, i32
  }
  func.func @transform_3(%arg0: i32, %arg1: i32, %arg2: i32) -> (i32, i32) {
    %c0_i32 = arith.constant 0 : i32
    return %arg0, %arg1 : i32, i32
  }
}

module attributes {stable_mosaic.version = 11 : i64} {
  func.func @_conv_mm_kernel(%arg0: i32, %arg1: i32, %arg2: i32, %arg3: memref<8x1152xbf16, #tpu.memory_space<vmem>>, %arg4: memref<1152x128xbf16, #tpu.memory_space<vmem>>, %arg5: memref<1x128xf32, #tpu.memory_space<vmem>>, %arg6: memref<8x128xbf16, #tpu.memory_space<vmem>>, %arg7: memref<8x128xf32, #tpu.memory_space<vmem>>) attributes {dimension_semantics = [#tpu.dimension_semantics<parallel>, #tpu.dimension_semantics<parallel>, #tpu.dimension_semantics<arbitrary>], iteration_bounds = array<i64: 1, 2, 1>, scalar_prefetch = 0 : i64, scratch_operands = 1 : i64, tpu.core_type = #tpu.core_type<tc>, window_params = [{transform_indices = @transform_0, window_bounds = array<i64: 8, 1152>}, {transform_indices = @transform_1, window_bounds = array<i64: 1152, 128>}, {transform_indices = @transform_2, window_bounds = array<i64: 1, 128>}, {transform_indices = @transform_3, window_bounds = array<i64: 8, 128>}]} {
    %c0_i32 = arith.constant 0 : i32
    %0 = arith.cmpi eq, %arg2, %c0_i32 : i32
    %1 = arith.extui %0 : i1 to i32
    %c0_i32_0 = arith.constant 0 : i32
    %2 = arith.cmpi ne, %1, %c0_i32_0 : i32
    scf.if %2 {
      %c0_10 = arith.constant 0 : index
      %c0_11 = arith.constant 0 : index
      %12 = vector.load %arg5[%c0_10, %c0_11] : memref<1x128xf32, #tpu.memory_space<vmem>>, vector<1x128xf32>
      %13 = vector.shape_cast %12 : vector<1x128xf32> to vector<1x128xf32>
      %14 = vector.broadcast %13 : vector<1x128xf32> to vector<8x128xf32>
      %c0_12 = arith.constant 0 : index
      %c0_13 = arith.constant 0 : index
      %15 = vector.load %arg7[%c0_12, %c0_13] : memref<8x128xf32, #tpu.memory_space<vmem>>, vector<8x128xf32>
      tpu.vector_store %arg7[%c0_12, %c0_13], %14 {strides = array<i32>} : memref<8x128xf32, #tpu.memory_space<vmem>>, vector<8x128xf32>,
    } else {
    }
    %c0 = arith.constant 0 : index
    %c0_1 = arith.constant 0 : index
    %3 = vector.load %arg7[%c0, %c0_1] : memref<8x128xf32, #tpu.memory_space<vmem>>, vector<8x128xf32>
    %c0_2 = arith.constant 0 : index
    %c0_3 = arith.constant 0 : index
    %4 = vector.load %arg3[%c0_2, %c0_3] : memref<8x1152xbf16, #tpu.memory_space<vmem>>, vector<8x1152xbf16>
    %c0_4 = arith.constant 0 : index
    %c0_5 = arith.constant 0 : index
    %5 = vector.load %arg4[%c0_4, %c0_5] : memref<1152x128xbf16, #tpu.memory_space<vmem>>, vector<1152x128xbf16>
    %cst = arith.constant dense<0.000000e+00> : vector<8x128xf32>
    %6 = tpu.matmul %4, %5, %cst {dimension_numbers = #tpu.dot_dimension_numbers<[1], [0], [0], [1], [0, 0, 1, 1], [], []>} : vector<8x1152xbf16>, vector<1152x128xbf16>, vector<8x128xf32> -> vector<8x128xf32>
    %7 = arith.addf %3, %6 : vector<8x128xf32>
    %c0_6 = arith.constant 0 : index
    %c0_7 = arith.constant 0 : index
    %8 = vector.load %arg7[%c0_6, %c0_7] : memref<8x128xf32, #tpu.memory_space<vmem>>, vector<8x128xf32>
    tpu.vector_store %arg7[%c0_6, %c0_7], %7 {strides = array<i32>} : memref<8x128xf32, #tpu.memory_space<vmem>>, vector<8x128xf32>,
    %c0_i32_8 = arith.constant 0 : i32
    %9 = arith.cmpi eq, %arg2, %c0_i32_8 : i32
    %10 = arith.extui %9 : i1 to i32
    %c0_i32_9 = arith.constant 0 : i32
    %11 = arith.cmpi ne, %10, %c0_i32_9 : i32
    scf.if %11 {
      %c0_10 = arith.constant 0 : index
      %c0_11 = arith.constant 0 : index
      %12 = vector.load %arg7[%c0_10, %c0_11] : memref<8x128xf32, #tpu.memory_space<vmem>>, vector<8x128xf32>
      %cst_12 = arith.constant 0.000000e+00 : f32
      %13 = vector.broadcast %cst_12 : f32 to vector<8x128xf32>
      %14 = arith.cmpf oge, %12, %13 : vector<8x128xf32>
      %cst_13 = arith.constant 2.000000e-01 : f32
      %15 = vector.broadcast %cst_13 : f32 to vector<8x128xf32>
      %16 = arith.mulf %15, %12 : vector<8x128xf32>
      %17 = arith.select %14, %12, %16 : vector<8x128xi1>, vector<8x128xf32>
      %18 = arith.truncf %17 : vector<8x128xf32> to vector<8x128xbf16>
      %c0_14 = arith.constant 0 : index
      %c0_15 = arith.constant 0 : index
      %19 = vector.load %arg6[%c0_14, %c0_15] : memref<8x128xbf16, #tpu.memory_space<vmem>>, vector<8x128xbf16>
      tpu.vector_store %arg6[%c0_14, %c0_15], %18 {strides = array<i32>} : memref<8x128xbf16, #tpu.memory_space<vmem>>, vector<8x128xbf16>,
    } else {
    }
    return
  }
  func.func @transform_0(%arg0: i32, %arg1: i32, %arg2: i32) -> (i32, i32) {
    %c0_i32 = arith.constant 0 : i32
    return %arg0, %arg2 : i32, i32
  }
  func.func @transform_1(%arg0: i32, %arg1: i32, %arg2: i32) -> (i32, i32) {
    %c0_i32 = arith.constant 0 : i32
    return %arg2, %arg1 : i32, i32
  }
  func.func @transform_2(%arg0: i32, %arg1: i32, %arg2: i32) -> (i32, i32) {
    %c0_i32 = arith.constant 0 : i32
    %c0_i32_0 = arith.constant 0 : i32
    return %c0_i32, %arg1 : i32, i32
  }
  func.func @transform_3(%arg0: i32, %arg1: i32, %arg2: i32) -> (i32, i32) {
    %c0_i32 = arith.constant 0 : i32
    return %arg0, %arg1 : i32, i32
  }
}

module attributes {stable_mosaic.version = 11 : i64} {
  func.func @_conv_mm_kernel(%arg0: i32, %arg1: i32, %arg2: i32, %arg3: memref<8x256xbf16, #tpu.memory_space<vmem>>, %arg4: memref<256x128xbf16, #tpu.memory_space<vmem>>, %arg5: memref<1x128xf32, #tpu.memory_space<vmem>>, %arg6: memref<8x128xf32, #tpu.memory_space<vmem>>, %arg7: memref<8x128xf32, #tpu.memory_space<vmem>>) attributes {dimension_semantics = [#tpu.dimension_semantics<parallel>, #tpu.dimension_semantics<parallel>, #tpu.dimension_semantics<arbitrary>], iteration_bounds = array<i64: 1, 1, 9>, scalar_prefetch = 0 : i64, scratch_operands = 1 : i64, tpu.core_type = #tpu.core_type<tc>, window_params = [{transform_indices = @transform_0, window_bounds = array<i64: 8, 256>}, {transform_indices = @transform_1, window_bounds = array<i64: 256, 128>}, {transform_indices = @transform_2, window_bounds = array<i64: 1, 128>}, {transform_indices = @transform_3, window_bounds = array<i64: 8, 128>}]} {
    %c0_i32 = arith.constant 0 : i32
    %0 = arith.cmpi eq, %arg2, %c0_i32 : i32
    %1 = arith.extui %0 : i1 to i32
    %c0_i32_0 = arith.constant 0 : i32
    %2 = arith.cmpi ne, %1, %c0_i32_0 : i32
    scf.if %2 {
      %c0_9 = arith.constant 0 : index
      %c0_10 = arith.constant 0 : index
      %12 = vector.load %arg5[%c0_9, %c0_10] : memref<1x128xf32, #tpu.memory_space<vmem>>, vector<1x128xf32>
      %13 = vector.shape_cast %12 : vector<1x128xf32> to vector<1x128xf32>
      %14 = vector.broadcast %13 : vector<1x128xf32> to vector<8x128xf32>
      %c0_11 = arith.constant 0 : index
      %c0_12 = arith.constant 0 : index
      %15 = vector.load %arg7[%c0_11, %c0_12] : memref<8x128xf32, #tpu.memory_space<vmem>>, vector<8x128xf32>
      tpu.vector_store %arg7[%c0_11, %c0_12], %14 {strides = array<i32>} : memref<8x128xf32, #tpu.memory_space<vmem>>, vector<8x128xf32>,
    } else {
    }
    %c0 = arith.constant 0 : index
    %c0_1 = arith.constant 0 : index
    %3 = vector.load %arg7[%c0, %c0_1] : memref<8x128xf32, #tpu.memory_space<vmem>>, vector<8x128xf32>
    %c0_2 = arith.constant 0 : index
    %c0_3 = arith.constant 0 : index
    %4 = vector.load %arg3[%c0_2, %c0_3] : memref<8x256xbf16, #tpu.memory_space<vmem>>, vector<8x256xbf16>
    %c0_4 = arith.constant 0 : index
    %c0_5 = arith.constant 0 : index
    %5 = vector.load %arg4[%c0_4, %c0_5] : memref<256x128xbf16, #tpu.memory_space<vmem>>, vector<256x128xbf16>
    %cst = arith.constant dense<0.000000e+00> : vector<8x128xf32>
    %6 = tpu.matmul %4, %5, %cst {dimension_numbers = #tpu.dot_dimension_numbers<[1], [0], [0], [1], [0, 0, 1, 1], [], []>} : vector<8x256xbf16>, vector<256x128xbf16>, vector<8x128xf32> -> vector<8x128xf32>
    %7 = arith.addf %3, %6 : vector<8x128xf32>
    %c0_6 = arith.constant 0 : index
    %c0_7 = arith.constant 0 : index
    %8 = vector.load %arg7[%c0_6, %c0_7] : memref<8x128xf32, #tpu.memory_space<vmem>>, vector<8x128xf32>
    tpu.vector_store %arg7[%c0_6, %c0_7], %7 {strides = array<i32>} : memref<8x128xf32, #tpu.memory_space<vmem>>, vector<8x128xf32>,
    %c8_i32 = arith.constant 8 : i32
    %9 = arith.cmpi eq, %arg2, %c8_i32 : i32
    %10 = arith.extui %9 : i1 to i32
    %c0_i32_8 = arith.constant 0 : i32
    %11 = arith.cmpi ne, %10, %c0_i32_8 : i32
    scf.if %11 {
      %c0_9 = arith.constant 0 : index
      %c0_10 = arith.constant 0 : index
      %12 = vector.load %arg7[%c0_9, %c0_10] : memref<8x128xf32, #tpu.memory_space<vmem>>, vector<8x128xf32>
      %c0_11 = arith.constant 0 : index
      %c0_12 = arith.constant 0 : index
      %13 = vector.load %arg6[%c0_11, %c0_12] : memref<8x128xf32, #tpu.memory_space<vmem>>, vector<8x128xf32>
      tpu.vector_store %arg6[%c0_11, %c0_12], %12 {strides = array<i32>} : memref<8x128xf32, #tpu.memory_space<vmem>>, vector<8x128xf32>,
    } else {
    }
    return
  }
  func.func @transform_0(%arg0: i32, %arg1: i32, %arg2: i32) -> (i32, i32) {
    %c0_i32 = arith.constant 0 : i32
    return %arg0, %arg2 : i32, i32
  }
  func.func @transform_1(%arg0: i32, %arg1: i32, %arg2: i32) -> (i32, i32) {
    %c0_i32 = arith.constant 0 : i32
    return %arg2, %arg1 : i32, i32
  }
  func.func @transform_2(%arg0: i32, %arg1: i32, %arg2: i32) -> (i32, i32) {
    %c0_i32 = arith.constant 0 : i32
    %c0_i32_0 = arith.constant 0 : i32
    return %c0_i32, %arg1 : i32, i32
  }
  func.func @transform_3(%arg0: i32, %arg1: i32, %arg2: i32) -> (i32, i32) {
    %c0_i32 = arith.constant 0 : i32
    return %arg0, %arg1 : i32, i32
  }
}

</mosaic_0001>

<llo_original>
// kernel: frequency_discriminator_forward.8
$region0: #{frequency_discriminator_forward.8}
  #allocation0 [shape = 'u32[]', space=smem, size = 0x4, offset = 0x4, fixed_abs, tag = 'smem constant byte address 0x4 - core index']
  #allocation1 [shape = 'u32[72,128]{1,0:T(1,128)}', space=vmem, size = 0x9000, scoped, tag = 'internal scratch']
  #allocation2 [shape = 'f32[64,128]{1,0:T(8,128)}', space=vmem, size = 0x8000, scoped, tag = 'scratch operand']
  %s0 = inlined_call_operand.vmem [shape: bf16[128,72], index: 0, kind: input, shape index: {}]
  %s1 = inlined_call_operand.vmem [shape: bf16[72,128], index: 1, kind: input, shape index: {}]
  %s2 = inlined_call_operand.vmem [shape: f32[1,128], index: 2, kind: input, shape index: {}]
  %s3 = inlined_call_operand.vmem [shape: bf16[128,128], index: 3, kind: output, shape index: {}]
  %s4 = sld [smem:[#allocation0]]
  $region53: #{frequency_discriminator_forward.8} parent=0
    _
  %s6 = ssub.s32 1, %s4
  %s7 = scalar_select 0, %s6, %s4
  loop: start=0, step=1, limit=4
  $region2: #{frequency_discriminator_forward.8} parent=0 // loop_pre_header
    _
  $region3: #{frequency_discriminator_forward.8} parent=0 // loop_header
    %s9 = sphi 0, %s13
    %p10 = scmp.ge.s32.totalorder %s9, 4
    %s16 = sphi 0, %s35
    %s17 = sphi 0, %s31
    %s18 = sphi 0, %s27
    %s19 = sphi 0, %s16
    %s20 = sphi 0, %s17
    %s21 = sphi 0, %s18
    %s22 = sphi 0, %s19
    %s23 = sphi 0, %s20
    %s24 = sphi 0, %s21
    %s40 = sphi 0, %s42
    %s43 = sphi 0, %s40
    %s44 = sphi 0, %s43
    %s60 = sphi 0, %s44
    %s68 = sphi 0, %s70
    %s71 = sphi 0, %s68
    %s72 = sphi 0, %s71
    %s88 = sphi 0, %s72
    %s94 = sphi 0, %s96
    %s97 = sphi 0, %s94
    %s98 = sphi 0, %s97
    %s114 = sphi 0, %s98
    %s122 = sphi 0, %s124
    %s125 = sphi 0, %s122
    %s126 = sphi 0, %s125
    %s142 = sphi 0, %s126
  $region4: #{frequency_discriminator_forward.8} parent=0 // loop_header_branch
    %12 = sbr.rel (%p10) target = $region8
  $region5: #{frequency_discriminator_forward.8} parent=0 // loop_body
    %s14 = ssub.s32 %s9, 1
    %s15 = ssub.s32 %s9, 2
    %s25 = sadd.s32 1, %s18
    %p26 = scmp.ge.s32.totalorder %s25, 1
    %s27 = scalar_select %p26, 0, %s25
    %s28 = sadd.s32 1, %s17
    %s29 = scalar_select %p26, %s28, %s17
    %p30 = scmp.ge.s32.totalorder %s29, 1
    %s31 = scalar_select %p30, 0, %s29
    %s32 = sadd.s32 1, %s16
    %s33 = scalar_select %p30, %s32, %s16
    %p34 = scmp.ge.s32.totalorder %s33, 2
    %s35 = scalar_select %p34, 0, %s33
    %s36 = ssub.s32 %s16, %s35
    %s37 = ssub.s32 %s18, %s27
    %s38 = sor.u32 %s36, %s37
    %p39 = scmp.eq.s32.totalorder %s38, 0
    %s41 = sadd.s32 %s40, 1
    %s42 = scalar_select %p39, %s40, %s41
    %p45 = pneg %p39
    %p46 = scmp.eq.s32.totalorder %s9, 1
    %p47 = por %p45, %p46
    %p48 = scmp.ne.s32.totalorder %s40, %s43
    %p49 = scmp.eq.s32.totalorder %s9, 0
    %p50 = por %p48, %p49
    %p51 = scmp.ne.s32.totalorder %s40, %s43
    %p52 = scmp.eq.s32.totalorder %s14, 1
    %p53 = por %p51, %p52
    %p54 = scmp.ne.s32.totalorder %s43, %s44
    %p55 = scmp.eq.s32.totalorder %s14, 0
    %p56 = por %p54, %p55
    %p57 = scmp.ne.s32.totalorder %s43, %s44
    %p58 = scmp.eq.s32.totalorder %s15, 1
    %p59 = por %p57, %p58
    %p61 = scmp.ne.s32.totalorder %s44, %s60
    %p62 = scmp.eq.s32.totalorder %s15, 0
    %p63 = por %p61, %p62
    %s64 = ssub.s32 %s18, %s27
    %s65 = ssub.s32 %s17, %s31
    %s66 = sor.u32 %s64, %s65
    %p67 = scmp.eq.s32.totalorder %s66, 0
    %s69 = sadd.s32 %s68, 1
    %s70 = scalar_select %p67, %s68, %s69
    %p73 = pneg %p67
    %p74 = scmp.eq.s32.totalorder %s9, 1
    %p75 = por %p73, %p74
    %p76 = scmp.ne.s32.totalorder %s68, %s71
    %p77 = scmp.eq.s32.totalorder %s9, 0
    %p78 = por %p76, %p77
    %p79 = scmp.ne.s32.totalorder %s68, %s71
    %p80 = scmp.eq.s32.totalorder %s14, 1
    %p81 = por %p79, %p80
    %p82 = scmp.ne.s32.totalorder %s71, %s72
    %p83 = scmp.eq.s32.totalorder %s14, 0
    %p84 = por %p82, %p83
    %p85 = scmp.ne.s32.totalorder %s71, %s72
    %p86 = scmp.eq.s32.totalorder %s15, 1
    %p87 = por %p85, %p86
    %p89 = scmp.ne.s32.totalorder %s72, %s88
    %p90 = scmp.eq.s32.totalorder %s15, 0
    %p91 = por %p89, %p90
    %s92 = ssub.s32 %s17, %s31
    %p93 = scmp.eq.s32.totalorder %s92, 0
    %s95 = sadd.s32 %s94, 1
    %s96 = scalar_select %p93, %s94, %s95
    %p99 = pneg %p93
    %p100 = scmp.eq.s32.totalorder %s9, 1
    %p101 = por %p99, %p100
    %p102 = scmp.ne.s32.totalorder %s94, %s97
    %p103 = scmp.eq.s32.totalorder %s9, 0
    %p104 = por %p102, %p103
    %p105 = scmp.ne.s32.totalorder %s94, %s97
    %p106 = scmp.eq.s32.totalorder %s14, 1
    %p107 = por %p105, %p106
    %p108 = scmp.ne.s32.totalorder %s97, %s98
    %p109 = scmp.eq.s32.totalorder %s14, 0
    %p110 = por %p108, %p109
    %p111 = scmp.ne.s32.totalorder %s97, %s98
    %p112 = scmp.eq.s32.totalorder %s15, 1
    %p113 = por %p111, %p112
    %p115 = scmp.ne.s32.totalorder %s98, %s114
    %p116 = scmp.eq.s32.totalorder %s15, 0
    %p117 = por %p115, %p116
    %s118 = ssub.s32 %s16, %s35
    %s119 = ssub.s32 %s17, %s31
    %s120 = sor.u32 %s118, %s119
    %p121 = scmp.eq.s32.totalorder %s120, 0
    %s123 = sadd.s32 %s122, 1
    %s124 = scalar_select %p121, %s122, %s123
    %p127 = pneg %p121
    %p128 = scmp.eq.s32.totalorder %s9, 1
    %p129 = por %p127, %p128
    %p130 = scmp.ne.s32.totalorder %s122, %s125
    %p131 = scmp.eq.s32.totalorder %s9, 0
    %p132 = por %p130, %p131
    %p133 = scmp.ne.s32.totalorder %s122, %s125
    %p134 = scmp.eq.s32.totalorder %s14, 1
    %p135 = por %p133, %p134
    %p136 = scmp.ne.s32.totalorder %s125, %s126
    %p137 = scmp.eq.s32.totalorder %s14, 0
    %p138 = por %p136, %p137
    %p139 = scmp.ne.s32.totalorder %s125, %s126
    %p140 = scmp.eq.s32.totalorder %s15, 1
    %p141 = por %p139, %p140
    %p143 = scmp.ne.s32.totalorder %s126, %s142
    %p144 = scmp.eq.s32.totalorder %s15, 0
    %p145 = por %p143, %p144
    %p146 = scmp.le.s32.totalorder 1, %s9
    %p147 = scmp.lt.s32.totalorder %s9, 3
    %p148 = pnand %p146, %p147
    %p149 = pneg %p148
    // Predicated region
    $region9: #{frequency_discriminator_forward.8} parent=5 // pred_check
      _
    $region10: #{frequency_discriminator_forward.8} parent=5 // pred_check_branch
      %151 = sbr.rel (%p148) target = $region12
    $region11: #{frequency_discriminator_forward.8} parent=5 // pred_region
      %s152 = ssub.s32 %s9, 1
      // Predicated region
      $region13: #{frequency_discriminator_forward.8} parent=11 // pred_check
        %p153 = pneg %p84
      $region14: #{frequency_discriminator_forward.8} parent=11 // pred_check_branch
        %155 = sbr.rel (%p153) target = $region16
      $region15: #{frequency_discriminator_forward.8} parent=11 // pred_region
        %s156 = smul.u32 9, %s21
        %p157 = scmp.lt.s32.totalorder %s156, 8
        %s158 = scalar_select %p157, %s156, 8
        %p159 = scmp.lt.s32.totalorder %s20, 0
        %s160 = scalar_select %p159, %s20, 0
        %s161 = sadd.s32 %s160, %s158
        %s162 = smul.addr %s161, 4
        %s163 = scalar_lea.vmem %s1, %s162
        %s164 = smul.u32 9, %s21
      $region16: #{frequency_discriminator_forward.8} parent=11 // pred_fallthru
        _
      // Predicated region
      $region17: #{frequency_discriminator_forward.8} parent=11 // pred_check
        %p165 = pneg %p110
      $region18: #{frequency_discriminator_forward.8} parent=11 // pred_check_branch
        %167 = sbr.rel (%p165) target = $region20
      $region19: #{frequency_discriminator_forward.8} parent=11 // pred_region
        %p168 = scmp.lt.s32.totalorder %s20, 0
        %s169 = scalar_select %p168, %s20, 0
        %s170 = scalar_lea.vmem %s2, %s169
      $region20: #{frequency_discriminator_forward.8} parent=11 // pred_fallthru
        _
    $region12: #{frequency_discriminator_forward.8} parent=5 // pred_fallthru
      _
    %p171 = scmp.lt.s32.totalorder %s9, 2
    // Predicated region
    $region21: #{frequency_discriminator_forward.8} parent=5 // pred_check
      %p172 = pneg %p171
    $region22: #{frequency_discriminator_forward.8} parent=5 // pred_check_branch
      %174 = sbr.rel (%p172) target = $region24
    $region23: #{frequency_discriminator_forward.8} parent=5 // pred_region
      // Predicated region
      $region25: #{frequency_discriminator_forward.8} parent=23 // pred_check
        %p175 = pneg %p50
      $region26: #{frequency_discriminator_forward.8} parent=23 // pred_check_branch
        %177 = sbr.rel (%p175) target = $region28
      $region27: #{frequency_discriminator_forward.8} parent=23 // pred_region
        %s178 = smul.u32 8, %s16
        %p179 = scmp.lt.s32.totalorder %s178, 15
        %s180 = scalar_select %p179, %s178, 15
        %p181 = scmp.lt.s32.totalorder %s18, 0
        %s182 = scalar_select %p181, %s18, 0
        %s183 = sadd.s32 %s182, %s180
        %s184 = smul.addr %s183, 4
        %s185 = scalar_lea.vmem %s0, %s184
        %s186 = smul.u32 8, %s16
      $region28: #{frequency_discriminator_forward.8} parent=23 // pred_fallthru
        _
    $region24: #{frequency_discriminator_forward.8} parent=5 // pred_fallthru
      _
    %p187 = scmp.le.s32.totalorder 1, %s9
    %p188 = scmp.lt.s32.totalorder %s9, 3
    %p189 = pnand %p187, %p188
    %p190 = pneg %p189
    // Predicated region
    $region29: #{frequency_discriminator_forward.8} parent=5 // pred_check
      _
    $region30: #{frequency_discriminator_forward.8} parent=5 // pred_check_branch
      %192 = sbr.rel (%p189) target = $region32
    $region31: #{frequency_discriminator_forward.8} parent=5 // pred_region
      %s193 = ssub.s32 %s9, 1
      %s194 = smul.u32 8, %s19
      %p195 = scmp.lt.s32.totalorder %s194, 15
      %s196 = scalar_select %p195, %s194, 15
      %p197 = scmp.lt.s32.totalorder %s21, 0
      %s198 = scalar_select %p197, %s21, 0
      %s199 = sadd.s32 %s198, %s196
      %s200 = smul.addr %s199, 4
      %s201 = scalar_lea.vmem %s0, %s200
      %p202 = pneg %p56
      %p203 = pneg %p53
      %s204 = smul.u32 9, %s21
      %p205 = scmp.lt.s32.totalorder %s204, 8
      %s206 = scalar_select %p205, %s204, 8
      %p207 = scmp.lt.s32.totalorder %s20, 0
      %s208 = scalar_select %p207, %s20, 0
      %s209 = sadd.s32 %s208, %s206
      %s210 = smul.addr %s209, 4
      %s211 = scalar_lea.vmem %s1, %s210
      %p212 = pneg %p84
      %p213 = pneg %p81
      %p214 = scmp.lt.s32.totalorder %s20, 0
      %s215 = scalar_select %p214, %s20, 0
      %s216 = scalar_lea.vmem %s2, %s215
      %p217 = pneg %p110
      %p218 = pneg %p107
      %p219 = pneg %p138
      %p220 = pneg %p135
      %s221 = smul.u32 8, %s19
      %p222 = scmp.lt.s32.totalorder %s221, 15
      %s223 = scalar_select %p222, %s221, 15
      %p224 = scmp.lt.s32.totalorder %s20, 0
      %s225 = scalar_select %p224, %s20, 0
      %s226 = sadd.s32 %s225, %s223
      %s227 = smul.addr %s226, 4
      %s228 = scalar_lea.vmem %s3, %s227
      %s229 = smul.u32 8, %s19
      %p230 = scmp.lt.s32.totalorder %s229, 15
      %s231 = scalar_select %p230, %s229, 15
      %p232 = scmp.lt.s32.totalorder %s21, 0
      %s233 = scalar_select %p232, %s21, 0
      %s234 = sadd.s32 %s233, %s231
      %s235 = smul.addr %s234, 4
      %s236 = scalar_lea.vmem %s0, %s235
      %s237 = smul.u32 8, %s19
      %s238 = smul.u32 9, %s21
      %p239 = scmp.lt.s32.totalorder %s238, 8
      %s240 = scalar_select %p239, %s238, 8
      %p241 = scmp.lt.s32.totalorder %s20, 0
      %s242 = scalar_select %p241, %s20, 0
      %s243 = sadd.s32 %s242, %s240
      %s244 = smul.addr %s243, 4
      %s245 = scalar_lea.vmem %s1, %s244
      %s246 = smul.u32 9, %s21
      %p247 = scmp.lt.s32.totalorder %s20, 0
      %s248 = scalar_select %p247, %s20, 0
      %s249 = scalar_lea.vmem %s2, %s248
      %s250 = smul.u32 8, %s19
      %p251 = scmp.lt.s32.totalorder %s250, 15
      %s252 = scalar_select %p251, %s250, 15
      %p253 = scmp.lt.s32.totalorder %s20, 0
      %s254 = scalar_select %p253, %s20, 0
      %s255 = sadd.s32 %s254, %s252
      %s256 = smul.addr %s255, 4
      %s257 = scalar_lea.vmem %s3, %s256
      %s258 = smul.u32 8, %s19
      %p260 = scmp.eq.s32.totalorder %s21, 0
      // Predicated region
      $region33: #{frequency_discriminator_forward.8} parent=31 // pred_check
        %p261 = pneg %p260
      $region34: #{frequency_discriminator_forward.8} parent=31 // pred_check_branch
        %263 = sbr.rel (%p261) target = $region36
      $region35: #{frequency_discriminator_forward.8} parent=31 // pred_region
        %v264 = vld [vmem:[%s249] sm:$0x1]
        %v266 = vperm.slane %v264, 0
        %268 = vst [vmem:[#allocation2] sm:$0xff] %v266
        %269 = vst [vmem:[#allocation2 + $0x8] sm:$0xff] %v266
        %270 = vst [vmem:[#allocation2 + $0x10] sm:$0xff] %v266
        %271 = vst [vmem:[#allocation2 + $0x18] sm:$0xff] %v266
        %272 = vst [vmem:[#allocation2 + $0x20] sm:$0xff] %v266
        %273 = vst [vmem:[#allocation2 + $0x28] sm:$0xff] %v266
        %274 = vst [vmem:[#allocation2 + $0x30] sm:$0xff] %v266
        %275 = vst [vmem:[#allocation2 + $0x38] sm:$0xff] %v266
      $region36: #{frequency_discriminator_forward.8} parent=31 // pred_fallthru
        _
      %v276 = vld [vmem:[#allocation2] sm:$0xff]
      %v277 = vld [vmem:[#allocation2 + $0x8] sm:$0xff]
      %v278 = vld [vmem:[#allocation2 + $0x10] sm:$0xff]
      %v279 = vld [vmem:[#allocation2 + $0x18] sm:$0xff]
      %v280 = vld [vmem:[#allocation2 + $0x20] sm:$0xff]
      %v281 = vld [vmem:[#allocation2 + $0x28] sm:$0xff]
      %v282 = vld [vmem:[#allocation2 + $0x30] sm:$0xff]
      %v283 = vld [vmem:[#allocation2 + $0x38] sm:$0xff]
      %v284 = vld [vmem:[%s236] sm:$0xf]
      %v285 = vld [vmem:[%s236 + $0x4] sm:$0xf]
      %v286 = vld [vmem:[%s236 + $0x8] sm:$0xf]
      %v287 = vld [vmem:[%s236 + $0xc] sm:$0xf]
      %v288 = vld [vmem:[%s236 + $0x10] sm:$0xf]
      %v289 = vld [vmem:[%s236 + $0x14] sm:$0xf]
      %v290 = vld [vmem:[%s236 + $0x18] sm:$0xf]
      %v291 = vld [vmem:[%s236 + $0x1c] sm:$0xf]
      %v292 = vld [vmem:[%s245] sm:$0xf]
      %v293 = vld [vmem:[%s245 + $0x4] sm:$0xf]
      %v294 = vld [vmem:[%s245 + $0x8] sm:$0xf]
      %v295 = vld [vmem:[%s245 + $0xc] sm:$0xf]
      %v296 = vld [vmem:[%s245 + $0x10] sm:$0xf]
      %v297 = vld [vmem:[%s245 + $0x14] sm:$0xf]
      %v298 = vld [vmem:[%s245 + $0x18] sm:$0xf]
      %v299 = vld [vmem:[%s245 + $0x1c] sm:$0xf]
      %v300 = vld [vmem:[%s245 + $0x20] sm:$0xf]
      %v309 = vunpack.c.l.b16 %v284
      %v310 = vunpack.c.l.b16 %v285
      %v311 = vunpack.c.l.b16 %v286
      %v312 = vunpack.c.l.b16 %v287
      %v313 = vunpack.c.l.b16 %v288
      %v314 = vunpack.c.l.b16 %v289
      %v315 = vunpack.c.l.b16 %v290
      %v316 = vunpack.c.l.b16 %v291
      %v317 = vpack.c.b16 %v310, %v309
      %v318 = vpack.c.b16 %v312, %v311
      %v319 = vpack.c.b16 %v314, %v313
      %v320 = vpack.c.b16 %v316, %v315
      %v330 = vunpack.c.l.b16 %v292
      %v331 = vunpack.c.l.b16 %v293
      %v332 = vunpack.c.l.b16 %v294
      %v333 = vunpack.c.l.b16 %v295
      %v334 = vunpack.c.l.b16 %v296
      %v335 = vunpack.c.l.b16 %v297
      %v336 = vunpack.c.l.b16 %v298
      %v337 = vunpack.c.l.b16 %v299
      %v338 = vunpack.c.l.b16 %v300
      %v339 = vpack.c.b16 %v331, %v330
      %v340 = vpack.c.b16 %v333, %v332
      %v341 = vpack.c.b16 %v335, %v334
      %v342 = vpack.c.b16 %v337, %v336
      %v343 = vpack.c.b16 %v338, %v338
      %vm348 = vcmask 588800
      %v350 = vsel %vm348, %v317, 0
      %v353 = vsel %vm348, %v318, 0
      %v356 = vsel %vm348, %v319, 0
      %v359 = vsel %vm348, %v320, 0
      %vm361 = vcmask 1043456
      %v363 = vsel %vm361, %v343, 0
      %365 = vmatpush.bf16.msra.mxu0 0
      %366 = vmatpush.bf16.msra.mxu0 0
      %367 = vmatpush.bf16.msra.mxu0 0
      %368 = vmatpush.bf16.msra.mxu0 %v363
      %369 = vmatpush.bf16.msra.mxu0 %v342
      %370 = vmatpush.bf16.msra.mxu0 %v341
      %371 = vmatpush.bf16.msra.mxu0 %v340
      %372 = vmatpush.bf16.msra.mxu0 %v339
      %373 = vmatmul.bf16.gmra.mxu0 %v350
      %v374 = vpop.f32.mrf.mxu0
      %v375 = vadd.f32 0.0, %v374
      %v376 = vpop.f32.mrf.mxu0
      %v377 = vadd.f32 0.0, %v376
      %378 = vmatmul.bf16.gmra.mxu0 %v353
      %v379 = vpop.f32.mrf.mxu0
      %v380 = vadd.f32 0.0, %v379
      %v381 = vpop.f32.mrf.mxu0
      %v382 = vadd.f32 0.0, %v381
      %383 = vmatmul.bf16.gmra.mxu0 %v356
      %v384 = vpop.f32.mrf.mxu0
      %v385 = vadd.f32 0.0, %v384
      %v386 = vpop.f32.mrf.mxu0
      %v387 = vadd.f32 0.0, %v386
      %388 = vmatmul.bf16.gmra.mxu0 %v359
      %v389 = vpop.f32.mrf.mxu0
      %v390 = vadd.f32 0.0, %v389
      %v391 = vpop.f32.mrf.mxu0
      %v392 = vadd.f32 0.0, %v391
      %393 = vdwg.mxu0
      %v394 = vadd.f32 %v276, %v375
      %v395 = vadd.f32 %v277, %v377
      %v396 = vadd.f32 %v278, %v380
      %v397 = vadd.f32 %v279, %v382
      %v398 = vadd.f32 %v280, %v385
      %v399 = vadd.f32 %v281, %v387
      %v400 = vadd.f32 %v282, %v390
      %v401 = vadd.f32 %v283, %v392
      %402 = vst [vmem:[#allocation2] sm:$0xff] %v394
      %403 = vst [vmem:[#allocation2 + $0x8] sm:$0xff] %v395
      %404 = vst [vmem:[#allocation2 + $0x10] sm:$0xff] %v396
      %405 = vst [vmem:[#allocation2 + $0x18] sm:$0xff] %v397
      %406 = vst [vmem:[#allocation2 + $0x20] sm:$0xff] %v398
      %407 = vst [vmem:[#allocation2 + $0x28] sm:$0xff] %v399
      %408 = vst [vmem:[#allocation2 + $0x30] sm:$0xff] %v400
      %409 = vst [vmem:[#allocation2 + $0x38] sm:$0xff] %v401
      // Predicated region
      $region37: #{frequency_discriminator_forward.8} parent=31 // pred_check
        %p410 = pneg %p260
      $region38: #{frequency_discriminator_forward.8} parent=31 // pred_check_branch
        %412 = sbr.rel (%p410) target = $region40
      $region39: #{frequency_discriminator_forward.8} parent=31 // pred_region
        %v413 = vld [vmem:[#allocation2] sm:$0xff]
        %v414 = vld [vmem:[#allocation2 + $0x8] sm:$0xff]
        %v415 = vld [vmem:[#allocation2 + $0x10] sm:$0xff]
        %v416 = vld [vmem:[#allocation2 + $0x18] sm:$0xff]
        %v417 = vld [vmem:[#allocation2 + $0x20] sm:$0xff]
        %v418 = vld [vmem:[#allocation2 + $0x28] sm:$0xff]
        %v419 = vld [vmem:[#allocation2 + $0x30] sm:$0xff]
        %v420 = vld [vmem:[#allocation2 + $0x38] sm:$0xff]
        %vm421 = vcmp.ge.f32.partialorder %v413, 0.0
        %vm422 = vcmp.ge.f32.partialorder %v414, 0.0
        %vm423 = vcmp.ge.f32.partialorder %v415, 0.0
        %vm424 = vcmp.ge.f32.partialorder %v416, 0.0
        %vm425 = vcmp.ge.f32.partialorder %v417, 0.0
        %vm426 = vcmp.ge.f32.partialorder %v418, 0.0
        %vm427 = vcmp.ge.f32.partialorder %v419, 0.0
        %vm428 = vcmp.ge.f32.partialorder %v420, 0.0
        %v429 = vmul.f32 %v413, 0.2
        %v430 = vmul.f32 %v414, 0.2
        %v431 = vmul.f32 %v415, 0.2
        %v432 = vmul.f32 %v416, 0.2
        %v433 = vmul.f32 %v417, 0.2
        %v434 = vmul.f32 %v418, 0.2
        %v435 = vmul.f32 %v419, 0.2
        %v436 = vmul.f32 %v420, 0.2
        %v437 = vsel %vm421, %v413, %v429
        %v438 = vsel %vm422, %v414, %v430
        %v439 = vsel %vm423, %v415, %v431
        %v440 = vsel %vm424, %v416, %v432
        %v441 = vsel %vm425, %v417, %v433
        %v442 = vsel %vm426, %v418, %v434
        %v443 = vsel %vm427, %v419, %v435
        %v444 = vsel %vm428, %v420, %v436
        %v445 = vpack.c.bf16 %v437, %v437
        %v446 = vpack.c.bf16 %v438, %v438
        %v447 = vpack.c.bf16 %v439, %v439
        %v448 = vpack.c.bf16 %v440, %v440
        %v449 = vpack.c.bf16 %v441, %v441
        %v450 = vpack.c.bf16 %v442, %v442
        %v451 = vpack.c.bf16 %v443, %v443
        %v452 = vpack.c.bf16 %v444, %v444
        %453 = vst [vmem:[%s257] sm:$0xf] %v445
        %454 = vst [vmem:[%s257 + $0x4] sm:$0xf] %v446
        %455 = vst [vmem:[%s257 + $0x8] sm:$0xf] %v447
        %456 = vst [vmem:[%s257 + $0xc] sm:$0xf] %v448
        %457 = vst [vmem:[%s257 + $0x10] sm:$0xf] %v449
        %458 = vst [vmem:[%s257 + $0x14] sm:$0xf] %v450
        %459 = vst [vmem:[%s257 + $0x18] sm:$0xf] %v451
        %460 = vst [vmem:[%s257 + $0x1c] sm:$0xf] %v452
      $region40: #{frequency_discriminator_forward.8} parent=31 // pred_fallthru
        _
      %s461 = smul.u32 8, %s19
      %p462 = scmp.lt.s32.totalorder %s461, 15
      %s463 = scalar_select %p462, %s461, 15
      %p464 = scmp.lt.s32.totalorder %s20, 0
      %s465 = scalar_select %p464, %s20, 0
      %s466 = sadd.s32 %s465, %s463
      %s467 = smul.addr %s466, 4
      %s468 = scalar_lea.vmem %s3, %s467
      // Predicated region
      $region41: #{frequency_discriminator_forward.8} parent=31 // pred_check
        %p469 = pneg %p135
      $region42: #{frequency_discriminator_forward.8} parent=31 // pred_check_branch
        %471 = sbr.rel (%p469) target = $region44
      $region43: #{frequency_discriminator_forward.8} parent=31 // pred_region
        %s472 = smul.u32 8, %s19
      $region44: #{frequency_discriminator_forward.8} parent=31 // pred_fallthru
        _
    $region32: #{frequency_discriminator_forward.8} parent=5 // pred_fallthru
      _
    %p473 = scmp.le.s32.totalorder 2, %s9
    // Predicated region
    $region45: #{frequency_discriminator_forward.8} parent=5 // pred_check
      %p474 = pneg %p473
    $region46: #{frequency_discriminator_forward.8} parent=5 // pred_check_branch
      %476 = sbr.rel (%p474) target = $region48
    $region47: #{frequency_discriminator_forward.8} parent=5 // pred_region
      %s477 = ssub.s32 %s9, 2
      // Predicated region
      $region49: #{frequency_discriminator_forward.8} parent=47 // pred_check
        %p478 = pneg %p141
      $region50: #{frequency_discriminator_forward.8} parent=47 // pred_check_branch
        %480 = sbr.rel (%p478) target = $region52
      $region51: #{frequency_discriminator_forward.8} parent=47 // pred_region
        %s481 = smul.u32 8, %s22
        %p482 = scmp.lt.s32.totalorder %s481, 15
        %s483 = scalar_select %p482, %s481, 15
        %p484 = scmp.lt.s32.totalorder %s23, 0
        %s485 = scalar_select %p484, %s23, 0
        %s486 = sadd.s32 %s485, %s483
        %s487 = smul.addr %s486, 4
        %s488 = scalar_lea.vmem %s3, %s487
      $region52: #{frequency_discriminator_forward.8} parent=47 // pred_fallthru
        _
    $region48: #{frequency_discriminator_forward.8} parent=5 // pred_fallthru
      _
  $region6: #{frequency_discriminator_forward.8} parent=0 // loop_footer
    %s13 = sadd.s32 1, %s9
  $region7: #{frequency_discriminator_forward.8} parent=0 // loop_footer_branch
    %8 = sbr.rel target = $region3
  $region8: #{frequency_discriminator_forward.8} parent=0 // loop_exit
    _

// kernel: frequency_discriminator_forward.7
$region0: #{frequency_discriminator_forward.7}
  #allocation0 [shape = 'u32[]', space=smem, size = 0x4, offset = 0x4, fixed_abs, tag = 'smem constant byte address 0x4 - core index']
  #allocation1 [shape = 'u32[72,128]{1,0:T(1,128)}', space=vmem, size = 0x9000, scoped, tag = 'internal scratch']
  #allocation2 [shape = 'f32[256,128]{1,0:T(8,128)}', space=vmem, size = 0x20000, scoped, tag = 'scratch operand']
  %s0 = inlined_call_operand.vmem [shape: bf16[512,36], index: 0, kind: input, shape index: {}]
  %s1 = inlined_call_operand.vmem [shape: bf16[36,128], index: 1, kind: input, shape index: {}]
  %s2 = inlined_call_operand.vmem [shape: f32[1,128], index: 2, kind: input, shape index: {}]
  %s3 = inlined_call_operand.vmem [shape: bf16[512,128], index: 3, kind: output, shape index: {}]
  %s4 = sld [smem:[#allocation0]]
  $region53: #{frequency_discriminator_forward.7} parent=0
    _
  %s6 = ssub.s32 1, %s4
  %s7 = scalar_select 0, %s6, %s4
  loop: start=0, step=1, limit=4
  $region2: #{frequency_discriminator_forward.7} parent=0 // loop_pre_header
    _
  $region3: #{frequency_discriminator_forward.7} parent=0 // loop_header
    %s9 = sphi 0, %s13
    %p10 = scmp.ge.s32.totalorder %s9, 4
    %s16 = sphi 0, %s35
    %s17 = sphi 0, %s31
    %s18 = sphi 0, %s27
    %s19 = sphi 0, %s16
    %s20 = sphi 0, %s17
    %s21 = sphi 0, %s18
    %s22 = sphi 0, %s19
    %s23 = sphi 0, %s20
    %s24 = sphi 0, %s21
    %s40 = sphi 0, %s42
    %s43 = sphi 0, %s40
    %s44 = sphi 0, %s43
    %s60 = sphi 0, %s44
    %s68 = sphi 0, %s70
    %s71 = sphi 0, %s68
    %s72 = sphi 0, %s71
    %s88 = sphi 0, %s72
    %s94 = sphi 0, %s96
    %s97 = sphi 0, %s94
    %s98 = sphi 0, %s97
    %s114 = sphi 0, %s98
    %s122 = sphi 0, %s124
    %s125 = sphi 0, %s122
    %s126 = sphi 0, %s125
    %s142 = sphi 0, %s126
  $region4: #{frequency_discriminator_forward.7} parent=0 // loop_header_branch
    %12 = sbr.rel (%p10) target = $region8
  $region5: #{frequency_discriminator_forward.7} parent=0 // loop_body
    %s14 = ssub.s32 %s9, 1
    %s15 = ssub.s32 %s9, 2
    %s25 = sadd.s32 1, %s18
    %p26 = scmp.ge.s32.totalorder %s25, 1
    %s27 = scalar_select %p26, 0, %s25
    %s28 = sadd.s32 1, %s17
    %s29 = scalar_select %p26, %s28, %s17
    %p30 = scmp.ge.s32.totalorder %s29, 1
    %s31 = scalar_select %p30, 0, %s29
    %s32 = sadd.s32 1, %s16
    %s33 = scalar_select %p30, %s32, %s16
    %p34 = scmp.ge.s32.totalorder %s33, 2
    %s35 = scalar_select %p34, 0, %s33
    %s36 = ssub.s32 %s16, %s35
    %s37 = ssub.s32 %s18, %s27
    %s38 = sor.u32 %s36, %s37
    %p39 = scmp.eq.s32.totalorder %s38, 0
    %s41 = sadd.s32 %s40, 1
    %s42 = scalar_select %p39, %s40, %s41
    %p45 = pneg %p39
    %p46 = scmp.eq.s32.totalorder %s9, 1
    %p47 = por %p45, %p46
    %p48 = scmp.ne.s32.totalorder %s40, %s43
    %p49 = scmp.eq.s32.totalorder %s9, 0
    %p50 = por %p48, %p49
    %p51 = scmp.ne.s32.totalorder %s40, %s43
    %p52 = scmp.eq.s32.totalorder %s14, 1
    %p53 = por %p51, %p52
    %p54 = scmp.ne.s32.totalorder %s43, %s44
    %p55 = scmp.eq.s32.totalorder %s14, 0
    %p56 = por %p54, %p55
    %p57 = scmp.ne.s32.totalorder %s43, %s44
    %p58 = scmp.eq.s32.totalorder %s15, 1
    %p59 = por %p57, %p58
    %p61 = scmp.ne.s32.totalorder %s44, %s60
    %p62 = scmp.eq.s32.totalorder %s15, 0
    %p63 = por %p61, %p62
    %s64 = ssub.s32 %s18, %s27
    %s65 = ssub.s32 %s17, %s31
    %s66 = sor.u32 %s64, %s65
    %p67 = scmp.eq.s32.totalorder %s66, 0
    %s69 = sadd.s32 %s68, 1
    %s70 = scalar_select %p67, %s68, %s69
    %p73 = pneg %p67
    %p74 = scmp.eq.s32.totalorder %s9, 1
    %p75 = por %p73, %p74
    %p76 = scmp.ne.s32.totalorder %s68, %s71
    %p77 = scmp.eq.s32.totalorder %s9, 0
    %p78 = por %p76, %p77
    %p79 = scmp.ne.s32.totalorder %s68, %s71
    %p80 = scmp.eq.s32.totalorder %s14, 1
    %p81 = por %p79, %p80
    %p82 = scmp.ne.s32.totalorder %s71, %s72
    %p83 = scmp.eq.s32.totalorder %s14, 0
    %p84 = por %p82, %p83
    %p85 = scmp.ne.s32.totalorder %s71, %s72
    %p86 = scmp.eq.s32.totalorder %s15, 1
    %p87 = por %p85, %p86
    %p89 = scmp.ne.s32.totalorder %s72, %s88
    %p90 = scmp.eq.s32.totalorder %s15, 0
    %p91 = por %p89, %p90
    %s92 = ssub.s32 %s17, %s31
    %p93 = scmp.eq.s32.totalorder %s92, 0
    %s95 = sadd.s32 %s94, 1
    %s96 = scalar_select %p93, %s94, %s95
    %p99 = pneg %p93
    %p100 = scmp.eq.s32.totalorder %s9, 1
    %p101 = por %p99, %p100
    %p102 = scmp.ne.s32.totalorder %s94, %s97
    %p103 = scmp.eq.s32.totalorder %s9, 0
    %p104 = por %p102, %p103
    %p105 = scmp.ne.s32.totalorder %s94, %s97
    %p106 = scmp.eq.s32.totalorder %s14, 1
    %p107 = por %p105, %p106
    %p108 = scmp.ne.s32.totalorder %s97, %s98
    %p109 = scmp.eq.s32.totalorder %s14, 0
    %p110 = por %p108, %p109
    %p111 = scmp.ne.s32.totalorder %s97, %s98
    %p112 = scmp.eq.s32.totalorder %s15, 1
    %p113 = por %p111, %p112
    %p115 = scmp.ne.s32.totalorder %s98, %s114
    %p116 = scmp.eq.s32.totalorder %s15, 0
    %p117 = por %p115, %p116
    %s118 = ssub.s32 %s16, %s35
    %s119 = ssub.s32 %s17, %s31
    %s120 = sor.u32 %s118, %s119
    %p121 = scmp.eq.s32.totalorder %s120, 0
    %s123 = sadd.s32 %s122, 1
    %s124 = scalar_select %p121, %s122, %s123
    %p127 = pneg %p121
    %p128 = scmp.eq.s32.totalorder %s9, 1
    %p129 = por %p127, %p128
    %p130 = scmp.ne.s32.totalorder %s122, %s125
    %p131 = scmp.eq.s32.totalorder %s9, 0
    %p132 = por %p130, %p131
    %p133 = scmp.ne.s32.totalorder %s122, %s125
    %p134 = scmp.eq.s32.totalorder %s14, 1
    %p135 = por %p133, %p134
    %p136 = scmp.ne.s32.totalorder %s125, %s126
    %p137 = scmp.eq.s32.totalorder %s14, 0
    %p138 = por %p136, %p137
    %p139 = scmp.ne.s32.totalorder %s125, %s126
    %p140 = scmp.eq.s32.totalorder %s15, 1
    %p141 = por %p139, %p140
    %p143 = scmp.ne.s32.totalorder %s126, %s142
    %p144 = scmp.eq.s32.totalorder %s15, 0
    %p145 = por %p143, %p144
    %p146 = scmp.le.s32.totalorder 1, %s9
    %p147 = scmp.lt.s32.totalorder %s9, 3
    %p148 = pnand %p146, %p147
    %p149 = pneg %p148
    // Predicated region
    $region9: #{frequency_discriminator_forward.7} parent=5 // pred_check
      _
    $region10: #{frequency_discriminator_forward.7} parent=5 // pred_check_branch
      %151 = sbr.rel (%p148) target = $region12
    $region11: #{frequency_discriminator_forward.7} parent=5 // pred_region
      %s152 = ssub.s32 %s9, 1
      // Predicated region
      $region13: #{frequency_discriminator_forward.7} parent=11 // pred_check
        %p153 = pneg %p84
      $region14: #{frequency_discriminator_forward.7} parent=11 // pred_check_branch
        %155 = sbr.rel (%p153) target = $region16
      $region15: #{frequency_discriminator_forward.7} parent=11 // pred_region
        %s156 = smul.u32 5, %s21
        %p157 = scmp.lt.s32.totalorder %s156, 4
        %s158 = scalar_select %p157, %s156, 4
        %p159 = scmp.lt.s32.totalorder %s20, 0
        %s160 = scalar_select %p159, %s20, 0
        %s161 = sadd.s32 %s160, %s158
        %s162 = smul.addr %s161, 4
        %s163 = scalar_lea.vmem %s1, %s162
        %s164 = smul.u32 5, %s21
      $region16: #{frequency_discriminator_forward.7} parent=11 // pred_fallthru
        _
      // Predicated region
      $region17: #{frequency_discriminator_forward.7} parent=11 // pred_check
        %p165 = pneg %p110
      $region18: #{frequency_discriminator_forward.7} parent=11 // pred_check_branch
        %167 = sbr.rel (%p165) target = $region20
      $region19: #{frequency_discriminator_forward.7} parent=11 // pred_region
        %p168 = scmp.lt.s32.totalorder %s20, 0
        %s169 = scalar_select %p168, %s20, 0
        %s170 = scalar_lea.vmem %s2, %s169
      $region20: #{frequency_discriminator_forward.7} parent=11 // pred_fallthru
        _
    $region12: #{frequency_discriminator_forward.7} parent=5 // pred_fallthru
      _
    %p171 = scmp.lt.s32.totalorder %s9, 2
    // Predicated region
    $region21: #{frequency_discriminator_forward.7} parent=5 // pred_check
      %p172 = pneg %p171
    $region22: #{frequency_discriminator_forward.7} parent=5 // pred_check_branch
      %174 = sbr.rel (%p172) target = $region24
    $region23: #{frequency_discriminator_forward.7} parent=5 // pred_region
      // Predicated region
      $region25: #{frequency_discriminator_forward.7} parent=23 // pred_check
        %p175 = pneg %p50
      $region26: #{frequency_discriminator_forward.7} parent=23 // pred_check_branch
        %177 = sbr.rel (%p175) target = $region28
      $region27: #{frequency_discriminator_forward.7} parent=23 // pred_region
        %s178 = smul.u32 32, %s16
        %p179 = scmp.lt.s32.totalorder %s178, 63
        %s180 = scalar_select %p179, %s178, 63
        %p181 = scmp.lt.s32.totalorder %s18, 0
        %s182 = scalar_select %p181, %s18, 0
        %s183 = sadd.s32 %s182, %s180
        %s184 = smul.addr %s183, 4
        %s185 = scalar_lea.vmem %s0, %s184
        %s186 = smul.u32 32, %s16
      $region28: #{frequency_discriminator_forward.7} parent=23 // pred_fallthru
        _
    $region24: #{frequency_discriminator_forward.7} parent=5 // pred_fallthru
      _
    %p187 = scmp.le.s32.totalorder 1, %s9
    %p188 = scmp.lt.s32.totalorder %s9, 3
    %p189 = pnand %p187, %p188
    %p190 = pneg %p189
    // Predicated region
    $region29: #{frequency_discriminator_forward.7} parent=5 // pred_check
      _
    $region30: #{frequency_discriminator_forward.7} parent=5 // pred_check_branch
      %192 = sbr.rel (%p189) target = $region32
    $region31: #{frequency_discriminator_forward.7} parent=5 // pred_region
      %s193 = ssub.s32 %s9, 1
      %s194 = smul.u32 32, %s19
      %p195 = scmp.lt.s32.totalorder %s194, 63
      %s196 = scalar_select %p195, %s194, 63
      %p197 = scmp.lt.s32.totalorder %s21, 0
      %s198 = scalar_select %p197, %s21, 0
      %s199 = sadd.s32 %s198, %s196
      %s200 = smul.addr %s199, 4
      %s201 = scalar_lea.vmem %s0, %s200
      %p202 = pneg %p56
      %p203 = pneg %p53
      %s204 = smul.u32 5, %s21
      %p205 = scmp.lt.s32.totalorder %s204, 4
      %s206 = scalar_select %p205, %s204, 4
      %p207 = scmp.lt.s32.totalorder %s20, 0
      %s208 = scalar_select %p207, %s20, 0
      %s209 = sadd.s32 %s208, %s206
      %s210 = smul.addr %s209, 4
      %s211 = scalar_lea.vmem %s1, %s210
      %p212 = pneg %p84
      %p213 = pneg %p81
      %p214 = scmp.lt.s32.totalorder %s20, 0
      %s215 = scalar_select %p214, %s20, 0
      %s216 = scalar_lea.vmem %s2, %s215
      %p217 = pneg %p110
      %p218 = pneg %p107
      %p219 = pneg %p138
      %p220 = pneg %p135
      %s221 = smul.u32 32, %s19
      %p222 = scmp.lt.s32.totalorder %s221, 63
      %s223 = scalar_select %p222, %s221, 63
      %p224 = scmp.lt.s32.totalorder %s20, 0
      %s225 = scalar_select %p224, %s20, 0
      %s226 = sadd.s32 %s225, %s223
      %s227 = smul.addr %s226, 4
      %s228 = scalar_lea.vmem %s3, %s227
      %s229 = smul.u32 32, %s19
      %p230 = scmp.lt.s32.totalorder %s229, 63
      %s231 = scalar_select %p230, %s229, 63
      %p232 = scmp.lt.s32.totalorder %s21, 0
      %s233 = scalar_select %p232, %s21, 0
      %s234 = sadd.s32 %s233, %s231
      %s235 = smul.addr %s234, 4
      %s236 = scalar_lea.vmem %s0, %s235
      %s237 = smul.u32 32, %s19
      %s238 = smul.u32 5, %s21
      %p239 = scmp.lt.s32.totalorder %s238, 4
      %s240 = scalar_select %p239, %s238, 4
      %p241 = scmp.lt.s32.totalorder %s20, 0
      %s242 = scalar_select %p241, %s20, 0
      %s243 = sadd.s32 %s242, %s240
      %s244 = smul.addr %s243, 4
      %s245 = scalar_lea.vmem %s1, %s244
      %s246 = smul.u32 5, %s21
      %p247 = scmp.lt.s32.totalorder %s20, 0
      %s248 = scalar_select %p247, %s20, 0
      %s249 = scalar_lea.vmem %s2, %s248
      %s250 = smul.u32 32, %s19
      %p251 = scmp.lt.s32.totalorder %s250, 63
      %s252 = scalar_select %p251, %s250, 63
      %p253 = scmp.lt.s32.totalorder %s20, 0
      %s254 = scalar_select %p253, %s20, 0
      %s255 = sadd.s32 %s254, %s252
      %s256 = smul.addr %s255, 4
      %s257 = scalar_lea.vmem %s3, %s256
      %s258 = smul.u32 32, %s19
      %p260 = scmp.eq.s32.totalorder %s21, 0
      // Predicated region
      $region33: #{frequency_discriminator_forward.7} parent=31 // pred_check
        %p261 = pneg %p260
      $region34: #{frequency_discriminator_forward.7} parent=31 // pred_check_branch
        %263 = sbr.rel (%p261) target = $region36
      $region35: #{frequency_discriminator_forward.7} parent=31 // pred_region
        %v264 = vld [vmem:[%s249] sm:$0x1]
        %v266 = vperm.slane %v264, 0
        %268 = vst [vmem:[#allocation2] sm:$0xff] %v266
        %269 = vst [vmem:[#allocation2 + $0x8] sm:$0xff] %v266
        %270 = vst [vmem:[#allocation2 + $0x10] sm:$0xff] %v266
        %271 = vst [vmem:[#allocation2 + $0x18] sm:$0xff] %v266
        %272 = vst [vmem:[#allocation2 + $0x20] sm:$0xff] %v266
        %273 = vst [vmem:[#allocation2 + $0x28] sm:$0xff] %v266
        %274 = vst [vmem:[#allocation2 + $0x30] sm:$0xff] %v266
        %275 = vst [vmem:[#allocation2 + $0x38] sm:$0xff] %v266
        %276 = vst [vmem:[#allocation2 + $0x40] sm:$0xff] %v266
        %277 = vst [vmem:[#allocation2 + $0x48] sm:$0xff] %v266
        %278 = vst [vmem:[#allocation2 + $0x50] sm:$0xff] %v266
        %279 = vst [vmem:[#allocation2 + $0x58] sm:$0xff] %v266
        %280 = vst [vmem:[#allocation2 + $0x60] sm:$0xff] %v266
        %281 = vst [vmem:[#allocation2 + $0x68] sm:$0xff] %v266
        %282 = vst [vmem:[#allocation2 + $0x70] sm:$0xff] %v266
        %283 = vst [vmem:[#allocation2 + $0x78] sm:$0xff] %v266
        %284 = vst [vmem:[#allocation2 + $0x80] sm:$0xff] %v266
        %285 = vst [vmem:[#allocation2 + $0x88] sm:$0xff] %v266
        %286 = vst [vmem:[#allocation2 + $0x90] sm:$0xff] %v266
        %287 = vst [vmem:[#allocation2 + $0x98] sm:$0xff] %v266
        %288 = vst [vmem:[#allocation2 + $0xa0] sm:$0xff] %v266
        %289 = vst [vmem:[#allocation2 + $0xa8] sm:$0xff] %v266
        %290 = vst [vmem:[#allocation2 + $0xb0] sm:$0xff] %v266
        %291 = vst [vmem:[#allocation2 + $0xb8] sm:$0xff] %v266
        %292 = vst [vmem:[#allocation2 + $0xc0] sm:$0xff] %v266
        %293 = vst [vmem:[#allocation2 + $0xc8] sm:$0xff] %v266
        %294 = vst [vmem:[#allocation2 + $0xd0] sm:$0xff] %v266
        %295 = vst [vmem:[#allocation2 + $0xd8] sm:$0xff] %v266
        %296 = vst [vmem:[#allocation2 + $0xe0] sm:$0xff] %v266
        %297 = vst [vmem:[#allocation2 + $0xe8] sm:$0xff] %v266
        %298 = vst [vmem:[#allocation2 + $0xf0] sm:$0xff] %v266
        %299 = vst [vmem:[#allocation2 + $0xf8] sm:$0xff] %v266
      $region36: #{frequency_discriminator_forward.7} parent=31 // pred_fallthru
        _
      %v300 = vld [vmem:[#allocation2] sm:$0xff]
      %v301 = vld [vmem:[#allocation2 + $0x8] sm:$0xff]
      %v302 = vld [vmem:[#allocation2 + $0x10] sm:$0xff]
      %v303 = vld [vmem:[#allocation2 + $0x18] sm:$0xff]
      %v304 = vld [vmem:[#allocation2 + $0x20] sm:$0xff]
      %v305 = vld [vmem:[#allocation2 + $0x28] sm:$0xff]
      %v306 = vld [vmem:[#allocation2 + $0x30] sm:$0xff]
      %v307 = vld [vmem:[#allocation2 + $0x38] sm:$0xff]
      %v308 = vld [vmem:[#allocation2 + $0x40] sm:$0xff]
      %v309 = vld [vmem:[#allocation2 + $0x48] sm:$0xff]
      %v310 = vld [vmem:[#allocation2 + $0x50] sm:$0xff]
      %v311 = vld [vmem:[#allocation2 + $0x58] sm:$0xff]
      %v312 = vld [vmem:[#allocation2 + $0x60] sm:$0xff]
      %v313 = vld [vmem:[#allocation2 + $0x68] sm:$0xff]
      %v314 = vld [vmem:[#allocation2 + $0x70] sm:$0xff]
      %v315 = vld [vmem:[#allocation2 + $0x78] sm:$0xff]
      %v316 = vld [vmem:[#allocation2 + $0x80] sm:$0xff]
      %v317 = vld [vmem:[#allocation2 + $0x88] sm:$0xff]
      %v318 = vld [vmem:[#allocation2 + $0x90] sm:$0xff]
      %v319 = vld [vmem:[#allocation2 + $0x98] sm:$0xff]
      %v320 = vld [vmem:[#allocation2 + $0xa0] sm:$0xff]
      %v321 = vld [vmem:[#allocation2 + $0xa8] sm:$0xff]
      %v322 = vld [vmem:[#allocation2 + $0xb0] sm:$0xff]
      %v323 = vld [vmem:[#allocation2 + $0xb8] sm:$0xff]
      %v324 = vld [vmem:[#allocation2 + $0xc0] sm:$0xff]
      %v325 = vld [vmem:[#allocation2 + $0xc8] sm:$0xff]
      %v326 = vld [vmem:[#allocation2 + $0xd0] sm:$0xff]
      %v327 = vld [vmem:[#allocation2 + $0xd8] sm:$0xff]
      %v328 = vld [vmem:[#allocation2 + $0xe0] sm:$0xff]
      %v329 = vld [vmem:[#allocation2 + $0xe8] sm:$0xff]
      %v330 = vld [vmem:[#allocation2 + $0xf0] sm:$0xff]
      %v331 = vld [vmem:[#allocation2 + $0xf8] sm:$0xff]
      %v332 = vld [vmem:[%s236] sm:$0xf]
      %v333 = vld [vmem:[%s236 + $0x4] sm:$0xf]
      %v334 = vld [vmem:[%s236 + $0x8] sm:$0xf]
      %v335 = vld [vmem:[%s236 + $0xc] sm:$0xf]
      %v336 = vld [vmem:[%s236 + $0x10] sm:$0xf]
      %v337 = vld [vmem:[%s236 + $0x14] sm:$0xf]
      %v338 = vld [vmem:[%s236 + $0x18] sm:$0xf]
      %v339 = vld [vmem:[%s236 + $0x1c] sm:$0xf]
      %v340 = vld [vmem:[%s236 + $0x20] sm:$0xf]
      %v341 = vld [vmem:[%s236 + $0x24] sm:$0xf]
      %v342 = vld [vmem:[%s236 + $0x28] sm:$0xf]
      %v343 = vld [vmem:[%s236 + $0x2c] sm:$0xf]
      %v344 = vld [vmem:[%s236 + $0x30] sm:$0xf]
      %v345 = vld [vmem:[%s236 + $0x34] sm:$0xf]
      %v346 = vld [vmem:[%s236 + $0x38] sm:$0xf]
      %v347 = vld [vmem:[%s236 + $0x3c] sm:$0xf]
      %v348 = vld [vmem:[%s236 + $0x40] sm:$0xf]
      %v349 = vld [vmem:[%s236 + $0x44] sm:$0xf]
      %v350 = vld [vmem:[%s236 + $0x48] sm:$0xf]
      %v351 = vld [vmem:[%s236 + $0x4c] sm:$0xf]
      %v352 = vld [vmem:[%s236 + $0x50] sm:$0xf]
      %v353 = vld [vmem:[%s236 + $0x54] sm:$0xf]
      %v354 = vld [vmem:[%s236 + $0x58] sm:$0xf]
      %v355 = vld [vmem:[%s236 + $0x5c] sm:$0xf]
      %v356 = vld [vmem:[%s236 + $0x60] sm:$0xf]
      %v357 = vld [vmem:[%s236 + $0x64] sm:$0xf]
      %v358 = vld [vmem:[%s236 + $0x68] sm:$0xf]
      %v359 = vld [vmem:[%s236 + $0x6c] sm:$0xf]
      %v360 = vld [vmem:[%s236 + $0x70] sm:$0xf]
      %v361 = vld [vmem:[%s236 + $0x74] sm:$0xf]
      %v362 = vld [vmem:[%s236 + $0x78] sm:$0xf]
      %v363 = vld [vmem:[%s236 + $0x7c] sm:$0xf]
      %v364 = vld [vmem:[%s245] sm:$0xf]
      %v365 = vld [vmem:[%s245 + $0x4] sm:$0xf]
      %v366 = vld [vmem:[%s245 + $0x8] sm:$0xf]
      %v367 = vld [vmem:[%s245 + $0xc] sm:$0xf]
      %v368 = vld [vmem:[%s245 + $0x10] sm:$0x3]
      %v401 = vunpack.c.l.b16 %v332
      %v402 = vunpack.c.l.b16 %v333
      %v403 = vunpack.c.l.b16 %v334
      %v404 = vunpack.c.l.b16 %v335
      %v405 = vunpack.c.l.b16 %v336
      %v406 = vunpack.c.l.b16 %v337
      %v407 = vunpack.c.l.b16 %v338
      %v408 = vunpack.c.l.b16 %v339
      %v409 = vunpack.c.l.b16 %v340
      %v410 = vunpack.c.l.b16 %v341
      %v411 = vunpack.c.l.b16 %v342
      %v412 = vunpack.c.l.b16 %v343
      %v413 = vunpack.c.l.b16 %v344
      %v414 = vunpack.c.l.b16 %v345
      %v415 = vunpack.c.l.b16 %v346
      %v416 = vunpack.c.l.b16 %v347
      %v417 = vunpack.c.l.b16 %v348
      %v418 = vunpack.c.l.b16 %v349
      %v419 = vunpack.c.l.b16 %v350
      %v420 = vunpack.c.l.b16 %v351
      %v421 = vunpack.c.l.b16 %v352
      %v422 = vunpack.c.l.b16 %v353
      %v423 = vunpack.c.l.b16 %v354
      %v424 = vunpack.c.l.b16 %v355
      %v425 = vunpack.c.l.b16 %v356
      %v426 = vunpack.c.l.b16 %v357
      %v427 = vunpack.c.l.b16 %v358
      %v428 = vunpack.c.l.b16 %v359
      %v429 = vunpack.c.l.b16 %v360
      %v430 = vunpack.c.l.b16 %v361
      %v431 = vunpack.c.l.b16 %v362
      %v432 = vunpack.c.l.b16 %v363
      %v433 = vpack.c.b16 %v402, %v401
      %v434 = vpack.c.b16 %v404, %v403
      %v435 = vpack.c.b16 %v406, %v405
      %v436 = vpack.c.b16 %v408, %v407
      %v437 = vpack.c.b16 %v410, %v409
      %v438 = vpack.c.b16 %v412, %v411
      %v439 = vpack.c.b16 %v414, %v413
      %v440 = vpack.c.b16 %v416, %v415
      %v441 = vpack.c.b16 %v418, %v417
      %v442 = vpack.c.b16 %v420, %v419
      %v443 = vpack.c.b16 %v422, %v421
      %v444 = vpack.c.b16 %v424, %v423
      %v445 = vpack.c.b16 %v426, %v425
      %v446 = vpack.c.b16 %v428, %v427
      %v447 = vpack.c.b16 %v430, %v429
      %v448 = vpack.c.b16 %v432, %v431
      %v454 = vunpack.c.l.b16 %v364
      %v455 = vunpack.c.l.b16 %v365
      %v456 = vunpack.c.l.b16 %v366
      %v457 = vunpack.c.l.b16 %v367
      %v458 = vunpack.c.l.b16 %v368
      %v459 = vpack.c.b16 %v455, %v454
      %v460 = vpack.c.b16 %v457, %v456
      %v461 = vpack.c.b16 %v458, %v458
      %vm464 = vcmask 293888
      %v466 = vsel %vm464, %v433, 0
      %v469 = vsel %vm464, %v434, 0
      %v472 = vsel %vm464, %v435, 0
      %v475 = vsel %vm464, %v436, 0
      %v478 = vsel %vm464, %v437, 0
      %v481 = vsel %vm464, %v438, 0
      %v484 = vsel %vm464, %v439, 0
      %v487 = vsel %vm464, %v440, 0
      %v490 = vsel %vm464, %v441, 0
      %v493 = vsel %vm464, %v442, 0
      %v496 = vsel %vm464, %v443, 0
      %v499 = vsel %vm464, %v444, 0
      %v502 = vsel %vm464, %v445, 0
      %v505 = vsel %vm464, %v446, 0
      %v508 = vsel %vm464, %v447, 0
      %v511 = vsel %vm464, %v448, 0
      %vm513 = vcmask 1041408
      %v515 = vsel %vm513, %v461, 0
      %517 = vmatpush.bf16.msra.mxu0 0
      %518 = vmatpush.bf16.msra.mxu0 0
      %519 = vmatpush.bf16.msra.mxu0 0
      %520 = vmatpush.bf16.msra.mxu0 0
      %521 = vmatpush.bf16.msra.mxu0 0
      %522 = vmatpush.bf16.msra.mxu0 %v515
      %523 = vmatpush.bf16.msra.mxu0 %v460
      %524 = vmatpush.bf16.msra.mxu0 %v459
      %525 = vmatmul.bf16.gmra.mxu0 %v466
      %v526 = vpop.f32.mrf.mxu0
      %v527 = vadd.f32 0.0, %v526
      %v528 = vpop.f32.mrf.mxu0
      %v529 = vadd.f32 0.0, %v528
      %530 = vmatmul.bf16.gmra.mxu0 %v469
      %v531 = vpop.f32.mrf.mxu0
      %v532 = vadd.f32 0.0, %v531
      %v533 = vpop.f32.mrf.mxu0
      %v534 = vadd.f32 0.0, %v533
      %535 = vmatmul.bf16.gmra.mxu0 %v472
      %v536 = vpop.f32.mrf.mxu0
      %v537 = vadd.f32 0.0, %v536
      %v538 = vpop.f32.mrf.mxu0
      %v539 = vadd.f32 0.0, %v538
      %540 = vmatmul.bf16.gmra.mxu0 %v475
      %v541 = vpop.f32.mrf.mxu0
      %v542 = vadd.f32 0.0, %v541
      %v543 = vpop.f32.mrf.mxu0
      %v544 = vadd.f32 0.0, %v543
      %545 = vmatmul.bf16.gmra.mxu0 %v478
      %v546 = vpop.f32.mrf.mxu0
      %v547 = vadd.f32 0.0, %v546
      %v548 = vpop.f32.mrf.mxu0
      %v549 = vadd.f32 0.0, %v548
      %550 = vmatmul.bf16.gmra.mxu0 %v481
      %v551 = vpop.f32.mrf.mxu0
      %v552 = vadd.f32 0.0, %v551
      %v553 = vpop.f32.mrf.mxu0
      %v554 = vadd.f32 0.0, %v553
      %555 = vmatmul.bf16.gmra.mxu0 %v484
      %v556 = vpop.f32.mrf.mxu0
      %v557 = vadd.f32 0.0, %v556
      %v558 = vpop.f32.mrf.mxu0
      %v559 = vadd.f32 0.0, %v558
      %560 = vmatmul.bf16.gmra.mxu0 %v487
      %v561 = vpop.f32.mrf.mxu0
      %v562 = vadd.f32 0.0, %v561
      %v563 = vpop.f32.mrf.mxu0
      %v564 = vadd.f32 0.0, %v563
      %565 = vmatmul.bf16.gmra.mxu0 %v490
      %v566 = vpop.f32.mrf.mxu0
      %v567 = vadd.f32 0.0, %v566
      %v568 = vpop.f32.mrf.mxu0
      %v569 = vadd.f32 0.0, %v568
      %570 = vmatmul.bf16.gmra.mxu0 %v493
      %v571 = vpop.f32.mrf.mxu0
      %v572 = vadd.f32 0.0, %v571
      %v573 = vpop.f32.mrf.mxu0
      %v574 = vadd.f32 0.0, %v573
      %575 = vmatmul.bf16.gmra.mxu0 %v496
      %v576 = vpop.f32.mrf.mxu0
      %v577 = vadd.f32 0.0, %v576
      %v578 = vpop.f32.mrf.mxu0
      %v579 = vadd.f32 0.0, %v578
      %580 = vmatmul.bf16.gmra.mxu0 %v499
      %v581 = vpop.f32.mrf.mxu0
      %v582 = vadd.f32 0.0, %v581
      %v583 = vpop.f32.mrf.mxu0
      %v584 = vadd.f32 0.0, %v583
      %585 = vmatmul.bf16.gmra.mxu0 %v502
      %v586 = vpop.f32.mrf.mxu0
      %v587 = vadd.f32 0.0, %v586
      %v588 = vpop.f32.mrf.mxu0
      %v589 = vadd.f32 0.0, %v588
      %590 = vmatmul.bf16.gmra.mxu0 %v505
      %v591 = vpop.f32.mrf.mxu0
      %v592 = vadd.f32 0.0, %v591
      %v593 = vpop.f32.mrf.mxu0
      %v594 = vadd.f32 0.0, %v593
      %595 = vmatmul.bf16.gmra.mxu0 %v508
      %v596 = vpop.f32.mrf.mxu0
      %v597 = vadd.f32 0.0, %v596
      %v598 = vpop.f32.mrf.mxu0
      %v599 = vadd.f32 0.0, %v598
      %600 = vmatmul.bf16.gmra.mxu0 %v511
      %v601 = vpop.f32.mrf.mxu0
      %v602 = vadd.f32 0.0, %v601
      %v603 = vpop.f32.mrf.mxu0
      %v604 = vadd.f32 0.0, %v603
      %605 = vdwg.mxu0
      %v606 = vadd.f32 %v300, %v527
      %v607 = vadd.f32 %v301, %v529
      %v608 = vadd.f32 %v302, %v532
      %v609 = vadd.f32 %v303, %v534
      %v610 = vadd.f32 %v304, %v537
      %v611 = vadd.f32 %v305, %v539
      %v612 = vadd.f32 %v306, %v542
      %v613 = vadd.f32 %v307, %v544
      %v614 = vadd.f32 %v308, %v547
      %v615 = vadd.f32 %v309, %v549
      %v616 = vadd.f32 %v310, %v552
      %v617 = vadd.f32 %v311, %v554
      %v618 = vadd.f32 %v312, %v557
      %v619 = vadd.f32 %v313, %v559
      %v620 = vadd.f32 %v314, %v562
      %v621 = vadd.f32 %v315, %v564
      %v622 = vadd.f32 %v316, %v567
      %v623 = vadd.f32 %v317, %v569
      %v624 = vadd.f32 %v318, %v572
      %v625 = vadd.f32 %v319, %v574
      %v626 = vadd.f32 %v320, %v577
      %v627 = vadd.f32 %v321, %v579
      %v628 = vadd.f32 %v322, %v582
      %v629 = vadd.f32 %v323, %v584
      %v630 = vadd.f32 %v324, %v587
      %v631 = vadd.f32 %v325, %v589
      %v632 = vadd.f32 %v326, %v592
      %v633 = vadd.f32 %v327, %v594
      %v634 = vadd.f32 %v328, %v597
      %v635 = vadd.f32 %v329, %v599
      %v636 = vadd.f32 %v330, %v602
      %v637 = vadd.f32 %v331, %v604
      %638 = vst [vmem:[#allocation2] sm:$0xff] %v606
      %639 = vst [vmem:[#allocation2 + $0x8] sm:$0xff] %v607
      %640 = vst [vmem:[#allocation2 + $0x10] sm:$0xff] %v608
      %641 = vst [vmem:[#allocation2 + $0x18] sm:$0xff] %v609
      %642 = vst [vmem:[#allocation2 + $0x20] sm:$0xff] %v610
      %643 = vst [vmem:[#allocation2 + $0x28] sm:$0xff] %v611
      %644 = vst [vmem:[#allocation2 + $0x30] sm:$0xff] %v612
      %645 = vst [vmem:[#allocation2 + $0x38] sm:$0xff] %v613
      %646 = vst [vmem:[#allocation2 + $0x40] sm:$0xff] %v614
      %647 = vst [vmem:[#allocation2 + $0x48] sm:$0xff] %v615
      %648 = vst [vmem:[#allocation2 + $0x50] sm:$0xff] %v616
      %649 = vst [vmem:[#allocation2 + $0x58] sm:$0xff] %v617
      %650 = vst [vmem:[#allocation2 + $0x60] sm:$0xff] %v618
      %651 = vst [vmem:[#allocation2 + $0x68] sm:$0xff] %v619
      %652 = vst [vmem:[#allocation2 + $0x70] sm:$0xff] %v620
      %653 = vst [vmem:[#allocation2 + $0x78] sm:$0xff] %v621
      %654 = vst [vmem:[#allocation2 + $0x80] sm:$0xff] %v622
      %655 = vst [vmem:[#allocation2 + $0x88] sm:$0xff] %v623
      %656 = vst [vmem:[#allocation2 + $0x90] sm:$0xff] %v624
      %657 = vst [vmem:[#allocation2 + $0x98] sm:$0xff] %v625
      %658 = vst [vmem:[#allocation2 + $0xa0] sm:$0xff] %v626
      %659 = vst [vmem:[#allocation2 + $0xa8] sm:$0xff] %v627
      %660 = vst [vmem:[#allocation2 + $0xb0] sm:$0xff] %v628
      %661 = vst [vmem:[#allocation2 + $0xb8] sm:$0xff] %v629
      %662 = vst [vmem:[#allocation2 + $0xc0] sm:$0xff] %v630
      %663 = vst [vmem:[#allocation2 + $0xc8] sm:$0xff] %v631
      %664 = vst [vmem:[#allocation2 + $0xd0] sm:$0xff] %v632
      %665 = vst [vmem:[#allocation2 + $0xd8] sm:$0xff] %v633
      %666 = vst [vmem:[#allocation2 + $0xe0] sm:$0xff] %v634
      %667 = vst [vmem:[#allocation2 + $0xe8] sm:$0xff] %v635
      %668 = vst [vmem:[#allocation2 + $0xf0] sm:$0xff] %v636
      %669 = vst [vmem:[#allocation2 + $0xf8] sm:$0xff] %v637
      // Predicated region
      $region37: #{frequency_discriminator_forward.7} parent=31 // pred_check
        %p670 = pneg %p260
      $region38: #{frequency_discriminator_forward.7} parent=31 // pred_check_branch
        %672 = sbr.rel (%p670) target = $region40
      $region39: #{frequency_discriminator_forward.7} parent=31 // pred_region
        %v673 = vld [vmem:[#allocation2] sm:$0xff]
        %v674 = vld [vmem:[#allocation2 + $0x8] sm:$0xff]
        %v675 = vld [vmem:[#allocation2 + $0x10] sm:$0xff]
        %v676 = vld [vmem:[#allocation2 + $0x18] sm:$0xff]
        %v677 = vld [vmem:[#allocation2 + $0x20] sm:$0xff]
        %v678 = vld [vmem:[#allocation2 + $0x28] sm:$0xff]
        %v679 = vld [vmem:[#allocation2 + $0x30] sm:$0xff]
        %v680 = vld [vmem:[#allocation2 + $0x38] sm:$0xff]
        %v681 = vld [vmem:[#allocation2 + $0x40] sm:$0xff]
        %v682 = vld [vmem:[#allocation2 + $0x48] sm:$0xff]
        %v683 = vld [vmem:[#allocation2 + $0x50] sm:$0xff]
        %v684 = vld [vmem:[#allocation2 + $0x58] sm:$0xff]
        %v685 = vld [vmem:[#allocation2 + $0x60] sm:$0xff]
        %v686 = vld [vmem:[#allocation2 + $0x68] sm:$0xff]
        %v687 = vld [vmem:[#allocation2 + $0x70] sm:$0xff]
        %v688 = vld [vmem:[#allocation2 + $0x78] sm:$0xff]
        %v689 = vld [vmem:[#allocation2 + $0x80] sm:$0xff]
        %v690 = vld [vmem:[#allocation2 + $0x88] sm:$0xff]
        %v691 = vld [vmem:[#allocation2 + $0x90] sm:$0xff]
        %v692 = vld [vmem:[#allocation2 + $0x98] sm:$0xff]
        %v693 = vld [vmem:[#allocation2 + $0xa0] sm:$0xff]
        %v694 = vld [vmem:[#allocation2 + $0xa8] sm:$0xff]
        %v695 = vld [vmem:[#allocation2 + $0xb0] sm:$0xff]
        %v696 = vld [vmem:[#allocation2 + $0xb8] sm:$0xff]
        %v697 = vld [vmem:[#allocation2 + $0xc0] sm:$0xff]
        %v698 = vld [vmem:[#allocation2 + $0xc8] sm:$0xff]
        %v699 = vld [vmem:[#allocation2 + $0xd0] sm:$0xff]
        %v700 = vld [vmem:[#allocation2 + $0xd8] sm:$0xff]
        %v701 = vld [vmem:[#allocation2 + $0xe0] sm:$0xff]
        %v702 = vld [vmem:[#allocation2 + $0xe8] sm:$0xff]
        %v703 = vld [vmem:[#allocation2 + $0xf0] sm:$0xff]
        %v704 = vld [vmem:[#allocation2 + $0xf8] sm:$0xff]
        %vm705 = vcmp.ge.f32.partialorder %v673, 0.0
        %vm706 = vcmp.ge.f32.partialorder %v674, 0.0
        %vm707 = vcmp.ge.f32.partialorder %v675, 0.0
        %vm708 = vcmp.ge.f32.partialorder %v676, 0.0
        %vm709 = vcmp.ge.f32.partialorder %v677, 0.0
        %vm710 = vcmp.ge.f32.partialorder %v678, 0.0
        %vm711 = vcmp.ge.f32.partialorder %v679, 0.0
        %vm712 = vcmp.ge.f32.partialorder %v680, 0.0
        %vm713 = vcmp.ge.f32.partialorder %v681, 0.0
        %vm714 = vcmp.ge.f32.partialorder %v682, 0.0
        %vm715 = vcmp.ge.f32.partialorder %v683, 0.0
        %vm716 = vcmp.ge.f32.partialorder %v684, 0.0
        %vm717 = vcmp.ge.f32.partialorder %v685, 0.0
        %vm718 = vcmp.ge.f32.partialorder %v686, 0.0
        %vm719 = vcmp.ge.f32.partialorder %v687, 0.0
        %vm720 = vcmp.ge.f32.partialorder %v688, 0.0
        %vm721 = vcmp.ge.f32.partialorder %v689, 0.0
        %vm722 = vcmp.ge.f32.partialorder %v690, 0.0
        %vm723 = vcmp.ge.f32.partialorder %v691, 0.0
        %vm724 = vcmp.ge.f32.partialorder %v692, 0.0
        %vm725 = vcmp.ge.f32.partialorder %v693, 0.0
        %vm726 = vcmp.ge.f32.partialorder %v694, 0.0
        %vm727 = vcmp.ge.f32.partialorder %v695, 0.0
        %vm728 = vcmp.ge.f32.partialorder %v696, 0.0
        %vm729 = vcmp.ge.f32.partialorder %v697, 0.0
        %vm730 = vcmp.ge.f32.partialorder %v698, 0.0
        %vm731 = vcmp.ge.f32.partialorder %v699, 0.0
        %vm732 = vcmp.ge.f32.partialorder %v700, 0.0
        %vm733 = vcmp.ge.f32.partialorder %v701, 0.0
        %vm734 = vcmp.ge.f32.partialorder %v702, 0.0
        %vm735 = vcmp.ge.f32.partialorder %v703, 0.0
        %vm736 = vcmp.ge.f32.partialorder %v704, 0.0
        %v737 = vmul.f32 %v673, 0.2
        %v738 = vmul.f32 %v674, 0.2
        %v739 = vmul.f32 %v675, 0.2
        %v740 = vmul.f32 %v676, 0.2
        %v741 = vmul.f32 %v677, 0.2
        %v742 = vmul.f32 %v678, 0.2
        %v743 = vmul.f32 %v679, 0.2
        %v744 = vmul.f32 %v680, 0.2
        %v745 = vmul.f32 %v681, 0.2
        %v746 = vmul.f32 %v682, 0.2
        %v747 = vmul.f32 %v683, 0.2
        %v748 = vmul.f32 %v684, 0.2
        %v749 = vmul.f32 %v685, 0.2
        %v750 = vmul.f32 %v686, 0.2
        %v751 = vmul.f32 %v687, 0.2
        %v752 = vmul.f32 %v688, 0.2
        %v753 = vmul.f32 %v689, 0.2
        %v754 = vmul.f32 %v690, 0.2
        %v755 = vmul.f32 %v691, 0.2
        %v756 = vmul.f32 %v692, 0.2
        %v757 = vmul.f32 %v693, 0.2
        %v758 = vmul.f32 %v694, 0.2
        %v759 = vmul.f32 %v695, 0.2
        %v760 = vmul.f32 %v696, 0.2
        %v761 = vmul.f32 %v697, 0.2
        %v762 = vmul.f32 %v698, 0.2
        %v763 = vmul.f32 %v699, 0.2
        %v764 = vmul.f32 %v700, 0.2
        %v765 = vmul.f32 %v701, 0.2
        %v766 = vmul.f32 %v702, 0.2
        %v767 = vmul.f32 %v703, 0.2
        %v768 = vmul.f32 %v704, 0.2
        %v769 = vsel %vm705, %v673, %v737
        %v770 = vsel %vm706, %v674, %v738
        %v771 = vsel %vm707, %v675, %v739
        %v772 = vsel %vm708, %v676, %v740
        %v773 = vsel %vm709, %v677, %v741
        %v774 = vsel %vm710, %v678, %v742
        %v775 = vsel %vm711, %v679, %v743
        %v776 = vsel %vm712, %v680, %v744
        %v777 = vsel %vm713, %v681, %v745
        %v778 = vsel %vm714, %v682, %v746
        %v779 = vsel %vm715, %v683, %v747
        %v780 = vsel %vm716, %v684, %v748
        %v781 = vsel %vm717, %v685, %v749
        %v782 = vsel %vm718, %v686, %v750
        %v783 = vsel %vm719, %v687, %v751
        %v784 = vsel %vm720, %v688, %v752
        %v785 = vsel %vm721, %v689, %v753
        %v786 = vsel %vm722, %v690, %v754
        %v787 = vsel %vm723, %v691, %v755
        %v788 = vsel %vm724, %v692, %v756
        %v789 = vsel %vm725, %v693, %v757
        %v790 = vsel %vm726, %v694, %v758
        %v791 = vsel %vm727, %v695, %v759
        %v792 = vsel %vm728, %v696, %v760
        %v793 = vsel %vm729, %v697, %v761
        %v794 = vsel %vm730, %v698, %v762
        %v795 = vsel %vm731, %v699, %v763
        %v796 = vsel %vm732, %v700, %v764
        %v797 = vsel %vm733, %v701, %v765
        %v798 = vsel %vm734, %v702, %v766
        %v799 = vsel %vm735, %v703, %v767
        %v800 = vsel %vm736, %v704, %v768
        %v801 = vpack.c.bf16 %v769, %v769
        %v802 = vpack.c.bf16 %v770, %v770
        %v803 = vpack.c.bf16 %v771, %v771
        %v804 = vpack.c.bf16 %v772, %v772
        %v805 = vpack.c.bf16 %v773, %v773
        %v806 = vpack.c.bf16 %v774, %v774
        %v807 = vpack.c.bf16 %v775, %v775
        %v808 = vpack.c.bf16 %v776, %v776
        %v809 = vpack.c.bf16 %v777, %v777
        %v810 = vpack.c.bf16 %v778, %v778
        %v811 = vpack.c.bf16 %v779, %v779
        %v812 = vpack.c.bf16 %v780, %v780
        %v813 = vpack.c.bf16 %v781, %v781
        %v814 = vpack.c.bf16 %v782, %v782
        %v815 = vpack.c.bf16 %v783, %v783
        %v816 = vpack.c.bf16 %v784, %v784
        %v817 = vpack.c.bf16 %v785, %v785
        %v818 = vpack.c.bf16 %v786, %v786
        %v819 = vpack.c.bf16 %v787, %v787
        %v820 = vpack.c.bf16 %v788, %v788
        %v821 = vpack.c.bf16 %v789, %v789
        %v822 = vpack.c.bf16 %v790, %v790
        %v823 = vpack.c.bf16 %v791, %v791
        %v824 = vpack.c.bf16 %v792, %v792
        %v825 = vpack.c.bf16 %v793, %v793
        %v826 = vpack.c.bf16 %v794, %v794
        %v827 = vpack.c.bf16 %v795, %v795
        %v828 = vpack.c.bf16 %v796, %v796
        %v829 = vpack.c.bf16 %v797, %v797
        %v830 = vpack.c.bf16 %v798, %v798
        %v831 = vpack.c.bf16 %v799, %v799
        %v832 = vpack.c.bf16 %v800, %v800
        %833 = vst [vmem:[%s257] sm:$0xf] %v801
        %834 = vst [vmem:[%s257 + $0x4] sm:$0xf] %v802
        %835 = vst [vmem:[%s257 + $0x8] sm:$0xf] %v803
        %836 = vst [vmem:[%s257 + $0xc] sm:$0xf] %v804
        %837 = vst [vmem:[%s257 + $0x10] sm:$0xf] %v805
        %838 = vst [vmem:[%s257 + $0x14] sm:$0xf] %v806
        %839 = vst [vmem:[%s257 + $0x18] sm:$0xf] %v807
        %840 = vst [vmem:[%s257 + $0x1c] sm:$0xf] %v808
        %841 = vst [vmem:[%s257 + $0x20] sm:$0xf] %v809
        %842 = vst [vmem:[%s257 + $0x24] sm:$0xf] %v810
        %843 = vst [vmem:[%s257 + $0x28] sm:$0xf] %v811
        %844 = vst [vmem:[%s257 + $0x2c] sm:$0xf] %v812
        %845 = vst [vmem:[%s257 + $0x30] sm:$0xf] %v813
        %846 = vst [vmem:[%s257 + $0x34] sm:$0xf] %v814
        %847 = vst [vmem:[%s257 + $0x38] sm:$0xf] %v815
        %848 = vst [vmem:[%s257 + $0x3c] sm:$0xf] %v816
        %849 = vst [vmem:[%s257 + $0x40] sm:$0xf] %v817
        %850 = vst [vmem:[%s257 + $0x44] sm:$0xf] %v818
        %851 = vst [vmem:[%s257 + $0x48] sm:$0xf] %v819
        %852 = vst [vmem:[%s257 + $0x4c] sm:$0xf] %v820
        %853 = vst [vmem:[%s257 + $0x50] sm:$0xf] %v821
        %854 = vst [vmem:[%s257 + $0x54] sm:$0xf] %v822
        %855 = vst [vmem:[%s257 + $0x58] sm:$0xf] %v823
        %856 = vst [vmem:[%s257 + $0x5c] sm:$0xf] %v824
        %857 = vst [vmem:[%s257 + $0x60] sm:$0xf] %v825
        %858 = vst [vmem:[%s257 + $0x64] sm:$0xf] %v826
        %859 = vst [vmem:[%s257 + $0x68] sm:$0xf] %v827
        %860 = vst [vmem:[%s257 + $0x6c] sm:$0xf] %v828
        %861 = vst [vmem:[%s257 + $0x70] sm:$0xf] %v829
        %862 = vst [vmem:[%s257 + $0x74] sm:$0xf] %v830
        %863 = vst [vmem:[%s257 + $0x78] sm:$0xf] %v831
        %864 = vst [vmem:[%s257 + $0x7c] sm:$0xf] %v832
      $region40: #{frequency_discriminator_forward.7} parent=31 // pred_fallthru
        _
      %s865 = smul.u32 32, %s19
      %p866 = scmp.lt.s32.totalorder %s865, 63
      %s867 = scalar_select %p866, %s865, 63
      %p868 = scmp.lt.s32.totalorder %s20, 0
      %s869 = scalar_select %p868, %s20, 0
      %s870 = sadd.s32 %s869, %s867
      %s871 = smul.addr %s870, 4
      %s872 = scalar_lea.vmem %s3, %s871
      // Predicated region
      $region41: #{frequency_discriminator_forward.7} parent=31 // pred_check
        %p873 = pneg %p135
      $region42: #{frequency_discriminator_forward.7} parent=31 // pred_check_branch
        %875 = sbr.rel (%p873) target = $region44
      $region43: #{frequency_discriminator_forward.7} parent=31 // pred_region
        %s876 = smul.u32 32, %s19
      $region44: #{frequency_discriminator_forward.7} parent=31 // pred_fallthru
        _
    $region32: #{frequency_discriminator_forward.7} parent=5 // pred_fallthru
      _
    %p877 = scmp.le.s32.totalorder 2, %s9
    // Predicated region
    $region45: #{frequency_discriminator_forward.7} parent=5 // pred_check
      %p878 = pneg %p877
    $region46: #{frequency_discriminator_forward.7} parent=5 // pred_check_branch
      %880 = sbr.rel (%p878) target = $region48
    $region47: #{frequency_discriminator_forward.7} parent=5 // pred_region
      %s881 = ssub.s32 %s9, 2
      // Predicated region
      $region49: #{frequency_discriminator_forward.7} parent=47 // pred_check
        %p882 = pneg %p141
      $region50: #{frequency_discriminator_forward.7} parent=47 // pred_check_branch
        %884 = sbr.rel (%p882) target = $region52
      $region51: #{frequency_discriminator_forward.7} parent=47 // pred_region
        %s885 = smul.u32 32, %s22
        %p886 = scmp.lt.s32.totalorder %s885, 63
        %s887 = scalar_select %p886, %s885, 63
        %p888 = scmp.lt.s32.totalorder %s23, 0
        %s889 = scalar_select %p888, %s23, 0
        %s890 = sadd.s32 %s889, %s887
        %s891 = smul.addr %s890, 4
        %s892 = scalar_lea.vmem %s3, %s891
      $region52: #{frequency_discriminator_forward.7} parent=47 // pred_fallthru
        _
    $region48: #{frequency_discriminator_forward.7} parent=5 // pred_fallthru
      _
  $region6: #{frequency_discriminator_forward.7} parent=0 // loop_footer
    %s13 = sadd.s32 1, %s9
  $region7: #{frequency_discriminator_forward.7} parent=0 // loop_footer_branch
    %8 = sbr.rel target = $region3
  $region8: #{frequency_discriminator_forward.7} parent=0 // loop_exit
    _

// kernel: frequency_discriminator_forward.9
$region0: #{frequency_discriminator_forward.9}
  #allocation0 [shape = 'u32[]', space=smem, size = 0x4, offset = 0x4, fixed_abs, tag = 'smem constant byte address 0x4 - core index']
  #allocation1 [shape = 'u32[72,128]{1,0:T(1,128)}', space=vmem, size = 0x9000, scoped, tag = 'internal scratch']
  #allocation2 [shape = 'f32[64,128]{1,0:T(8,128)}', space=vmem, size = 0x8000, scoped, tag = 'scratch operand']
  %s0 = inlined_call_operand.vmem [shape: bf16[128,144], index: 0, kind: input, shape index: {}]
  %s1 = inlined_call_operand.vmem [shape: bf16[144,128], index: 1, kind: input, shape index: {}]
  %s2 = inlined_call_operand.vmem [shape: f32[1,128], index: 2, kind: input, shape index: {}]
  %s3 = inlined_call_operand.vmem [shape: bf16[128,128], index: 3, kind: output, shape index: {}]
  %s4 = sld [smem:[#allocation0]]
  $region53: #{frequency_discriminator_forward.9} parent=0
    _
  %s6 = ssub.s32 1, %s4
  %s7 = scalar_select 0, %s6, %s4
  loop: start=0, step=1, limit=4
  $region2: #{frequency_discriminator_forward.9} parent=0 // loop_pre_header
    _
  $region3: #{frequency_discriminator_forward.9} parent=0 // loop_header
    %s9 = sphi 0, %s13
    %p10 = scmp.ge.s32.totalorder %s9, 4
    %s16 = sphi 0, %s35
    %s17 = sphi 0, %s31
    %s18 = sphi 0, %s27
    %s19 = sphi 0, %s16
    %s20 = sphi 0, %s17
    %s21 = sphi 0, %s18
    %s22 = sphi 0, %s19
    %s23 = sphi 0, %s20
    %s24 = sphi 0, %s21
    %s40 = sphi 0, %s42
    %s43 = sphi 0, %s40
    %s44 = sphi 0, %s43
    %s60 = sphi 0, %s44
    %s68 = sphi 0, %s70
    %s71 = sphi 0, %s68
    %s72 = sphi 0, %s71
    %s88 = sphi 0, %s72
    %s94 = sphi 0, %s96
    %s97 = sphi 0, %s94
    %s98 = sphi 0, %s97
    %s114 = sphi 0, %s98
    %s122 = sphi 0, %s124
    %s125 = sphi 0, %s122
    %s126 = sphi 0, %s125
    %s142 = sphi 0, %s126
  $region4: #{frequency_discriminator_forward.9} parent=0 // loop_header_branch
    %12 = sbr.rel (%p10) target = $region8
  $region5: #{frequency_discriminator_forward.9} parent=0 // loop_body
    %s14 = ssub.s32 %s9, 1
    %s15 = ssub.s32 %s9, 2
    %s25 = sadd.s32 1, %s18
    %p26 = scmp.ge.s32.totalorder %s25, 1
    %s27 = scalar_select %p26, 0, %s25
    %s28 = sadd.s32 1, %s17
    %s29 = scalar_select %p26, %s28, %s17
    %p30 = scmp.ge.s32.totalorder %s29, 1
    %s31 = scalar_select %p30, 0, %s29
    %s32 = sadd.s32 1, %s16
    %s33 = scalar_select %p30, %s32, %s16
    %p34 = scmp.ge.s32.totalorder %s33, 2
    %s35 = scalar_select %p34, 0, %s33
    %s36 = ssub.s32 %s16, %s35
    %s37 = ssub.s32 %s18, %s27
    %s38 = sor.u32 %s36, %s37
    %p39 = scmp.eq.s32.totalorder %s38, 0
    %s41 = sadd.s32 %s40, 1
    %s42 = scalar_select %p39, %s40, %s41
    %p45 = pneg %p39
    %p46 = scmp.eq.s32.totalorder %s9, 1
    %p47 = por %p45, %p46
    %p48 = scmp.ne.s32.totalorder %s40, %s43
    %p49 = scmp.eq.s32.totalorder %s9, 0
    %p50 = por %p48, %p49
    %p51 = scmp.ne.s32.totalorder %s40, %s43
    %p52 = scmp.eq.s32.totalorder %s14, 1
    %p53 = por %p51, %p52
    %p54 = scmp.ne.s32.totalorder %s43, %s44
    %p55 = scmp.eq.s32.totalorder %s14, 0
    %p56 = por %p54, %p55
    %p57 = scmp.ne.s32.totalorder %s43, %s44
    %p58 = scmp.eq.s32.totalorder %s15, 1
    %p59 = por %p57, %p58
    %p61 = scmp.ne.s32.totalorder %s44, %s60
    %p62 = scmp.eq.s32.totalorder %s15, 0
    %p63 = por %p61, %p62
    %s64 = ssub.s32 %s18, %s27
    %s65 = ssub.s32 %s17, %s31
    %s66 = sor.u32 %s64, %s65
    %p67 = scmp.eq.s32.totalorder %s66, 0
    %s69 = sadd.s32 %s68, 1
    %s70 = scalar_select %p67, %s68, %s69
    %p73 = pneg %p67
    %p74 = scmp.eq.s32.totalorder %s9, 1
    %p75 = por %p73, %p74
    %p76 = scmp.ne.s32.totalorder %s68, %s71
    %p77 = scmp.eq.s32.totalorder %s9, 0
    %p78 = por %p76, %p77
    %p79 = scmp.ne.s32.totalorder %s68, %s71
    %p80 = scmp.eq.s32.totalorder %s14, 1
    %p81 = por %p79, %p80
    %p82 = scmp.ne.s32.totalorder %s71, %s72
    %p83 = scmp.eq.s32.totalorder %s14, 0
    %p84 = por %p82, %p83
    %p85 = scmp.ne.s32.totalorder %s71, %s72
    %p86 = scmp.eq.s32.totalorder %s15, 1
    %p87 = por %p85, %p86
    %p89 = scmp.ne.s32.totalorder %s72, %s88
    %p90 = scmp.eq.s32.totalorder %s15, 0
    %p91 = por %p89, %p90
    %s92 = ssub.s32 %s17, %s31
    %p93 = scmp.eq.s32.totalorder %s92, 0
    %s95 = sadd.s32 %s94, 1
    %s96 = scalar_select %p93, %s94, %s95
    %p99 = pneg %p93
    %p100 = scmp.eq.s32.totalorder %s9, 1
    %p101 = por %p99, %p100
    %p102 = scmp.ne.s32.totalorder %s94, %s97
    %p103 = scmp.eq.s32.totalorder %s9, 0
    %p104 = por %p102, %p103
    %p105 = scmp.ne.s32.totalorder %s94, %s97
    %p106 = scmp.eq.s32.totalorder %s14, 1
    %p107 = por %p105, %p106
    %p108 = scmp.ne.s32.totalorder %s97, %s98
    %p109 = scmp.eq.s32.totalorder %s14, 0
    %p110 = por %p108, %p109
    %p111 = scmp.ne.s32.totalorder %s97, %s98
    %p112 = scmp.eq.s32.totalorder %s15, 1
    %p113 = por %p111, %p112
    %p115 = scmp.ne.s32.totalorder %s98, %s114
    %p116 = scmp.eq.s32.totalorder %s15, 0
    %p117 = por %p115, %p116
    %s118 = ssub.s32 %s16, %s35
    %s119 = ssub.s32 %s17, %s31
    %s120 = sor.u32 %s118, %s119
    %p121 = scmp.eq.s32.totalorder %s120, 0
    %s123 = sadd.s32 %s122, 1
    %s124 = scalar_select %p121, %s122, %s123
    %p127 = pneg %p121
    %p128 = scmp.eq.s32.totalorder %s9, 1
    %p129 = por %p127, %p128
    %p130 = scmp.ne.s32.totalorder %s122, %s125
    %p131 = scmp.eq.s32.totalorder %s9, 0
    %p132 = por %p130, %p131
    %p133 = scmp.ne.s32.totalorder %s122, %s125
    %p134 = scmp.eq.s32.totalorder %s14, 1
    %p135 = por %p133, %p134
    %p136 = scmp.ne.s32.totalorder %s125, %s126
    %p137 = scmp.eq.s32.totalorder %s14, 0
    %p138 = por %p136, %p137
    %p139 = scmp.ne.s32.totalorder %s125, %s126
    %p140 = scmp.eq.s32.totalorder %s15, 1
    %p141 = por %p139, %p140
    %p143 = scmp.ne.s32.totalorder %s126, %s142
    %p144 = scmp.eq.s32.totalorder %s15, 0
    %p145 = por %p143, %p144
    %p146 = scmp.le.s32.totalorder 1, %s9
    %p147 = scmp.lt.s32.totalorder %s9, 3
    %p148 = pnand %p146, %p147
    %p149 = pneg %p148
    // Predicated region
    $region9: #{frequency_discriminator_forward.9} parent=5 // pred_check
      _
    $region10: #{frequency_discriminator_forward.9} parent=5 // pred_check_branch
      %151 = sbr.rel (%p148) target = $region12
    $region11: #{frequency_discriminator_forward.9} parent=5 // pred_region
      %s152 = ssub.s32 %s9, 1
      // Predicated region
      $region13: #{frequency_discriminator_forward.9} parent=11 // pred_check
        %p153 = pneg %p84
      $region14: #{frequency_discriminator_forward.9} parent=11 // pred_check_branch
        %155 = sbr.rel (%p153) target = $region16
      $region15: #{frequency_discriminator_forward.9} parent=11 // pred_region
        %s156 = smul.u32 18, %s21
        %p157 = scmp.lt.s32.totalorder %s156, 17
        %s158 = scalar_select %p157, %s156, 17
        %p159 = scmp.lt.s32.totalorder %s20, 0
        %s160 = scalar_select %p159, %s20, 0
        %s161 = sadd.s32 %s160, %s158
        %s162 = smul.addr %s161, 4
        %s163 = scalar_lea.vmem %s1, %s162
        %s164 = smul.u32 18, %s21
      $region16: #{frequency_discriminator_forward.9} parent=11 // pred_fallthru
        _
      // Predicated region
      $region17: #{frequency_discriminator_forward.9} parent=11 // pred_check
        %p165 = pneg %p110
      $region18: #{frequency_discriminator_forward.9} parent=11 // pred_check_branch
        %167 = sbr.rel (%p165) target = $region20
      $region19: #{frequency_discriminator_forward.9} parent=11 // pred_region
        %p168 = scmp.lt.s32.totalorder %s20, 0
        %s169 = scalar_select %p168, %s20, 0
        %s170 = scalar_lea.vmem %s2, %s169
      $region20: #{frequency_discriminator_forward.9} parent=11 // pred_fallthru
        _
    $region12: #{frequency_discriminator_forward.9} parent=5 // pred_fallthru
      _
    %p171 = scmp.lt.s32.totalorder %s9, 2
    // Predicated region
    $region21: #{frequency_discriminator_forward.9} parent=5 // pred_check
      %p172 = pneg %p171
    $region22: #{frequency_discriminator_forward.9} parent=5 // pred_check_branch
      %174 = sbr.rel (%p172) target = $region24
    $region23: #{frequency_discriminator_forward.9} parent=5 // pred_region
      // Predicated region
      $region25: #{frequency_discriminator_forward.9} parent=23 // pred_check
        %p175 = pneg %p50
      $region26: #{frequency_discriminator_forward.9} parent=23 // pred_check_branch
        %177 = sbr.rel (%p175) target = $region28
      $region27: #{frequency_discriminator_forward.9} parent=23 // pred_region
        %s178 = smul.u32 8, %s16
        %s179 = smul.u32 2, %s18
        %p180 = scmp.lt.s32.totalorder %s178, 15
        %s181 = scalar_select %p180, %s178, 15
        %p182 = scmp.lt.s32.totalorder %s179, 1
        %s183 = scalar_select %p182, %s179, 1
        %s184 = smul.addr %s181, 2
        %s185 = sadd.s32 %s183, %s184
        %s186 = smul.addr %s185, 4
        %s187 = scalar_lea.vmem %s0, %s186
        %s188 = smul.u32 8, %s16
        %s189 = smul.u32 2, %s18
      $region28: #{frequency_discriminator_forward.9} parent=23 // pred_fallthru
        _
    $region24: #{frequency_discriminator_forward.9} parent=5 // pred_fallthru
      _
    %p190 = scmp.le.s32.totalorder 1, %s9
    %p191 = scmp.lt.s32.totalorder %s9, 3
    %p192 = pnand %p190, %p191
    %p193 = pneg %p192
    // Predicated region
    $region29: #{frequency_discriminator_forward.9} parent=5 // pred_check
      _
    $region30: #{frequency_discriminator_forward.9} parent=5 // pred_check_branch
      %195 = sbr.rel (%p192) target = $region32
    $region31: #{frequency_discriminator_forward.9} parent=5 // pred_region
      %s196 = ssub.s32 %s9, 1
      %s197 = smul.u32 8, %s19
      %s198 = smul.u32 2, %s21
      %p199 = scmp.lt.s32.totalorder %s197, 15
      %s200 = scalar_select %p199, %s197, 15
      %p201 = scmp.lt.s32.totalorder %s198, 1
      %s202 = scalar_select %p201, %s198, 1
      %s203 = smul.addr %s200, 2
      %s204 = sadd.s32 %s202, %s203
      %s205 = smul.addr %s204, 4
      %s206 = scalar_lea.vmem %s0, %s205
      %p207 = pneg %p56
      %p208 = pneg %p53
      %s209 = smul.u32 18, %s21
      %p210 = scmp.lt.s32.totalorder %s209, 17
      %s211 = scalar_select %p210, %s209, 17
      %p212 = scmp.lt.s32.totalorder %s20, 0
      %s213 = scalar_select %p212, %s20, 0
      %s214 = sadd.s32 %s213, %s211
      %s215 = smul.addr %s214, 4
      %s216 = scalar_lea.vmem %s1, %s215
      %p217 = pneg %p84
      %p218 = pneg %p81
      %p219 = scmp.lt.s32.totalorder %s20, 0
      %s220 = scalar_select %p219, %s20, 0
      %s221 = scalar_lea.vmem %s2, %s220
      %p222 = pneg %p110
      %p223 = pneg %p107
      %p224 = pneg %p138
      %p225 = pneg %p135
      %s226 = smul.u32 8, %s19
      %p227 = scmp.lt.s32.totalorder %s226, 15
      %s228 = scalar_select %p227, %s226, 15
      %p229 = scmp.lt.s32.totalorder %s20, 0
      %s230 = scalar_select %p229, %s20, 0
      %s231 = sadd.s32 %s230, %s228
      %s232 = smul.addr %s231, 4
      %s233 = scalar_lea.vmem %s3, %s232
      %s234 = smul.u32 8, %s19
      %s235 = smul.u32 2, %s21
      %p236 = scmp.lt.s32.totalorder %s234, 15
      %s237 = scalar_select %p236, %s234, 15
      %p238 = scmp.lt.s32.totalorder %s235, 1
      %s239 = scalar_select %p238, %s235, 1
      %s240 = smul.addr %s237, 2
      %s241 = sadd.s32 %s239, %s240
      %s242 = smul.addr %s241, 4
      %s243 = scalar_lea.vmem %s0, %s242
      %s244 = smul.u32 8, %s19
      %s245 = smul.u32 2, %s21
      %s246 = smul.u32 18, %s21
      %p247 = scmp.lt.s32.totalorder %s246, 17
      %s248 = scalar_select %p247, %s246, 17
      %p249 = scmp.lt.s32.totalorder %s20, 0
      %s250 = scalar_select %p249, %s20, 0
      %s251 = sadd.s32 %s250, %s248
      %s252 = smul.addr %s251, 4
      %s253 = scalar_lea.vmem %s1, %s252
      %s254 = smul.u32 18, %s21
      %p255 = scmp.lt.s32.totalorder %s20, 0
      %s256 = scalar_select %p255, %s20, 0
      %s257 = scalar_lea.vmem %s2, %s256
      %s258 = smul.u32 8, %s19
      %p259 = scmp.lt.s32.totalorder %s258, 15
      %s260 = scalar_select %p259, %s258, 15
      %p261 = scmp.lt.s32.totalorder %s20, 0
      %s262 = scalar_select %p261, %s20, 0
      %s263 = sadd.s32 %s262, %s260
      %s264 = smul.addr %s263, 4
      %s265 = scalar_lea.vmem %s3, %s264
      %s266 = smul.u32 8, %s19
      %p268 = scmp.eq.s32.totalorder %s21, 0
      // Predicated region
      $region33: #{frequency_discriminator_forward.9} parent=31 // pred_check
        %p269 = pneg %p268
      $region34: #{frequency_discriminator_forward.9} parent=31 // pred_check_branch
        %271 = sbr.rel (%p269) target = $region36
      $region35: #{frequency_discriminator_forward.9} parent=31 // pred_region
        %v272 = vld [vmem:[%s257] sm:$0x1]
        %v274 = vperm.slane %v272, 0
        %276 = vst [vmem:[#allocation2] sm:$0xff] %v274
        %277 = vst [vmem:[#allocation2 + $0x8] sm:$0xff] %v274
        %278 = vst [vmem:[#allocation2 + $0x10] sm:$0xff] %v274
        %279 = vst [vmem:[#allocation2 + $0x18] sm:$0xff] %v274
        %280 = vst [vmem:[#allocation2 + $0x20] sm:$0xff] %v274
        %281 = vst [vmem:[#allocation2 + $0x28] sm:$0xff] %v274
        %282 = vst [vmem:[#allocation2 + $0x30] sm:$0xff] %v274
        %283 = vst [vmem:[#allocation2 + $0x38] sm:$0xff] %v274
      $region36: #{frequency_discriminator_forward.9} parent=31 // pred_fallthru
        _
      %v284 = vld [vmem:[#allocation2] sm:$0xff]
      %v285 = vld [vmem:[#allocation2 + $0x8] sm:$0xff]
      %v286 = vld [vmem:[#allocation2 + $0x10] sm:$0xff]
      %v287 = vld [vmem:[#allocation2 + $0x18] sm:$0xff]
      %v288 = vld [vmem:[#allocation2 + $0x20] sm:$0xff]
      %v289 = vld [vmem:[#allocation2 + $0x28] sm:$0xff]
      %v290 = vld [vmem:[#allocation2 + $0x30] sm:$0xff]
      %v291 = vld [vmem:[#allocation2 + $0x38] sm:$0xff]
      %v292 = vld [vmem:[%s243] sm:$0xff]
      %v293 = vld [vmem:[%s243 + $0x8] sm:$0xff]
      %v294 = vld [vmem:[%s243 + $0x10] sm:$0xff]
      %v295 = vld [vmem:[%s243 + $0x18] sm:$0xff]
      %v296 = vld [vmem:[%s243 + $0x20] sm:$0xff]
      %v297 = vld [vmem:[%s243 + $0x28] sm:$0xff]
      %v298 = vld [vmem:[%s243 + $0x30] sm:$0xff]
      %v299 = vld [vmem:[%s243 + $0x38] sm:$0xff]
      %v300 = vld [vmem:[%s253] sm:$0xf]
      %v301 = vld [vmem:[%s253 + $0x4] sm:$0xf]
      %v302 = vld [vmem:[%s253 + $0x8] sm:$0xf]
      %v303 = vld [vmem:[%s253 + $0xc] sm:$0xf]
      %v304 = vld [vmem:[%s253 + $0x10] sm:$0xf]
      %v305 = vld [vmem:[%s253 + $0x14] sm:$0xf]
      %v306 = vld [vmem:[%s253 + $0x18] sm:$0xf]
      %v307 = vld [vmem:[%s253 + $0x1c] sm:$0xf]
      %v308 = vld [vmem:[%s253 + $0x20] sm:$0xf]
      %v309 = vld [vmem:[%s253 + $0x24] sm:$0xf]
      %v310 = vld [vmem:[%s253 + $0x28] sm:$0xf]
      %v311 = vld [vmem:[%s253 + $0x2c] sm:$0xf]
      %v312 = vld [vmem:[%s253 + $0x30] sm:$0xf]
      %v313 = vld [vmem:[%s253 + $0x34] sm:$0xf]
      %v314 = vld [vmem:[%s253 + $0x38] sm:$0xf]
      %v315 = vld [vmem:[%s253 + $0x3c] sm:$0xf]
      %v316 = vld [vmem:[%s253 + $0x40] sm:$0xf]
      %v317 = vld [vmem:[%s253 + $0x44] sm:$0xf]
      %v326 = vunpack.c.l.b16 %v292
      %v327 = vunpack.c.h.b16 %v292
      %v328 = vunpack.c.l.b16 %v293
      %v329 = vunpack.c.h.b16 %v293
      %v330 = vunpack.c.l.b16 %v294
      %v331 = vunpack.c.h.b16 %v294
      %v332 = vunpack.c.l.b16 %v295
      %v333 = vunpack.c.h.b16 %v295
      %v334 = vunpack.c.l.b16 %v296
      %v335 = vunpack.c.h.b16 %v296
      %v336 = vunpack.c.l.b16 %v297
      %v337 = vunpack.c.h.b16 %v297
      %v338 = vunpack.c.l.b16 %v298
      %v339 = vunpack.c.h.b16 %v298
      %v340 = vunpack.c.l.b16 %v299
      %v341 = vunpack.c.h.b16 %v299
      %v342 = vpack.c.b16 %v328, %v326
      %v343 = vpack.c.b16 %v329, %v327
      %v344 = vpack.c.b16 %v332, %v330
      %v345 = vpack.c.b16 %v333, %v331
      %v346 = vpack.c.b16 %v336, %v334
      %v347 = vpack.c.b16 %v337, %v335
      %v348 = vpack.c.b16 %v340, %v338
      %v349 = vpack.c.b16 %v341, %v339
      %v372 = vunpack.c.l.b16 %v300
      %v373 = vunpack.c.l.b16 %v301
      %v374 = vunpack.c.l.b16 %v302
      %v375 = vunpack.c.l.b16 %v303
      %v376 = vunpack.c.l.b16 %v304
      %v377 = vunpack.c.l.b16 %v305
      %v378 = vunpack.c.l.b16 %v306
      %v379 = vunpack.c.l.b16 %v307
      %v380 = vunpack.c.l.b16 %v308
      %v381 = vunpack.c.l.b16 %v309
      %v382 = vunpack.c.l.b16 %v310
      %v383 = vunpack.c.l.b16 %v311
      %v384 = vunpack.c.l.b16 %v312
      %v385 = vunpack.c.l.b16 %v313
      %v386 = vunpack.c.l.b16 %v314
      %v387 = vunpack.c.l.b16 %v315
      %v388 = vunpack.c.l.b16 %v316
      %v389 = vunpack.c.l.b16 %v317
      %v390 = vpack.c.b16 %v373, %v372
      %v391 = vpack.c.b16 %v375, %v374
      %v392 = vpack.c.b16 %v377, %v376
      %v393 = vpack.c.b16 %v379, %v378
      %v394 = vpack.c.b16 %v381, %v380
      %v395 = vpack.c.b16 %v383, %v382
      %v396 = vpack.c.b16 %v385, %v384
      %v397 = vpack.c.b16 %v387, %v386
      %v398 = vpack.c.b16 %v389, %v388
      %vm408 = vcmask 130048
      %v410 = vsel %vm408, %v343, 0
      %v413 = vsel %vm408, %v345, 0
      %v416 = vsel %vm408, %v347, 0
      %v419 = vsel %vm408, %v349, 0
      %421 = vmatpush.bf16.msra.mxu0 %v397
      %422 = vmatpush.bf16.msra.mxu0 %v396
      %423 = vmatpush.bf16.msra.mxu0 %v395
      %424 = vmatpush.bf16.msra.mxu0 %v394
      %425 = vmatpush.bf16.msra.mxu0 %v393
      %426 = vmatpush.bf16.msra.mxu0 %v392
      %427 = vmatpush.bf16.msra.mxu0 %v391
      %428 = vmatpush.bf16.msra.mxu0 %v390
      %429 = vmatmul.bf16.gmra.mxu0 %v342
      %v430 = vpop.f32.mrf.mxu0
      %v431 = vadd.f32 0.0, %v430
      %v432 = vpop.f32.mrf.mxu0
      %v433 = vadd.f32 0.0, %v432
      %434 = vmatmul.bf16.gmra.mxu0 %v344
      %v435 = vpop.f32.mrf.mxu0
      %v436 = vadd.f32 0.0, %v435
      %v437 = vpop.f32.mrf.mxu0
      %v438 = vadd.f32 0.0, %v437
      %439 = vmatmul.bf16.gmra.mxu0 %v346
      %v440 = vpop.f32.mrf.mxu0
      %v441 = vadd.f32 0.0, %v440
      %v442 = vpop.f32.mrf.mxu0
      %v443 = vadd.f32 0.0, %v442
      %444 = vmatmul.bf16.gmra.mxu0 %v348
      %v445 = vpop.f32.mrf.mxu0
      %v446 = vadd.f32 0.0, %v445
      %v447 = vpop.f32.mrf.mxu0
      %v448 = vadd.f32 0.0, %v447
      %449 = vdwg.mxu0
      %450 = vmatpush.bf16.msra.mxu0 0
      %451 = vmatpush.bf16.msra.mxu0 0
      %452 = vmatpush.bf16.msra.mxu0 0
      %453 = vmatpush.bf16.msra.mxu0 0
      %454 = vmatpush.bf16.msra.mxu0 0
      %455 = vmatpush.bf16.msra.mxu0 0
      %456 = vmatpush.bf16.msra.mxu0 0
      %457 = vmatpush.bf16.msra.mxu0 %v398
      %458 = vmatmul.bf16.gmra.mxu0 %v410
      %v459 = vpop.f32.mrf.mxu0
      %v460 = vadd.f32 %v431, %v459
      %v461 = vpop.f32.mrf.mxu0
      %v462 = vadd.f32 %v433, %v461
      %463 = vmatmul.bf16.gmra.mxu0 %v413
      %v464 = vpop.f32.mrf.mxu0
      %v465 = vadd.f32 %v436, %v464
      %v466 = vpop.f32.mrf.mxu0
      %v467 = vadd.f32 %v438, %v466
      %468 = vmatmul.bf16.gmra.mxu0 %v416
      %v469 = vpop.f32.mrf.mxu0
      %v470 = vadd.f32 %v441, %v469
      %v471 = vpop.f32.mrf.mxu0
      %v472 = vadd.f32 %v443, %v471
      %473 = vmatmul.bf16.gmra.mxu0 %v419
      %v474 = vpop.f32.mrf.mxu0
      %v475 = vadd.f32 %v446, %v474
      %v476 = vpop.f32.mrf.mxu0
      %v477 = vadd.f32 %v448, %v476
      %478 = vdwg.mxu0
      %v479 = vadd.f32 %v284, %v460
      %v480 = vadd.f32 %v285, %v462
      %v481 = vadd.f32 %v286, %v465
      %v482 = vadd.f32 %v287, %v467
      %v483 = vadd.f32 %v288, %v470
      %v484 = vadd.f32 %v289, %v472
      %v485 = vadd.f32 %v290, %v475
      %v486 = vadd.f32 %v291, %v477
      %487 = vst [vmem:[#allocation2] sm:$0xff] %v479
      %488 = vst [vmem:[#allocation2 + $0x8] sm:$0xff] %v480
      %489 = vst [vmem:[#allocation2 + $0x10] sm:$0xff] %v481
      %490 = vst [vmem:[#allocation2 + $0x18] sm:$0xff] %v482
      %491 = vst [vmem:[#allocation2 + $0x20] sm:$0xff] %v483
      %492 = vst [vmem:[#allocation2 + $0x28] sm:$0xff] %v484
      %493 = vst [vmem:[#allocation2 + $0x30] sm:$0xff] %v485
      %494 = vst [vmem:[#allocation2 + $0x38] sm:$0xff] %v486
      // Predicated region
      $region37: #{frequency_discriminator_forward.9} parent=31 // pred_check
        %p495 = pneg %p268
      $region38: #{frequency_discriminator_forward.9} parent=31 // pred_check_branch
        %497 = sbr.rel (%p495) target = $region40
      $region39: #{frequency_discriminator_forward.9} parent=31 // pred_region
        %v498 = vld [vmem:[#allocation2] sm:$0xff]
        %v499 = vld [vmem:[#allocation2 + $0x8] sm:$0xff]
        %v500 = vld [vmem:[#allocation2 + $0x10] sm:$0xff]
        %v501 = vld [vmem:[#allocation2 + $0x18] sm:$0xff]
        %v502 = vld [vmem:[#allocation2 + $0x20] sm:$0xff]
        %v503 = vld [vmem:[#allocation2 + $0x28] sm:$0xff]
        %v504 = vld [vmem:[#allocation2 + $0x30] sm:$0xff]
        %v505 = vld [vmem:[#allocation2 + $0x38] sm:$0xff]
        %vm506 = vcmp.ge.f32.partialorder %v498, 0.0
        %vm507 = vcmp.ge.f32.partialorder %v499, 0.0
        %vm508 = vcmp.ge.f32.partialorder %v500, 0.0
        %vm509 = vcmp.ge.f32.partialorder %v501, 0.0
        %vm510 = vcmp.ge.f32.partialorder %v502, 0.0
        %vm511 = vcmp.ge.f32.partialorder %v503, 0.0
        %vm512 = vcmp.ge.f32.partialorder %v504, 0.0
        %vm513 = vcmp.ge.f32.partialorder %v505, 0.0
        %v514 = vmul.f32 %v498, 0.2
        %v515 = vmul.f32 %v499, 0.2
        %v516 = vmul.f32 %v500, 0.2
        %v517 = vmul.f32 %v501, 0.2
        %v518 = vmul.f32 %v502, 0.2
        %v519 = vmul.f32 %v503, 0.2
        %v520 = vmul.f32 %v504, 0.2
        %v521 = vmul.f32 %v505, 0.2
        %v522 = vsel %vm506, %v498, %v514
        %v523 = vsel %vm507, %v499, %v515
        %v524 = vsel %vm508, %v500, %v516
        %v525 = vsel %vm509, %v501, %v517
        %v526 = vsel %vm510, %v502, %v518
        %v527 = vsel %vm511, %v503, %v519
        %v528 = vsel %vm512, %v504, %v520
        %v529 = vsel %vm513, %v505, %v521
        %v530 = vpack.c.bf16 %v522, %v522
        %v531 = vpack.c.bf16 %v523, %v523
        %v532 = vpack.c.bf16 %v524, %v524
        %v533 = vpack.c.bf16 %v525, %v525
        %v534 = vpack.c.bf16 %v526, %v526
        %v535 = vpack.c.bf16 %v527, %v527
        %v536 = vpack.c.bf16 %v528, %v528
        %v537 = vpack.c.bf16 %v529, %v529
        %538 = vst [vmem:[%s265] sm:$0xf] %v530
        %539 = vst [vmem:[%s265 + $0x4] sm:$0xf] %v531
        %540 = vst [vmem:[%s265 + $0x8] sm:$0xf] %v532
        %541 = vst [vmem:[%s265 + $0xc] sm:$0xf] %v533
        %542 = vst [vmem:[%s265 + $0x10] sm:$0xf] %v534
        %543 = vst [vmem:[%s265 + $0x14] sm:$0xf] %v535
        %544 = vst [vmem:[%s265 + $0x18] sm:$0xf] %v536
        %545 = vst [vmem:[%s265 + $0x1c] sm:$0xf] %v537
      $region40: #{frequency_discriminator_forward.9} parent=31 // pred_fallthru
        _
      %s546 = smul.u32 8, %s19
      %p547 = scmp.lt.s32.totalorder %s546, 15
      %s548 = scalar_select %p547, %s546, 15
      %p549 = scmp.lt.s32.totalorder %s20, 0
      %s550 = scalar_select %p549, %s20, 0
      %s551 = sadd.s32 %s550, %s548
      %s552 = smul.addr %s551, 4
      %s553 = scalar_lea.vmem %s3, %s552
      // Predicated region
      $region41: #{frequency_discriminator_forward.9} parent=31 // pred_check
        %p554 = pneg %p135
      $region42: #{frequency_discriminator_forward.9} parent=31 // pred_check_branch
        %556 = sbr.rel (%p554) target = $region44
      $region43: #{frequency_discriminator_forward.9} parent=31 // pred_region
        %s557 = smul.u32 8, %s19
      $region44: #{frequency_discriminator_forward.9} parent=31 // pred_fallthru
        _
    $region32: #{frequency_discriminator_forward.9} parent=5 // pred_fallthru
      _
    %p558 = scmp.le.s32.totalorder 2, %s9
    // Predicated region
    $region45: #{frequency_discriminator_forward.9} parent=5 // pred_check
      %p559 = pneg %p558
    $region46: #{frequency_discriminator_forward.9} parent=5 // pred_check_branch
      %561 = sbr.rel (%p559) target = $region48
    $region47: #{frequency_discriminator_forward.9} parent=5 // pred_region
      %s562 = ssub.s32 %s9, 2
      // Predicated region
      $region49: #{frequency_discriminator_forward.9} parent=47 // pred_check
        %p563 = pneg %p141
      $region50: #{frequency_discriminator_forward.9} parent=47 // pred_check_branch
        %565 = sbr.rel (%p563) target = $region52
      $region51: #{frequency_discriminator_forward.9} parent=47 // pred_region
        %s566 = smul.u32 8, %s22
        %p567 = scmp.lt.s32.totalorder %s566, 15
        %s568 = scalar_select %p567, %s566, 15
        %p569 = scmp.lt.s32.totalorder %s23, 0
        %s570 = scalar_select %p569, %s23, 0
        %s571 = sadd.s32 %s570, %s568
        %s572 = smul.addr %s571, 4
        %s573 = scalar_lea.vmem %s3, %s572
      $region52: #{frequency_discriminator_forward.9} parent=47 // pred_fallthru
        _
    $region48: #{frequency_discriminator_forward.9} parent=5 // pred_fallthru
      _
  $region6: #{frequency_discriminator_forward.9} parent=0 // loop_footer
    %s13 = sadd.s32 1, %s9
  $region7: #{frequency_discriminator_forward.9} parent=0 // loop_footer_branch
    %8 = sbr.rel target = $region3
  $region8: #{frequency_discriminator_forward.9} parent=0 // loop_exit
    _

// kernel: frequency_discriminator_forward.10
$region0: #{frequency_discriminator_forward.10}
  #allocation0 [shape = 'u32[]', space=smem, size = 0x4, offset = 0x4, fixed_abs, tag = 'smem constant byte address 0x4 - core index']
  #allocation1 [shape = 'u32[72,128]{1,0:T(1,128)}', space=vmem, size = 0x9000, scoped, tag = 'internal scratch']
  #allocation2 [shape = 'f32[16,128]{1,0:T(8,128)}', space=vmem, size = 0x2000, scoped, tag = 'scratch operand']
  %s0 = inlined_call_operand.vmem [shape: bf16[32,288], index: 0, kind: input, shape index: {}]
  %s1 = inlined_call_operand.vmem [shape: bf16[288,128], index: 1, kind: input, shape index: {}]
  %s2 = inlined_call_operand.vmem [shape: f32[1,128], index: 2, kind: input, shape index: {}]
  %s3 = inlined_call_operand.vmem [shape: bf16[32,128], index: 3, kind: output, shape index: {}]
  %s4 = sld [smem:[#allocation0]]
  $region53: #{frequency_discriminator_forward.10} parent=0
    _
  %s6 = ssub.s32 1, %s4
  %s7 = scalar_select 0, %s6, %s4
  loop: start=0, step=1, limit=4
  $region2: #{frequency_discriminator_forward.10} parent=0 // loop_pre_header
    _
  $region3: #{frequency_discriminator_forward.10} parent=0 // loop_header
    %s9 = sphi 0, %s13
    %p10 = scmp.ge.s32.totalorder %s9, 4
    %s16 = sphi 0, %s35
    %s17 = sphi 0, %s31
    %s18 = sphi 0, %s27
    %s19 = sphi 0, %s16
    %s20 = sphi 0, %s17
    %s21 = sphi 0, %s18
    %s22 = sphi 0, %s19
    %s23 = sphi 0, %s20
    %s24 = sphi 0, %s21
    %s40 = sphi 0, %s42
    %s43 = sphi 0, %s40
    %s44 = sphi 0, %s43
    %s60 = sphi 0, %s44
    %s68 = sphi 0, %s70
    %s71 = sphi 0, %s68
    %s72 = sphi 0, %s71
    %s88 = sphi 0, %s72
    %s94 = sphi 0, %s96
    %s97 = sphi 0, %s94
    %s98 = sphi 0, %s97
    %s114 = sphi 0, %s98
    %s122 = sphi 0, %s124
    %s125 = sphi 0, %s122
    %s126 = sphi 0, %s125
    %s142 = sphi 0, %s126
  $region4: #{frequency_discriminator_forward.10} parent=0 // loop_header_branch
    %12 = sbr.rel (%p10) target = $region8
  $region5: #{frequency_discriminator_forward.10} parent=0 // loop_body
    %s14 = ssub.s32 %s9, 1
    %s15 = ssub.s32 %s9, 2
    %s25 = sadd.s32 1, %s18
    %p26 = scmp.ge.s32.totalorder %s25, 1
    %s27 = scalar_select %p26, 0, %s25
    %s28 = sadd.s32 1, %s17
    %s29 = scalar_select %p26, %s28, %s17
    %p30 = scmp.ge.s32.totalorder %s29, 1
    %s31 = scalar_select %p30, 0, %s29
    %s32 = sadd.s32 1, %s16
    %s33 = scalar_select %p30, %s32, %s16
    %p34 = scmp.ge.s32.totalorder %s33, 2
    %s35 = scalar_select %p34, 0, %s33
    %s36 = ssub.s32 %s16, %s35
    %s37 = ssub.s32 %s18, %s27
    %s38 = sor.u32 %s36, %s37
    %p39 = scmp.eq.s32.totalorder %s38, 0
    %s41 = sadd.s32 %s40, 1
    %s42 = scalar_select %p39, %s40, %s41
    %p45 = pneg %p39
    %p46 = scmp.eq.s32.totalorder %s9, 1
    %p47 = por %p45, %p46
    %p48 = scmp.ne.s32.totalorder %s40, %s43
    %p49 = scmp.eq.s32.totalorder %s9, 0
    %p50 = por %p48, %p49
    %p51 = scmp.ne.s32.totalorder %s40, %s43
    %p52 = scmp.eq.s32.totalorder %s14, 1
    %p53 = por %p51, %p52
    %p54 = scmp.ne.s32.totalorder %s43, %s44
    %p55 = scmp.eq.s32.totalorder %s14, 0
    %p56 = por %p54, %p55
    %p57 = scmp.ne.s32.totalorder %s43, %s44
    %p58 = scmp.eq.s32.totalorder %s15, 1
    %p59 = por %p57, %p58
    %p61 = scmp.ne.s32.totalorder %s44, %s60
    %p62 = scmp.eq.s32.totalorder %s15, 0
    %p63 = por %p61, %p62
    %s64 = ssub.s32 %s18, %s27
    %s65 = ssub.s32 %s17, %s31
    %s66 = sor.u32 %s64, %s65
    %p67 = scmp.eq.s32.totalorder %s66, 0
    %s69 = sadd.s32 %s68, 1
    %s70 = scalar_select %p67, %s68, %s69
    %p73 = pneg %p67
    %p74 = scmp.eq.s32.totalorder %s9, 1
    %p75 = por %p73, %p74
    %p76 = scmp.ne.s32.totalorder %s68, %s71
    %p77 = scmp.eq.s32.totalorder %s9, 0
    %p78 = por %p76, %p77
    %p79 = scmp.ne.s32.totalorder %s68, %s71
    %p80 = scmp.eq.s32.totalorder %s14, 1
    %p81 = por %p79, %p80
    %p82 = scmp.ne.s32.totalorder %s71, %s72
    %p83 = scmp.eq.s32.totalorder %s14, 0
    %p84 = por %p82, %p83
    %p85 = scmp.ne.s32.totalorder %s71, %s72
    %p86 = scmp.eq.s32.totalorder %s15, 1
    %p87 = por %p85, %p86
    %p89 = scmp.ne.s32.totalorder %s72, %s88
    %p90 = scmp.eq.s32.totalorder %s15, 0
    %p91 = por %p89, %p90
    %s92 = ssub.s32 %s17, %s31
    %p93 = scmp.eq.s32.totalorder %s92, 0
    %s95 = sadd.s32 %s94, 1
    %s96 = scalar_select %p93, %s94, %s95
    %p99 = pneg %p93
    %p100 = scmp.eq.s32.totalorder %s9, 1
    %p101 = por %p99, %p100
    %p102 = scmp.ne.s32.totalorder %s94, %s97
    %p103 = scmp.eq.s32.totalorder %s9, 0
    %p104 = por %p102, %p103
    %p105 = scmp.ne.s32.totalorder %s94, %s97
    %p106 = scmp.eq.s32.totalorder %s14, 1
    %p107 = por %p105, %p106
    %p108 = scmp.ne.s32.totalorder %s97, %s98
    %p109 = scmp.eq.s32.totalorder %s14, 0
    %p110 = por %p108, %p109
    %p111 = scmp.ne.s32.totalorder %s97, %s98
    %p112 = scmp.eq.s32.totalorder %s15, 1
    %p113 = por %p111, %p112
    %p115 = scmp.ne.s32.totalorder %s98, %s114
    %p116 = scmp.eq.s32.totalorder %s15, 0
    %p117 = por %p115, %p116
    %s118 = ssub.s32 %s16, %s35
    %s119 = ssub.s32 %s17, %s31
    %s120 = sor.u32 %s118, %s119
    %p121 = scmp.eq.s32.totalorder %s120, 0
    %s123 = sadd.s32 %s122, 1
    %s124 = scalar_select %p121, %s122, %s123
    %p127 = pneg %p121
    %p128 = scmp.eq.s32.totalorder %s9, 1
    %p129 = por %p127, %p128
    %p130 = scmp.ne.s32.totalorder %s122, %s125
    %p131 = scmp.eq.s32.totalorder %s9, 0
    %p132 = por %p130, %p131
    %p133 = scmp.ne.s32.totalorder %s122, %s125
    %p134 = scmp.eq.s32.totalorder %s14, 1
    %p135 = por %p133, %p134
    %p136 = scmp.ne.s32.totalorder %s125, %s126
    %p137 = scmp.eq.s32.totalorder %s14, 0
    %p138 = por %p136, %p137
    %p139 = scmp.ne.s32.totalorder %s125, %s126
    %p140 = scmp.eq.s32.totalorder %s15, 1
    %p141 = por %p139, %p140
    %p143 = scmp.ne.s32.totalorder %s126, %s142
    %p144 = scmp.eq.s32.totalorder %s15, 0
    %p145 = por %p143, %p144
    %p146 = scmp.le.s32.totalorder 1, %s9
    %p147 = scmp.lt.s32.totalorder %s9, 3
    %p148 = pnand %p146, %p147
    %p149 = pneg %p148
    // Predicated region
    $region9: #{frequency_discriminator_forward.10} parent=5 // pred_check
      _
    $region10: #{frequency_discriminator_forward.10} parent=5 // pred_check_branch
      %151 = sbr.rel (%p148) target = $region12
    $region11: #{frequency_discriminator_forward.10} parent=5 // pred_region
      %s152 = ssub.s32 %s9, 1
      // Predicated region
      $region13: #{frequency_discriminator_forward.10} parent=11 // pred_check
        %p153 = pneg %p84
      $region14: #{frequency_discriminator_forward.10} parent=11 // pred_check_branch
        %155 = sbr.rel (%p153) target = $region16
      $region15: #{frequency_discriminator_forward.10} parent=11 // pred_region
        %s156 = smul.u32 36, %s21
        %p157 = scmp.lt.s32.totalorder %s156, 35
        %s158 = scalar_select %p157, %s156, 35
        %p159 = scmp.lt.s32.totalorder %s20, 0
        %s160 = scalar_select %p159, %s20, 0
        %s161 = sadd.s32 %s160, %s158
        %s162 = smul.addr %s161, 4
        %s163 = scalar_lea.vmem %s1, %s162
        %s164 = smul.u32 36, %s21
      $region16: #{frequency_discriminator_forward.10} parent=11 // pred_fallthru
        _
      // Predicated region
      $region17: #{frequency_discriminator_forward.10} parent=11 // pred_check
        %p165 = pneg %p110
      $region18: #{frequency_discriminator_forward.10} parent=11 // pred_check_branch
        %167 = sbr.rel (%p165) target = $region20
      $region19: #{frequency_discriminator_forward.10} parent=11 // pred_region
        %p168 = scmp.lt.s32.totalorder %s20, 0
        %s169 = scalar_select %p168, %s20, 0
        %s170 = scalar_lea.vmem %s2, %s169
      $region20: #{frequency_discriminator_forward.10} parent=11 // pred_fallthru
        _
    $region12: #{frequency_discriminator_forward.10} parent=5 // pred_fallthru
      _
    %p171 = scmp.lt.s32.totalorder %s9, 2
    // Predicated region
    $region21: #{frequency_discriminator_forward.10} parent=5 // pred_check
      %p172 = pneg %p171
    $region22: #{frequency_discriminator_forward.10} parent=5 // pred_check_branch
      %174 = sbr.rel (%p172) target = $region24
    $region23: #{frequency_discriminator_forward.10} parent=5 // pred_region
      // Predicated region
      $region25: #{frequency_discriminator_forward.10} parent=23 // pred_check
        %p175 = pneg %p50
      $region26: #{frequency_discriminator_forward.10} parent=23 // pred_check_branch
        %177 = sbr.rel (%p175) target = $region28
      $region27: #{frequency_discriminator_forward.10} parent=23 // pred_region
        %s178 = smul.u32 2, %s16
        %s179 = smul.u32 3, %s18
        %p180 = scmp.lt.s32.totalorder %s178, 3
        %s181 = scalar_select %p180, %s178, 3
        %p182 = scmp.lt.s32.totalorder %s179, 2
        %s183 = scalar_select %p182, %s179, 2
        %s184 = smul.addr %s181, 3
        %s185 = sadd.s32 %s183, %s184
        %s186 = smul.addr %s185, 4
        %s187 = scalar_lea.vmem %s0, %s186
        %s188 = smul.u32 2, %s16
        %s189 = smul.u32 3, %s18
      $region28: #{frequency_discriminator_forward.10} parent=23 // pred_fallthru
        _
    $region24: #{frequency_discriminator_forward.10} parent=5 // pred_fallthru
      _
    %p190 = scmp.le.s32.totalorder 1, %s9
    %p191 = scmp.lt.s32.totalorder %s9, 3
    %p192 = pnand %p190, %p191
    %p193 = pneg %p192
    // Predicated region
    $region29: #{frequency_discriminator_forward.10} parent=5 // pred_check
      _
    $region30: #{frequency_discriminator_forward.10} parent=5 // pred_check_branch
      %195 = sbr.rel (%p192) target = $region32
    $region31: #{frequency_discriminator_forward.10} parent=5 // pred_region
      %s196 = ssub.s32 %s9, 1
      %s197 = smul.u32 2, %s19
      %s198 = smul.u32 3, %s21
      %p199 = scmp.lt.s32.totalorder %s197, 3
      %s200 = scalar_select %p199, %s197, 3
      %p201 = scmp.lt.s32.totalorder %s198, 2
      %s202 = scalar_select %p201, %s198, 2
      %s203 = smul.addr %s200, 3
      %s204 = sadd.s32 %s202, %s203
      %s205 = smul.addr %s204, 4
      %s206 = scalar_lea.vmem %s0, %s205
      %p207 = pneg %p56
      %p208 = pneg %p53
      %s209 = smul.u32 36, %s21
      %p210 = scmp.lt.s32.totalorder %s209, 35
      %s211 = scalar_select %p210, %s209, 35
      %p212 = scmp.lt.s32.totalorder %s20, 0
      %s213 = scalar_select %p212, %s20, 0
      %s214 = sadd.s32 %s213, %s211
      %s215 = smul.addr %s214, 4
      %s216 = scalar_lea.vmem %s1, %s215
      %p217 = pneg %p84
      %p218 = pneg %p81
      %p219 = scmp.lt.s32.totalorder %s20, 0
      %s220 = scalar_select %p219, %s20, 0
      %s221 = scalar_lea.vmem %s2, %s220
      %p222 = pneg %p110
      %p223 = pneg %p107
      %p224 = pneg %p138
      %p225 = pneg %p135
      %s226 = smul.u32 2, %s19
      %p227 = scmp.lt.s32.totalorder %s226, 3
      %s228 = scalar_select %p227, %s226, 3
      %p229 = scmp.lt.s32.totalorder %s20, 0
      %s230 = scalar_select %p229, %s20, 0
      %s231 = sadd.s32 %s230, %s228
      %s232 = smul.addr %s231, 4
      %s233 = scalar_lea.vmem %s3, %s232
      %s234 = smul.u32 2, %s19
      %s235 = smul.u32 3, %s21
      %p236 = scmp.lt.s32.totalorder %s234, 3
      %s237 = scalar_select %p236, %s234, 3
      %p238 = scmp.lt.s32.totalorder %s235, 2
      %s239 = scalar_select %p238, %s235, 2
      %s240 = smul.addr %s237, 3
      %s241 = sadd.s32 %s239, %s240
      %s242 = smul.addr %s241, 4
      %s243 = scalar_lea.vmem %s0, %s242
      %s244 = smul.u32 2, %s19
      %s245 = smul.u32 3, %s21
      %s246 = smul.u32 36, %s21
      %p247 = scmp.lt.s32.totalorder %s246, 35
      %s248 = scalar_select %p247, %s246, 35
      %p249 = scmp.lt.s32.totalorder %s20, 0
      %s250 = scalar_select %p249, %s20, 0
      %s251 = sadd.s32 %s250, %s248
      %s252 = smul.addr %s251, 4
      %s253 = scalar_lea.vmem %s1, %s252
      %s254 = smul.u32 36, %s21
      %p255 = scmp.lt.s32.totalorder %s20, 0
      %s256 = scalar_select %p255, %s20, 0
      %s257 = scalar_lea.vmem %s2, %s256
      %s258 = smul.u32 2, %s19
      %p259 = scmp.lt.s32.totalorder %s258, 3
      %s260 = scalar_select %p259, %s258, 3
      %p261 = scmp.lt.s32.totalorder %s20, 0
      %s262 = scalar_select %p261, %s20, 0
      %s263 = sadd.s32 %s262, %s260
      %s264 = smul.addr %s263, 4
      %s265 = scalar_lea.vmem %s3, %s264
      %s266 = smul.u32 2, %s19
      %p268 = scmp.eq.s32.totalorder %s21, 0
      // Predicated region
      $region33: #{frequency_discriminator_forward.10} parent=31 // pred_check
        %p269 = pneg %p268
      $region34: #{frequency_discriminator_forward.10} parent=31 // pred_check_branch
        %271 = sbr.rel (%p269) target = $region36
      $region35: #{frequency_discriminator_forward.10} parent=31 // pred_region
        %v272 = vld [vmem:[%s257] sm:$0x1]
        %v274 = vperm.slane %v272, 0
        %276 = vst [vmem:[#allocation2] sm:$0xff] %v274
        %277 = vst [vmem:[#allocation2 + $0x8] sm:$0xff] %v274
      $region36: #{frequency_discriminator_forward.10} parent=31 // pred_fallthru
        _
      %v278 = vld [vmem:[#allocation2] sm:$0xff]
      %v279 = vld [vmem:[#allocation2 + $0x8] sm:$0xff]
      %v280 = vld [vmem:[%s243] sm:$0xff]
      %v281 = vld [vmem:[%s243 + $0x8] sm:$0xf]
      %v282 = vld [vmem:[%s243 + $0xc] sm:$0xff]
      %v283 = vld [vmem:[%s243 + $0x14] sm:$0xf]
      %v284 = vld [vmem:[%s253] sm:$0xf]
      %v285 = vld [vmem:[%s253 + $0x4] sm:$0xf]
      %v286 = vld [vmem:[%s253 + $0x8] sm:$0xf]
      %v287 = vld [vmem:[%s253 + $0xc] sm:$0xf]
      %v288 = vld [vmem:[%s253 + $0x10] sm:$0xf]
      %v289 = vld [vmem:[%s253 + $0x14] sm:$0xf]
      %v290 = vld [vmem:[%s253 + $0x18] sm:$0xf]
      %v291 = vld [vmem:[%s253 + $0x1c] sm:$0xf]
      %v292 = vld [vmem:[%s253 + $0x20] sm:$0xf]
      %v293 = vld [vmem:[%s253 + $0x24] sm:$0xf]
      %v294 = vld [vmem:[%s253 + $0x28] sm:$0xf]
      %v295 = vld [vmem:[%s253 + $0x2c] sm:$0xf]
      %v296 = vld [vmem:[%s253 + $0x30] sm:$0xf]
      %v297 = vld [vmem:[%s253 + $0x34] sm:$0xf]
      %v298 = vld [vmem:[%s253 + $0x38] sm:$0xf]
      %v299 = vld [vmem:[%s253 + $0x3c] sm:$0xf]
      %v300 = vld [vmem:[%s253 + $0x40] sm:$0xf]
      %v301 = vld [vmem:[%s253 + $0x44] sm:$0xf]
      %v302 = vld [vmem:[%s253 + $0x48] sm:$0xf]
      %v303 = vld [vmem:[%s253 + $0x4c] sm:$0xf]
      %v304 = vld [vmem:[%s253 + $0x50] sm:$0xf]
      %v305 = vld [vmem:[%s253 + $0x54] sm:$0xf]
      %v306 = vld [vmem:[%s253 + $0x58] sm:$0xf]
      %v307 = vld [vmem:[%s253 + $0x5c] sm:$0xf]
      %v308 = vld [vmem:[%s253 + $0x60] sm:$0xf]
      %v309 = vld [vmem:[%s253 + $0x64] sm:$0xf]
      %v310 = vld [vmem:[%s253 + $0x68] sm:$0xf]
      %v311 = vld [vmem:[%s253 + $0x6c] sm:$0xf]
      %v312 = vld [vmem:[%s253 + $0x70] sm:$0xf]
      %v313 = vld [vmem:[%s253 + $0x74] sm:$0xf]
      %v314 = vld [vmem:[%s253 + $0x78] sm:$0xf]
      %v315 = vld [vmem:[%s253 + $0x7c] sm:$0xf]
      %v316 = vld [vmem:[%s253 + $0x80] sm:$0xf]
      %v317 = vld [vmem:[%s253 + $0x84] sm:$0xf]
      %v318 = vld [vmem:[%s253 + $0x88] sm:$0xf]
      %v319 = vld [vmem:[%s253 + $0x8c] sm:$0xf]
      %v324 = vunpack.c.l.b16 %v280
      %v325 = vunpack.c.h.b16 %v280
      %v326 = vunpack.c.l.b16 %v281
      %v327 = vunpack.c.l.b16 %v282
      %v328 = vunpack.c.h.b16 %v282
      %v329 = vunpack.c.l.b16 %v283
      %v330 = vpack.c.b16 %v327, %v324
      %v331 = vpack.c.b16 %v328, %v325
      %v332 = vpack.c.b16 %v329, %v326
      %v371 = vunpack.c.l.b16 %v284
      %v372 = vunpack.c.l.b16 %v285
      %v373 = vunpack.c.l.b16 %v286
      %v374 = vunpack.c.l.b16 %v287
      %v375 = vunpack.c.l.b16 %v288
      %v376 = vunpack.c.l.b16 %v289
      %v377 = vunpack.c.l.b16 %v290
      %v378 = vunpack.c.l.b16 %v291
      %v379 = vunpack.c.l.b16 %v292
      %v380 = vunpack.c.l.b16 %v293
      %v381 = vunpack.c.l.b16 %v294
      %v382 = vunpack.c.l.b16 %v295
      %v383 = vunpack.c.l.b16 %v296
      %v384 = vunpack.c.l.b16 %v297
      %v385 = vunpack.c.l.b16 %v298
      %v386 = vunpack.c.l.b16 %v299
      %v387 = vunpack.c.l.b16 %v300
      %v388 = vunpack.c.l.b16 %v301
      %v389 = vunpack.c.l.b16 %v302
      %v390 = vunpack.c.l.b16 %v303
      %v391 = vunpack.c.l.b16 %v304
      %v392 = vunpack.c.l.b16 %v305
      %v393 = vunpack.c.l.b16 %v306
      %v394 = vunpack.c.l.b16 %v307
      %v395 = vunpack.c.l.b16 %v308
      %v396 = vunpack.c.l.b16 %v309
      %v397 = vunpack.c.l.b16 %v310
      %v398 = vunpack.c.l.b16 %v311
      %v399 = vunpack.c.l.b16 %v312
      %v400 = vunpack.c.l.b16 %v313
      %v401 = vunpack.c.l.b16 %v314
      %v402 = vunpack.c.l.b16 %v315
      %v403 = vunpack.c.l.b16 %v316
      %v404 = vunpack.c.l.b16 %v317
      %v405 = vunpack.c.l.b16 %v318
      %v406 = vunpack.c.l.b16 %v319
      %v407 = vpack.c.b16 %v372, %v371
      %v408 = vpack.c.b16 %v374, %v373
      %v409 = vpack.c.b16 %v376, %v375
      %v410 = vpack.c.b16 %v378, %v377
      %v411 = vpack.c.b16 %v380, %v379
      %v412 = vpack.c.b16 %v382, %v381
      %v413 = vpack.c.b16 %v384, %v383
      %v414 = vpack.c.b16 %v386, %v385
      %v415 = vpack.c.b16 %v388, %v387
      %v416 = vpack.c.b16 %v390, %v389
      %v417 = vpack.c.b16 %v392, %v391
      %v418 = vpack.c.b16 %v394, %v393
      %v419 = vpack.c.b16 %v396, %v395
      %v420 = vpack.c.b16 %v398, %v397
      %v421 = vpack.c.b16 %v400, %v399
      %v422 = vpack.c.b16 %v402, %v401
      %v423 = vpack.c.b16 %v404, %v403
      %v424 = vpack.c.b16 %v406, %v405
      %vm443 = vcmask 261120
      %v445 = vsel %vm443, %v332, 0
      %447 = vmatpush.bf16.msra.mxu0 %v414
      %448 = vmatpush.bf16.msra.mxu0 %v413
      %449 = vmatpush.bf16.msra.mxu0 %v412
      %450 = vmatpush.bf16.msra.mxu0 %v411
      %451 = vmatpush.bf16.msra.mxu0 %v410
      %452 = vmatpush.bf16.msra.mxu0 %v409
      %453 = vmatpush.bf16.msra.mxu0 %v408
      %454 = vmatpush.bf16.msra.mxu0 %v407
      %455 = vmatmul.bf16.gmra.mxu0 %v330
      %v456 = vpop.f32.mrf.mxu0
      %v457 = vadd.f32 0.0, %v456
      %v458 = vpop.f32.mrf.mxu0
      %v459 = vadd.f32 0.0, %v458
      %460 = vdwg.mxu0
      %461 = vmatpush.bf16.msra.mxu0 %v422
      %462 = vmatpush.bf16.msra.mxu0 %v421
      %463 = vmatpush.bf16.msra.mxu0 %v420
      %464 = vmatpush.bf16.msra.mxu0 %v419
      %465 = vmatpush.bf16.msra.mxu0 %v418
      %466 = vmatpush.bf16.msra.mxu0 %v417
      %467 = vmatpush.bf16.msra.mxu0 %v416
      %468 = vmatpush.bf16.msra.mxu0 %v415
      %469 = vmatmul.bf16.gmra.mxu0 %v331
      %v470 = vpop.f32.mrf.mxu0
      %v471 = vadd.f32 %v457, %v470
      %v472 = vpop.f32.mrf.mxu0
      %v473 = vadd.f32 %v459, %v472
      %474 = vdwg.mxu0
      %475 = vmatpush.bf16.msra.mxu0 0
      %476 = vmatpush.bf16.msra.mxu0 0
      %477 = vmatpush.bf16.msra.mxu0 0
      %478 = vmatpush.bf16.msra.mxu0 0
      %479 = vmatpush.bf16.msra.mxu0 0
      %480 = vmatpush.bf16.msra.mxu0 0
      %481 = vmatpush.bf16.msra.mxu0 %v424
      %482 = vmatpush.bf16.msra.mxu0 %v423
      %483 = vmatmul.bf16.gmra.mxu0 %v445
      %v484 = vpop.f32.mrf.mxu0
      %v485 = vadd.f32 %v471, %v484
      %v486 = vpop.f32.mrf.mxu0
      %v487 = vadd.f32 %v473, %v486
      %488 = vdwg.mxu0
      %v489 = vadd.f32 %v278, %v485
      %v490 = vadd.f32 %v279, %v487
      %491 = vst [vmem:[#allocation2] sm:$0xff] %v489
      %492 = vst [vmem:[#allocation2 + $0x8] sm:$0xff] %v490
      // Predicated region
      $region37: #{frequency_discriminator_forward.10} parent=31 // pred_check
        %p493 = pneg %p268
      $region38: #{frequency_discriminator_forward.10} parent=31 // pred_check_branch
        %495 = sbr.rel (%p493) target = $region40
      $region39: #{frequency_discriminator_forward.10} parent=31 // pred_region
        %v496 = vld [vmem:[#allocation2] sm:$0xff]
        %v497 = vld [vmem:[#allocation2 + $0x8] sm:$0xff]
        %vm498 = vcmp.ge.f32.partialorder %v496, 0.0
        %vm499 = vcmp.ge.f32.partialorder %v497, 0.0
        %v500 = vmul.f32 %v496, 0.2
        %v501 = vmul.f32 %v497, 0.2
        %v502 = vsel %vm498, %v496, %v500
        %v503 = vsel %vm499, %v497, %v501
        %v504 = vpack.c.bf16 %v502, %v502
        %v505 = vpack.c.bf16 %v503, %v503
        %506 = vst [vmem:[%s265] sm:$0xf] %v504
        %507 = vst [vmem:[%s265 + $0x4] sm:$0xf] %v505
      $region40: #{frequency_discriminator_forward.10} parent=31 // pred_fallthru
        _
      %s508 = smul.u32 2, %s19
      %p509 = scmp.lt.s32.totalorder %s508, 3
      %s510 = scalar_select %p509, %s508, 3
      %p511 = scmp.lt.s32.totalorder %s20, 0
      %s512 = scalar_select %p511, %s20, 0
      %s513 = sadd.s32 %s512, %s510
      %s514 = smul.addr %s513, 4
      %s515 = scalar_lea.vmem %s3, %s514
      // Predicated region
      $region41: #{frequency_discriminator_forward.10} parent=31 // pred_check
        %p516 = pneg %p135
      $region42: #{frequency_discriminator_forward.10} parent=31 // pred_check_branch
        %518 = sbr.rel (%p516) target = $region44
      $region43: #{frequency_discriminator_forward.10} parent=31 // pred_region
        %s519 = smul.u32 2, %s19
      $region44: #{frequency_discriminator_forward.10} parent=31 // pred_fallthru
        _
    $region32: #{frequency_discriminator_forward.10} parent=5 // pred_fallthru
      _
    %p520 = scmp.le.s32.totalorder 2, %s9
    // Predicated region
    $region45: #{frequency_discriminator_forward.10} parent=5 // pred_check
      %p521 = pneg %p520
    $region46: #{frequency_discriminator_forward.10} parent=5 // pred_check_branch
      %523 = sbr.rel (%p521) target = $region48
    $region47: #{frequency_discriminator_forward.10} parent=5 // pred_region
      %s524 = ssub.s32 %s9, 2
      // Predicated region
      $region49: #{frequency_discriminator_forward.10} parent=47 // pred_check
        %p525 = pneg %p141
      $region50: #{frequency_discriminator_forward.10} parent=47 // pred_check_branch
        %527 = sbr.rel (%p525) target = $region52
      $region51: #{frequency_discriminator_forward.10} parent=47 // pred_region
        %s528 = smul.u32 2, %s22
        %p529 = scmp.lt.s32.totalorder %s528, 3
        %s530 = scalar_select %p529, %s528, 3
        %p531 = scmp.lt.s32.totalorder %s23, 0
        %s532 = scalar_select %p531, %s23, 0
        %s533 = sadd.s32 %s532, %s530
        %s534 = smul.addr %s533, 4
        %s535 = scalar_lea.vmem %s3, %s534
      $region52: #{frequency_discriminator_forward.10} parent=47 // pred_fallthru
        _
    $region48: #{frequency_discriminator_forward.10} parent=5 // pred_fallthru
      _
  $region6: #{frequency_discriminator_forward.10} parent=0 // loop_footer
    %s13 = sadd.s32 1, %s9
  $region7: #{frequency_discriminator_forward.10} parent=0 // loop_footer_branch
    %8 = sbr.rel target = $region3
  $region8: #{frequency_discriminator_forward.10} parent=0 // loop_exit
    _

// kernel: frequency_discriminator_forward.11
$region0: #{frequency_discriminator_forward.11}
  #allocation0 [shape = 'u32[]', space=smem, size = 0x4, offset = 0x4, fixed_abs, tag = 'smem constant byte address 0x4 - core index']
  #allocation1 [shape = 'u32[72,128]{1,0:T(1,128)}', space=vmem, size = 0x9000, scoped, tag = 'internal scratch']
  #allocation2 [shape = 'f32[16,128]{1,0:T(8,128)}', space=vmem, size = 0x2000, scoped, tag = 'scratch operand']
  %s0 = inlined_call_operand.vmem [shape: bf16[32,576], index: 0, kind: input, shape index: {}]
  %s1 = inlined_call_operand.vmem [shape: bf16[576,128], index: 1, kind: input, shape index: {}]
  %s2 = inlined_call_operand.vmem [shape: f32[1,128], index: 2, kind: input, shape index: {}]
  %s3 = inlined_call_operand.vmem [shape: bf16[32,128], index: 3, kind: output, shape index: {}]
  %s4 = sld [smem:[#allocation0]]
  $region53: #{frequency_discriminator_forward.11} parent=0
    _
  %s6 = ssub.s32 1, %s4
  %s7 = scalar_select 0, %s6, %s4
  loop: start=0, step=1, limit=4
  $region2: #{frequency_discriminator_forward.11} parent=0 // loop_pre_header
    _
  $region3: #{frequency_discriminator_forward.11} parent=0 // loop_header
    %s9 = sphi 0, %s13
    %p10 = scmp.ge.s32.totalorder %s9, 4
    %s16 = sphi 0, %s35
    %s17 = sphi 0, %s31
    %s18 = sphi 0, %s27
    %s19 = sphi 0, %s16
    %s20 = sphi 0, %s17
    %s21 = sphi 0, %s18
    %s22 = sphi 0, %s19
    %s23 = sphi 0, %s20
    %s24 = sphi 0, %s21
    %s40 = sphi 0, %s42
    %s43 = sphi 0, %s40
    %s44 = sphi 0, %s43
    %s60 = sphi 0, %s44
    %s68 = sphi 0, %s70
    %s71 = sphi 0, %s68
    %s72 = sphi 0, %s71
    %s88 = sphi 0, %s72
    %s94 = sphi 0, %s96
    %s97 = sphi 0, %s94
    %s98 = sphi 0, %s97
    %s114 = sphi 0, %s98
    %s122 = sphi 0, %s124
    %s125 = sphi 0, %s122
    %s126 = sphi 0, %s125
    %s142 = sphi 0, %s126
  $region4: #{frequency_discriminator_forward.11} parent=0 // loop_header_branch
    %12 = sbr.rel (%p10) target = $region8
  $region5: #{frequency_discriminator_forward.11} parent=0 // loop_body
    %s14 = ssub.s32 %s9, 1
    %s15 = ssub.s32 %s9, 2
    %s25 = sadd.s32 1, %s18
    %p26 = scmp.ge.s32.totalorder %s25, 1
    %s27 = scalar_select %p26, 0, %s25
    %s28 = sadd.s32 1, %s17
    %s29 = scalar_select %p26, %s28, %s17
    %p30 = scmp.ge.s32.totalorder %s29, 1
    %s31 = scalar_select %p30, 0, %s29
    %s32 = sadd.s32 1, %s16
    %s33 = scalar_select %p30, %s32, %s16
    %p34 = scmp.ge.s32.totalorder %s33, 2
    %s35 = scalar_select %p34, 0, %s33
    %s36 = ssub.s32 %s16, %s35
    %s37 = ssub.s32 %s18, %s27
    %s38 = sor.u32 %s36, %s37
    %p39 = scmp.eq.s32.totalorder %s38, 0
    %s41 = sadd.s32 %s40, 1
    %s42 = scalar_select %p39, %s40, %s41
    %p45 = pneg %p39
    %p46 = scmp.eq.s32.totalorder %s9, 1
    %p47 = por %p45, %p46
    %p48 = scmp.ne.s32.totalorder %s40, %s43
    %p49 = scmp.eq.s32.totalorder %s9, 0
    %p50 = por %p48, %p49
    %p51 = scmp.ne.s32.totalorder %s40, %s43
    %p52 = scmp.eq.s32.totalorder %s14, 1
    %p53 = por %p51, %p52
    %p54 = scmp.ne.s32.totalorder %s43, %s44
    %p55 = scmp.eq.s32.totalorder %s14, 0
    %p56 = por %p54, %p55
    %p57 = scmp.ne.s32.totalorder %s43, %s44
    %p58 = scmp.eq.s32.totalorder %s15, 1
    %p59 = por %p57, %p58
    %p61 = scmp.ne.s32.totalorder %s44, %s60
    %p62 = scmp.eq.s32.totalorder %s15, 0
    %p63 = por %p61, %p62
    %s64 = ssub.s32 %s18, %s27
    %s65 = ssub.s32 %s17, %s31
    %s66 = sor.u32 %s64, %s65
    %p67 = scmp.eq.s32.totalorder %s66, 0
    %s69 = sadd.s32 %s68, 1
    %s70 = scalar_select %p67, %s68, %s69
    %p73 = pneg %p67
    %p74 = scmp.eq.s32.totalorder %s9, 1
    %p75 = por %p73, %p74
    %p76 = scmp.ne.s32.totalorder %s68, %s71
    %p77 = scmp.eq.s32.totalorder %s9, 0
    %p78 = por %p76, %p77
    %p79 = scmp.ne.s32.totalorder %s68, %s71
    %p80 = scmp.eq.s32.totalorder %s14, 1
    %p81 = por %p79, %p80
    %p82 = scmp.ne.s32.totalorder %s71, %s72
    %p83 = scmp.eq.s32.totalorder %s14, 0
    %p84 = por %p82, %p83
    %p85 = scmp.ne.s32.totalorder %s71, %s72
    %p86 = scmp.eq.s32.totalorder %s15, 1
    %p87 = por %p85, %p86
    %p89 = scmp.ne.s32.totalorder %s72, %s88
    %p90 = scmp.eq.s32.totalorder %s15, 0
    %p91 = por %p89, %p90
    %s92 = ssub.s32 %s17, %s31
    %p93 = scmp.eq.s32.totalorder %s92, 0
    %s95 = sadd.s32 %s94, 1
    %s96 = scalar_select %p93, %s94, %s95
    %p99 = pneg %p93
    %p100 = scmp.eq.s32.totalorder %s9, 1
    %p101 = por %p99, %p100
    %p102 = scmp.ne.s32.totalorder %s94, %s97
    %p103 = scmp.eq.s32.totalorder %s9, 0
    %p104 = por %p102, %p103
    %p105 = scmp.ne.s32.totalorder %s94, %s97
    %p106 = scmp.eq.s32.totalorder %s14, 1
    %p107 = por %p105, %p106
    %p108 = scmp.ne.s32.totalorder %s97, %s98
    %p109 = scmp.eq.s32.totalorder %s14, 0
    %p110 = por %p108, %p109
    %p111 = scmp.ne.s32.totalorder %s97, %s98
    %p112 = scmp.eq.s32.totalorder %s15, 1
    %p113 = por %p111, %p112
    %p115 = scmp.ne.s32.totalorder %s98, %s114
    %p116 = scmp.eq.s32.totalorder %s15, 0
    %p117 = por %p115, %p116
    %s118 = ssub.s32 %s16, %s35
    %s119 = ssub.s32 %s17, %s31
    %s120 = sor.u32 %s118, %s119
    %p121 = scmp.eq.s32.totalorder %s120, 0
    %s123 = sadd.s32 %s122, 1
    %s124 = scalar_select %p121, %s122, %s123
    %p127 = pneg %p121
    %p128 = scmp.eq.s32.totalorder %s9, 1
    %p129 = por %p127, %p128
    %p130 = scmp.ne.s32.totalorder %s122, %s125
    %p131 = scmp.eq.s32.totalorder %s9, 0
    %p132 = por %p130, %p131
    %p133 = scmp.ne.s32.totalorder %s122, %s125
    %p134 = scmp.eq.s32.totalorder %s14, 1
    %p135 = por %p133, %p134
    %p136 = scmp.ne.s32.totalorder %s125, %s126
    %p137 = scmp.eq.s32.totalorder %s14, 0
    %p138 = por %p136, %p137
    %p139 = scmp.ne.s32.totalorder %s125, %s126
    %p140 = scmp.eq.s32.totalorder %s15, 1
    %p141 = por %p139, %p140
    %p143 = scmp.ne.s32.totalorder %s126, %s142
    %p144 = scmp.eq.s32.totalorder %s15, 0
    %p145 = por %p143, %p144
    %p146 = scmp.le.s32.totalorder 1, %s9
    %p147 = scmp.lt.s32.totalorder %s9, 3
    %p148 = pnand %p146, %p147
    %p149 = pneg %p148
    // Predicated region
    $region9: #{frequency_discriminator_forward.11} parent=5 // pred_check
      _
    $region10: #{frequency_discriminator_forward.11} parent=5 // pred_check_branch
      %151 = sbr.rel (%p148) target = $region12
    $region11: #{frequency_discriminator_forward.11} parent=5 // pred_region
      %s152 = ssub.s32 %s9, 1
      // Predicated region
      $region13: #{frequency_discriminator_forward.11} parent=11 // pred_check
        %p153 = pneg %p84
      $region14: #{frequency_discriminator_forward.11} parent=11 // pred_check_branch
        %155 = sbr.rel (%p153) target = $region16
      $region15: #{frequency_discriminator_forward.11} parent=11 // pred_region
        %s156 = smul.u32 72, %s21
        %p157 = scmp.lt.s32.totalorder %s156, 71
        %s158 = scalar_select %p157, %s156, 71
        %p159 = scmp.lt.s32.totalorder %s20, 0
        %s160 = scalar_select %p159, %s20, 0
        %s161 = sadd.s32 %s160, %s158
        %s162 = smul.addr %s161, 4
        %s163 = scalar_lea.vmem %s1, %s162
        %s164 = smul.u32 72, %s21
      $region16: #{frequency_discriminator_forward.11} parent=11 // pred_fallthru
        _
      // Predicated region
      $region17: #{frequency_discriminator_forward.11} parent=11 // pred_check
        %p165 = pneg %p110
      $region18: #{frequency_discriminator_forward.11} parent=11 // pred_check_branch
        %167 = sbr.rel (%p165) target = $region20
      $region19: #{frequency_discriminator_forward.11} parent=11 // pred_region
        %p168 = scmp.lt.s32.totalorder %s20, 0
        %s169 = scalar_select %p168, %s20, 0
        %s170 = scalar_lea.vmem %s2, %s169
      $region20: #{frequency_discriminator_forward.11} parent=11 // pred_fallthru
        _
    $region12: #{frequency_discriminator_forward.11} parent=5 // pred_fallthru
      _
    %p171 = scmp.lt.s32.totalorder %s9, 2
    // Predicated region
    $region21: #{frequency_discriminator_forward.11} parent=5 // pred_check
      %p172 = pneg %p171
    $region22: #{frequency_discriminator_forward.11} parent=5 // pred_check_branch
      %174 = sbr.rel (%p172) target = $region24
    $region23: #{frequency_discriminator_forward.11} parent=5 // pred_region
      // Predicated region
      $region25: #{frequency_discriminator_forward.11} parent=23 // pred_check
        %p175 = pneg %p50
      $region26: #{frequency_discriminator_forward.11} parent=23 // pred_check_branch
        %177 = sbr.rel (%p175) target = $region28
      $region27: #{frequency_discriminator_forward.11} parent=23 // pred_region
        %s178 = smul.u32 2, %s16
        %s179 = smul.u32 5, %s18
        %p180 = scmp.lt.s32.totalorder %s178, 3
        %s181 = scalar_select %p180, %s178, 3
        %p182 = scmp.lt.s32.totalorder %s179, 4
        %s183 = scalar_select %p182, %s179, 4
        %s184 = smul.addr %s181, 5
        %s185 = sadd.s32 %s183, %s184
        %s186 = smul.addr %s185, 4
        %s187 = scalar_lea.vmem %s0, %s186
        %s188 = smul.u32 2, %s16
        %s189 = smul.u32 5, %s18
      $region28: #{frequency_discriminator_forward.11} parent=23 // pred_fallthru
        _
    $region24: #{frequency_discriminator_forward.11} parent=5 // pred_fallthru
      _
    %p190 = scmp.le.s32.totalorder 1, %s9
    %p191 = scmp.lt.s32.totalorder %s9, 3
    %p192 = pnand %p190, %p191
    %p193 = pneg %p192
    // Predicated region
    $region29: #{frequency_discriminator_forward.11} parent=5 // pred_check
      _
    $region30: #{frequency_discriminator_forward.11} parent=5 // pred_check_branch
      %195 = sbr.rel (%p192) target = $region32
    $region31: #{frequency_discriminator_forward.11} parent=5 // pred_region
      %s196 = ssub.s32 %s9, 1
      %s197 = smul.u32 2, %s19
      %s198 = smul.u32 5, %s21
      %p199 = scmp.lt.s32.totalorder %s197, 3
      %s200 = scalar_select %p199, %s197, 3
      %p201 = scmp.lt.s32.totalorder %s198, 4
      %s202 = scalar_select %p201, %s198, 4
      %s203 = smul.addr %s200, 5
      %s204 = sadd.s32 %s202, %s203
      %s205 = smul.addr %s204, 4
      %s206 = scalar_lea.vmem %s0, %s205
      %p207 = pneg %p56
      %p208 = pneg %p53
      %s209 = smul.u32 72, %s21
      %p210 = scmp.lt.s32.totalorder %s209, 71
      %s211 = scalar_select %p210, %s209, 71
      %p212 = scmp.lt.s32.totalorder %s20, 0
      %s213 = scalar_select %p212, %s20, 0
      %s214 = sadd.s32 %s213, %s211
      %s215 = smul.addr %s214, 4
      %s216 = scalar_lea.vmem %s1, %s215
      %p217 = pneg %p84
      %p218 = pneg %p81
      %p219 = scmp.lt.s32.totalorder %s20, 0
      %s220 = scalar_select %p219, %s20, 0
      %s221 = scalar_lea.vmem %s2, %s220
      %p222 = pneg %p110
      %p223 = pneg %p107
      %p224 = pneg %p138
      %p225 = pneg %p135
      %s226 = smul.u32 2, %s19
      %p227 = scmp.lt.s32.totalorder %s226, 3
      %s228 = scalar_select %p227, %s226, 3
      %p229 = scmp.lt.s32.totalorder %s20, 0
      %s230 = scalar_select %p229, %s20, 0
      %s231 = sadd.s32 %s230, %s228
      %s232 = smul.addr %s231, 4
      %s233 = scalar_lea.vmem %s3, %s232
      %s234 = smul.u32 2, %s19
      %s235 = smul.u32 5, %s21
      %p236 = scmp.lt.s32.totalorder %s234, 3
      %s237 = scalar_select %p236, %s234, 3
      %p238 = scmp.lt.s32.totalorder %s235, 4
      %s239 = scalar_select %p238, %s235, 4
      %s240 = smul.addr %s237, 5
      %s241 = sadd.s32 %s239, %s240
      %s242 = smul.addr %s241, 4
      %s243 = scalar_lea.vmem %s0, %s242
      %s244 = smul.u32 2, %s19
      %s245 = smul.u32 5, %s21
      %s246 = smul.u32 72, %s21
      %p247 = scmp.lt.s32.totalorder %s246, 71
      %s248 = scalar_select %p247, %s246, 71
      %p249 = scmp.lt.s32.totalorder %s20, 0
      %s250 = scalar_select %p249, %s20, 0
      %s251 = sadd.s32 %s250, %s248
      %s252 = smul.addr %s251, 4
      %s253 = scalar_lea.vmem %s1, %s252
      %s254 = smul.u32 72, %s21
      %p255 = scmp.lt.s32.totalorder %s20, 0
      %s256 = scalar_select %p255, %s20, 0
      %s257 = scalar_lea.vmem %s2, %s256
      %s258 = smul.u32 2, %s19
      %p259 = scmp.lt.s32.totalorder %s258, 3
      %s260 = scalar_select %p259, %s258, 3
      %p261 = scmp.lt.s32.totalorder %s20, 0
      %s262 = scalar_select %p261, %s20, 0
      %s263 = sadd.s32 %s262, %s260
      %s264 = smul.addr %s263, 4
      %s265 = scalar_lea.vmem %s3, %s264
      %s266 = smul.u32 2, %s19
      %p268 = scmp.eq.s32.totalorder %s21, 0
      // Predicated region
      $region33: #{frequency_discriminator_forward.11} parent=31 // pred_check
        %p269 = pneg %p268
      $region34: #{frequency_discriminator_forward.11} parent=31 // pred_check_branch
        %271 = sbr.rel (%p269) target = $region36
      $region35: #{frequency_discriminator_forward.11} parent=31 // pred_region
        %v272 = vld [vmem:[%s257] sm:$0x1]
        %v274 = vperm.slane %v272, 0
        %276 = vst [vmem:[#allocation2] sm:$0xff] %v274
        %277 = vst [vmem:[#allocation2 + $0x8] sm:$0xff] %v274
      $region36: #{frequency_discriminator_forward.11} parent=31 // pred_fallthru
        _
      %v278 = vld [vmem:[#allocation2] sm:$0xff]
      %v279 = vld [vmem:[#allocation2 + $0x8] sm:$0xff]
      %v280 = vld [vmem:[%s243] sm:$0xff]
      %v281 = vld [vmem:[%s243 + $0x8] sm:$0xff]
      %v282 = vld [vmem:[%s243 + $0x10] sm:$0xf]
      %v283 = vld [vmem:[%s243 + $0x14] sm:$0xff]
      %v284 = vld [vmem:[%s243 + $0x1c] sm:$0xff]
      %v285 = vld [vmem:[%s243 + $0x24] sm:$0xf]
      %v286 = vld [vmem:[%s253] sm:$0xf]
      %v287 = vld [vmem:[%s253 + $0x4] sm:$0xf]
      %v288 = vld [vmem:[%s253 + $0x8] sm:$0xf]
      %v289 = vld [vmem:[%s253 + $0xc] sm:$0xf]
      %v290 = vld [vmem:[%s253 + $0x10] sm:$0xf]
      %v291 = vld [vmem:[%s253 + $0x14] sm:$0xf]
      %v292 = vld [vmem:[%s253 + $0x18] sm:$0xf]
      %v293 = vld [vmem:[%s253 + $0x1c] sm:$0xf]
      %v294 = vld [vmem:[%s253 + $0x20] sm:$0xf]
      %v295 = vld [vmem:[%s253 + $0x24] sm:$0xf]
      %v296 = vld [vmem:[%s253 + $0x28] sm:$0xf]
      %v297 = vld [vmem:[%s253 + $0x2c] sm:$0xf]
      %v298 = vld [vmem:[%s253 + $0x30] sm:$0xf]
      %v299 = vld [vmem:[%s253 + $0x34] sm:$0xf]
      %v300 = vld [vmem:[%s253 + $0x38] sm:$0xf]
      %v301 = vld [vmem:[%s253 + $0x3c] sm:$0xf]
      %v302 = vld [vmem:[%s253 + $0x40] sm:$0xf]
      %v303 = vld [vmem:[%s253 + $0x44] sm:$0xf]
      %v304 = vld [vmem:[%s253 + $0x48] sm:$0xf]
      %v305 = vld [vmem:[%s253 + $0x4c] sm:$0xf]
      %v306 = vld [vmem:[%s253 + $0x50] sm:$0xf]
      %v307 = vld [vmem:[%s253 + $0x54] sm:$0xf]
      %v308 = vld [vmem:[%s253 + $0x58] sm:$0xf]
      %v309 = vld [vmem:[%s253 + $0x5c] sm:$0xf]
      %v310 = vld [vmem:[%s253 + $0x60] sm:$0xf]
      %v311 = vld [vmem:[%s253 + $0x64] sm:$0xf]
      %v312 = vld [vmem:[%s253 + $0x68] sm:$0xf]
      %v313 = vld [vmem:[%s253 + $0x6c] sm:$0xf]
      %v314 = vld [vmem:[%s253 + $0x70] sm:$0xf]
      %v315 = vld [vmem:[%s253 + $0x74] sm:$0xf]
      %v316 = vld [vmem:[%s253 + $0x78] sm:$0xf]
      %v317 = vld [vmem:[%s253 + $0x7c] sm:$0xf]
      %v318 = vld [vmem:[%s253 + $0x80] sm:$0xf]
      %v319 = vld [vmem:[%s253 + $0x84] sm:$0xf]
      %v320 = vld [vmem:[%s253 + $0x88] sm:$0xf]
      %v321 = vld [vmem:[%s253 + $0x8c] sm:$0xf]
      %v322 = vld [vmem:[%s253 + $0x90] sm:$0xf]
      %v323 = vld [vmem:[%s253 + $0x94] sm:$0xf]
      %v324 = vld [vmem:[%s253 + $0x98] sm:$0xf]
      %v325 = vld [vmem:[%s253 + $0x9c] sm:$0xf]
      %v326 = vld [vmem:[%s253 + $0xa0] sm:$0xf]
      %v327 = vld [vmem:[%s253 + $0xa4] sm:$0xf]
      %v328 = vld [vmem:[%s253 + $0xa8] sm:$0xf]
      %v329 = vld [vmem:[%s253 + $0xac] sm:$0xf]
      %v330 = vld [vmem:[%s253 + $0xb0] sm:$0xf]
      %v331 = vld [vmem:[%s253 + $0xb4] sm:$0xf]
      %v332 = vld [vmem:[%s253 + $0xb8] sm:$0xf]
      %v333 = vld [vmem:[%s253 + $0xbc] sm:$0xf]
      %v334 = vld [vmem:[%s253 + $0xc0] sm:$0xf]
      %v335 = vld [vmem:[%s253 + $0xc4] sm:$0xf]
      %v336 = vld [vmem:[%s253 + $0xc8] sm:$0xf]
      %v337 = vld [vmem:[%s253 + $0xcc] sm:$0xf]
      %v338 = vld [vmem:[%s253 + $0xd0] sm:$0xf]
      %v339 = vld [vmem:[%s253 + $0xd4] sm:$0xf]
      %v340 = vld [vmem:[%s253 + $0xd8] sm:$0xf]
      %v341 = vld [vmem:[%s253 + $0xdc] sm:$0xf]
      %v342 = vld [vmem:[%s253 + $0xe0] sm:$0xf]
      %v343 = vld [vmem:[%s253 + $0xe4] sm:$0xf]
      %v344 = vld [vmem:[%s253 + $0xe8] sm:$0xf]
      %v345 = vld [vmem:[%s253 + $0xec] sm:$0xf]
      %v346 = vld [vmem:[%s253 + $0xf0] sm:$0xf]
      %v347 = vld [vmem:[%s253 + $0xf4] sm:$0xf]
      %v348 = vld [vmem:[%s253 + $0xf8] sm:$0xf]
      %v349 = vld [vmem:[%s253 + $0xfc] sm:$0xf]
      %v350 = vld [vmem:[%s253 + $0x100] sm:$0xf]
      %v351 = vld [vmem:[%s253 + $0x104] sm:$0xf]
      %v352 = vld [vmem:[%s253 + $0x108] sm:$0xf]
      %v353 = vld [vmem:[%s253 + $0x10c] sm:$0xf]
      %v354 = vld [vmem:[%s253 + $0x110] sm:$0xf]
      %v355 = vld [vmem:[%s253 + $0x114] sm:$0xf]
      %v356 = vld [vmem:[%s253 + $0x118] sm:$0xf]
      %v357 = vld [vmem:[%s253 + $0x11c] sm:$0xf]
      %v364 = vunpack.c.l.b16 %v280
      %v365 = vunpack.c.h.b16 %v280
      %v366 = vunpack.c.l.b16 %v281
      %v367 = vunpack.c.h.b16 %v281
      %v368 = vunpack.c.l.b16 %v282
      %v369 = vunpack.c.l.b16 %v283
      %v370 = vunpack.c.h.b16 %v283
      %v371 = vunpack.c.l.b16 %v284
      %v372 = vunpack.c.h.b16 %v284
      %v373 = vunpack.c.l.b16 %v285
      %v374 = vpack.c.b16 %v369, %v364
      %v375 = vpack.c.b16 %v370, %v365
      %v376 = vpack.c.b16 %v371, %v366
      %v377 = vpack.c.b16 %v372, %v367
      %v378 = vpack.c.b16 %v373, %v368
      %v455 = vunpack.c.l.b16 %v286
      %v456 = vunpack.c.l.b16 %v287
      %v457 = vunpack.c.l.b16 %v288
      %v458 = vunpack.c.l.b16 %v289
      %v459 = vunpack.c.l.b16 %v290
      %v460 = vunpack.c.l.b16 %v291
      %v461 = vunpack.c.l.b16 %v292
      %v462 = vunpack.c.l.b16 %v293
      %v463 = vunpack.c.l.b16 %v294
      %v464 = vunpack.c.l.b16 %v295
      %v465 = vunpack.c.l.b16 %v296
      %v466 = vunpack.c.l.b16 %v297
      %v467 = vunpack.c.l.b16 %v298
      %v468 = vunpack.c.l.b16 %v299
      %v469 = vunpack.c.l.b16 %v300
      %v470 = vunpack.c.l.b16 %v301
      %v471 = vunpack.c.l.b16 %v302
      %v472 = vunpack.c.l.b16 %v303
      %v473 = vunpack.c.l.b16 %v304
      %v474 = vunpack.c.l.b16 %v305
      %v475 = vunpack.c.l.b16 %v306
      %v476 = vunpack.c.l.b16 %v307
      %v477 = vunpack.c.l.b16 %v308
      %v478 = vunpack.c.l.b16 %v309
      %v479 = vunpack.c.l.b16 %v310
      %v480 = vunpack.c.l.b16 %v311
      %v481 = vunpack.c.l.b16 %v312
      %v482 = vunpack.c.l.b16 %v313
      %v483 = vunpack.c.l.b16 %v314
      %v484 = vunpack.c.l.b16 %v315
      %v485 = vunpack.c.l.b16 %v316
      %v486 = vunpack.c.l.b16 %v317
      %v487 = vunpack.c.l.b16 %v318
      %v488 = vunpack.c.l.b16 %v319
      %v489 = vunpack.c.l.b16 %v320
      %v490 = vunpack.c.l.b16 %v321
      %v491 = vunpack.c.l.b16 %v322
      %v492 = vunpack.c.l.b16 %v323
      %v493 = vunpack.c.l.b16 %v324
      %v494 = vunpack.c.l.b16 %v325
      %v495 = vunpack.c.l.b16 %v326
      %v496 = vunpack.c.l.b16 %v327
      %v497 = vunpack.c.l.b16 %v328
      %v498 = vunpack.c.l.b16 %v329
      %v499 = vunpack.c.l.b16 %v330
      %v500 = vunpack.c.l.b16 %v331
      %v501 = vunpack.c.l.b16 %v332
      %v502 = vunpack.c.l.b16 %v333
      %v503 = vunpack.c.l.b16 %v334
      %v504 = vunpack.c.l.b16 %v335
      %v505 = vunpack.c.l.b16 %v336
      %v506 = vunpack.c.l.b16 %v337
      %v507 = vunpack.c.l.b16 %v338
      %v508 = vunpack.c.l.b16 %v339
      %v509 = vunpack.c.l.b16 %v340
      %v510 = vunpack.c.l.b16 %v341
      %v511 = vunpack.c.l.b16 %v342
      %v512 = vunpack.c.l.b16 %v343
      %v513 = vunpack.c.l.b16 %v344
      %v514 = vunpack.c.l.b16 %v345
      %v515 = vunpack.c.l.b16 %v346
      %v516 = vunpack.c.l.b16 %v347
      %v517 = vunpack.c.l.b16 %v348
      %v518 = vunpack.c.l.b16 %v349
      %v519 = vunpack.c.l.b16 %v350
      %v520 = vunpack.c.l.b16 %v351
      %v521 = vunpack.c.l.b16 %v352
      %v522 = vunpack.c.l.b16 %v353
      %v523 = vunpack.c.l.b16 %v354
      %v524 = vunpack.c.l.b16 %v355
      %v525 = vunpack.c.l.b16 %v356
      %v526 = vunpack.c.l.b16 %v357
      %v527 = vpack.c.b16 %v456, %v455
      %v528 = vpack.c.b16 %v458, %v457
      %v529 = vpack.c.b16 %v460, %v459
      %v530 = vpack.c.b16 %v462, %v461
      %v531 = vpack.c.b16 %v464, %v463
      %v532 = vpack.c.b16 %v466, %v465
      %v533 = vpack.c.b16 %v468, %v467
      %v534 = vpack.c.b16 %v470, %v469
      %v535 = vpack.c.b16 %v472, %v471
      %v536 = vpack.c.b16 %v474, %v473
      %v537 = vpack.c.b16 %v476, %v475
      %v538 = vpack.c.b16 %v478, %v477
      %v539 = vpack.c.b16 %v480, %v479
      %v540 = vpack.c.b16 %v482, %v481
      %v541 = vpack.c.b16 %v484, %v483
      %v542 = vpack.c.b16 %v486, %v485
      %v543 = vpack.c.b16 %v488, %v487
      %v544 = vpack.c.b16 %v490, %v489
      %v545 = vpack.c.b16 %v492, %v491
      %v546 = vpack.c.b16 %v494, %v493
      %v547 = vpack.c.b16 %v496, %v495
      %v548 = vpack.c.b16 %v498, %v497
      %v549 = vpack.c.b16 %v500, %v499
      %v550 = vpack.c.b16 %v502, %v501
      %v551 = vpack.c.b16 %v504, %v503
      %v552 = vpack.c.b16 %v506, %v505
      %v553 = vpack.c.b16 %v508, %v507
      %v554 = vpack.c.b16 %v510, %v509
      %v555 = vpack.c.b16 %v512, %v511
      %v556 = vpack.c.b16 %v514, %v513
      %v557 = vpack.c.b16 %v516, %v515
      %v558 = vpack.c.b16 %v518, %v517
      %v559 = vpack.c.b16 %v520, %v519
      %v560 = vpack.c.b16 %v522, %v521
      %v561 = vpack.c.b16 %v524, %v523
      %v562 = vpack.c.b16 %v526, %v525
      %vm599 = vcmask 523264
      %v601 = vsel %vm599, %v378, 0
      %603 = vmatpush.bf16.msra.mxu0 %v534
      %604 = vmatpush.bf16.msra.mxu0 %v533
      %605 = vmatpush.bf16.msra.mxu0 %v532
      %606 = vmatpush.bf16.msra.mxu0 %v531
      %607 = vmatpush.bf16.msra.mxu0 %v530
      %608 = vmatpush.bf16.msra.mxu0 %v529
      %609 = vmatpush.bf16.msra.mxu0 %v528
      %610 = vmatpush.bf16.msra.mxu0 %v527
      %611 = vmatmul.bf16.gmra.mxu0 %v374
      %v612 = vpop.f32.mrf.mxu0
      %v613 = vadd.f32 0.0, %v612
      %v614 = vpop.f32.mrf.mxu0
      %v615 = vadd.f32 0.0, %v614
      %616 = vdwg.mxu0
      %617 = vmatpush.bf16.msra.mxu0 %v542
      %618 = vmatpush.bf16.msra.mxu0 %v541
      %619 = vmatpush.bf16.msra.mxu0 %v540
      %620 = vmatpush.bf16.msra.mxu0 %v539
      %621 = vmatpush.bf16.msra.mxu0 %v538
      %622 = vmatpush.bf16.msra.mxu0 %v537
      %623 = vmatpush.bf16.msra.mxu0 %v536
      %624 = vmatpush.bf16.msra.mxu0 %v535
      %625 = vmatmul.bf16.gmra.mxu0 %v375
      %v626 = vpop.f32.mrf.mxu0
      %v627 = vadd.f32 %v613, %v626
      %v628 = vpop.f32.mrf.mxu0
      %v629 = vadd.f32 %v615, %v628
      %630 = vdwg.mxu0
      %631 = vmatpush.bf16.msra.mxu0 %v550
      %632 = vmatpush.bf16.msra.mxu0 %v549
      %633 = vmatpush.bf16.msra.mxu0 %v548
      %634 = vmatpush.bf16.msra.mxu0 %v547
      %635 = vmatpush.bf16.msra.mxu0 %v546
      %636 = vmatpush.bf16.msra.mxu0 %v545
      %637 = vmatpush.bf16.msra.mxu0 %v544
      %638 = vmatpush.bf16.msra.mxu0 %v543
      %639 = vmatmul.bf16.gmra.mxu0 %v376
      %v640 = vpop.f32.mrf.mxu0
      %v641 = vadd.f32 %v627, %v640
      %v642 = vpop.f32.mrf.mxu0
      %v643 = vadd.f32 %v629, %v642
      %644 = vdwg.mxu0
      %645 = vmatpush.bf16.msra.mxu0 %v558
      %646 = vmatpush.bf16.msra.mxu0 %v557
      %647 = vmatpush.bf16.msra.mxu0 %v556
      %648 = vmatpush.bf16.msra.mxu0 %v555
      %649 = vmatpush.bf16.msra.mxu0 %v554
      %650 = vmatpush.bf16.msra.mxu0 %v553
      %651 = vmatpush.bf16.msra.mxu0 %v552
      %652 = vmatpush.bf16.msra.mxu0 %v551
      %653 = vmatmul.bf16.gmra.mxu0 %v377
      %v654 = vpop.f32.mrf.mxu0
      %v655 = vadd.f32 %v641, %v654
      %v656 = vpop.f32.mrf.mxu0
      %v657 = vadd.f32 %v643, %v656
      %658 = vdwg.mxu0
      %659 = vmatpush.bf16.msra.mxu0 0
      %660 = vmatpush.bf16.msra.mxu0 0
      %661 = vmatpush.bf16.msra.mxu0 0
      %662 = vmatpush.bf16.msra.mxu0 0
      %663 = vmatpush.bf16.msra.mxu0 %v562
      %664 = vmatpush.bf16.msra.mxu0 %v561
      %665 = vmatpush.bf16.msra.mxu0 %v560
      %666 = vmatpush.bf16.msra.mxu0 %v559
      %667 = vmatmul.bf16.gmra.mxu0 %v601
      %v668 = vpop.f32.mrf.mxu0
      %v669 = vadd.f32 %v655, %v668
      %v670 = vpop.f32.mrf.mxu0
      %v671 = vadd.f32 %v657, %v670
      %672 = vdwg.mxu0
      %v673 = vadd.f32 %v278, %v669
      %v674 = vadd.f32 %v279, %v671
      %675 = vst [vmem:[#allocation2] sm:$0xff] %v673
      %676 = vst [vmem:[#allocation2 + $0x8] sm:$0xff] %v674
      // Predicated region
      $region37: #{frequency_discriminator_forward.11} parent=31 // pred_check
        %p677 = pneg %p268
      $region38: #{frequency_discriminator_forward.11} parent=31 // pred_check_branch
        %679 = sbr.rel (%p677) target = $region40
      $region39: #{frequency_discriminator_forward.11} parent=31 // pred_region
        %v680 = vld [vmem:[#allocation2] sm:$0xff]
        %v681 = vld [vmem:[#allocation2 + $0x8] sm:$0xff]
        %vm682 = vcmp.ge.f32.partialorder %v680, 0.0
        %vm683 = vcmp.ge.f32.partialorder %v681, 0.0
        %v684 = vmul.f32 %v680, 0.2
        %v685 = vmul.f32 %v681, 0.2
        %v686 = vsel %vm682, %v680, %v684
        %v687 = vsel %vm683, %v681, %v685
        %v688 = vpack.c.bf16 %v686, %v686
        %v689 = vpack.c.bf16 %v687, %v687
        %690 = vst [vmem:[%s265] sm:$0xf] %v688
        %691 = vst [vmem:[%s265 + $0x4] sm:$0xf] %v689
      $region40: #{frequency_discriminator_forward.11} parent=31 // pred_fallthru
        _
      %s692 = smul.u32 2, %s19
      %p693 = scmp.lt.s32.totalorder %s692, 3
      %s694 = scalar_select %p693, %s692, 3
      %p695 = scmp.lt.s32.totalorder %s20, 0
      %s696 = scalar_select %p695, %s20, 0
      %s697 = sadd.s32 %s696, %s694
      %s698 = smul.addr %s697, 4
      %s699 = scalar_lea.vmem %s3, %s698
      // Predicated region
      $region41: #{frequency_discriminator_forward.11} parent=31 // pred_check
        %p700 = pneg %p135
      $region42: #{frequency_discriminator_forward.11} parent=31 // pred_check_branch
        %702 = sbr.rel (%p700) target = $region44
      $region43: #{frequency_discriminator_forward.11} parent=31 // pred_region
        %s703 = smul.u32 2, %s19
      $region44: #{frequency_discriminator_forward.11} parent=31 // pred_fallthru
        _
    $region32: #{frequency_discriminator_forward.11} parent=5 // pred_fallthru
      _
    %p704 = scmp.le.s32.totalorder 2, %s9
    // Predicated region
    $region45: #{frequency_discriminator_forward.11} parent=5 // pred_check
      %p705 = pneg %p704
    $region46: #{frequency_discriminator_forward.11} parent=5 // pred_check_branch
      %707 = sbr.rel (%p705) target = $region48
    $region47: #{frequency_discriminator_forward.11} parent=5 // pred_region
      %s708 = ssub.s32 %s9, 2
      // Predicated region
      $region49: #{frequency_discriminator_forward.11} parent=47 // pred_check
        %p709 = pneg %p141
      $region50: #{frequency_discriminator_forward.11} parent=47 // pred_check_branch
        %711 = sbr.rel (%p709) target = $region52
      $region51: #{frequency_discriminator_forward.11} parent=47 // pred_region
        %s712 = smul.u32 2, %s22
        %p713 = scmp.lt.s32.totalorder %s712, 3
        %s714 = scalar_select %p713, %s712, 3
        %p715 = scmp.lt.s32.totalorder %s23, 0
        %s716 = scalar_select %p715, %s23, 0
        %s717 = sadd.s32 %s716, %s714
        %s718 = smul.addr %s717, 4
        %s719 = scalar_lea.vmem %s3, %s718
      $region52: #{frequency_discriminator_forward.11} parent=47 // pred_fallthru
        _
    $region48: #{frequency_discriminator_forward.11} parent=5 // pred_fallthru
      _
  $region6: #{frequency_discriminator_forward.11} parent=0 // loop_footer
    %s13 = sadd.s32 1, %s9
  $region7: #{frequency_discriminator_forward.11} parent=0 // loop_footer_branch
    %8 = sbr.rel target = $region3
  $region8: #{frequency_discriminator_forward.11} parent=0 // loop_exit
    _

// kernel: frequency_discriminator_forward.12
$region0: #{frequency_discriminator_forward.12}
  #allocation0 [shape = 'u32[]', space=smem, size = 0x4, offset = 0x4, fixed_abs, tag = 'smem constant byte address 0x4 - core index']
  #allocation1 [shape = 'u32[72,128]{1,0:T(1,128)}', space=vmem, size = 0x9000, scoped, tag = 'internal scratch']
  #allocation2 [shape = 'f32[8,128]{1,0:T(8,128)}', space=vmem, size = 0x1000, scoped, tag = 'scratch operand']
  %s0 = inlined_call_operand.vmem [shape: bf16[8,1152], index: 0, kind: input, shape index: {}]
  %s1 = inlined_call_operand.vmem [shape: bf16[1152,256], index: 1, kind: input, shape index: {}]
  %s2 = inlined_call_operand.vmem [shape: f32[1,256], index: 2, kind: input, shape index: {}]
  %s3 = inlined_call_operand.vmem [shape: bf16[8,256], index: 3, kind: output, shape index: {}]
  %s4 = sld [smem:[#allocation0]]
  $region94: #{frequency_discriminator_forward.12} parent=0
    _
  %s6 = ssub.s32 1, %s4
  %s7 = scalar_select 0, %s6, %s4
  $region1: #{frequency_discriminator_forward.12} parent=0
    #allocation3 [shape = 'u8[589824]{0}', space=vmem, size = 0x90000, scoped, tag = 'input window, operand 1']
    loop: start=0, step=1, limit=4
    $region2: #{frequency_discriminator_forward.12} parent=1 // loop_pre_header
      _
    $region3: #{frequency_discriminator_forward.12} parent=1 // loop_header
      %s9 = sphi 0, %s13
      %p10 = scmp.ge.s32.totalorder %s9, 4
      %s16 = sphi 0, %s35
      %s17 = sphi 0, %s31
      %s18 = sphi 0, %s27
      %s19 = sphi 0, %s16
      %s20 = sphi 0, %s17
      %s21 = sphi 0, %s18
      %s22 = sphi 0, %s19
      %s23 = sphi 0, %s20
      %s24 = sphi 0, %s21
      %s40 = sphi 0, %s42
      %s43 = sphi 0, %s40
      %s44 = sphi 0, %s43
      %s60 = sphi 0, %s44
      %s68 = sphi 0, %s70
      %s71 = sphi 0, %s68
      %s72 = sphi 0, %s71
      %s88 = sphi 0, %s72
      %s94 = sphi 0, %s96
      %s97 = sphi 0, %s94
      %s98 = sphi 0, %s97
      %s114 = sphi 0, %s98
      %s122 = sphi 0, %s124
      %s125 = sphi 0, %s122
      %s126 = sphi 0, %s125
      %s142 = sphi 0, %s126
    $region4: #{frequency_discriminator_forward.12} parent=1 // loop_header_branch
      %12 = sbr.rel (%p10) target = $region8
    $region5: #{frequency_discriminator_forward.12} parent=1 // loop_body
      %s14 = ssub.s32 %s9, 1
      %s15 = ssub.s32 %s9, 2
      %s25 = sadd.s32 1, %s18
      %p26 = scmp.ge.s32.totalorder %s25, 1
      %s27 = scalar_select %p26, 0, %s25
      %s28 = sadd.s32 1, %s17
      %s29 = scalar_select %p26, %s28, %s17
      %p30 = scmp.ge.s32.totalorder %s29, 2
      %s31 = scalar_select %p30, 0, %s29
      %s32 = sadd.s32 1, %s16
      %s33 = scalar_select %p30, %s32, %s16
      %p34 = scmp.ge.s32.totalorder %s33, 1
      %s35 = scalar_select %p34, 0, %s33
      %s36 = ssub.s32 %s16, %s35
      %s37 = ssub.s32 %s18, %s27
      %s38 = sor.u32 %s36, %s37
      %p39 = scmp.eq.s32.totalorder %s38, 0
      %s41 = sadd.s32 %s40, 1
      %s42 = scalar_select %p39, %s40, %s41
      %p45 = pneg %p39
      %p46 = scmp.eq.s32.totalorder %s9, 1
      %p47 = por %p45, %p46
      %p48 = scmp.ne.s32.totalorder %s40, %s43
      %p49 = scmp.eq.s32.totalorder %s9, 0
      %p50 = por %p48, %p49
      %p51 = scmp.ne.s32.totalorder %s40, %s43
      %p52 = scmp.eq.s32.totalorder %s14, 1
      %p53 = por %p51, %p52
      %p54 = scmp.ne.s32.totalorder %s43, %s44
      %p55 = scmp.eq.s32.totalorder %s14, 0
      %p56 = por %p54, %p55
      %p57 = scmp.ne.s32.totalorder %s43, %s44
      %p58 = scmp.eq.s32.totalorder %s15, 1
      %p59 = por %p57, %p58
      %p61 = scmp.ne.s32.totalorder %s44, %s60
      %p62 = scmp.eq.s32.totalorder %s15, 0
      %p63 = por %p61, %p62
      %s64 = ssub.s32 %s18, %s27
      %s65 = ssub.s32 %s17, %s31
      %s66 = sor.u32 %s64, %s65
      %p67 = scmp.eq.s32.totalorder %s66, 0
      %s69 = sadd.s32 %s68, 1
      %s70 = scalar_select %p67, %s68, %s69
      %p73 = pneg %p67
      %p74 = scmp.eq.s32.totalorder %s9, 1
      %p75 = por %p73, %p74
      %p76 = scmp.ne.s32.totalorder %s68, %s71
      %p77 = scmp.eq.s32.totalorder %s9, 0
      %p78 = por %p76, %p77
      %p79 = scmp.ne.s32.totalorder %s68, %s71
      %p80 = scmp.eq.s32.totalorder %s14, 1
      %p81 = por %p79, %p80
      %p82 = scmp.ne.s32.totalorder %s71, %s72
      %p83 = scmp.eq.s32.totalorder %s14, 0
      %p84 = por %p82, %p83
      %p85 = scmp.ne.s32.totalorder %s71, %s72
      %p86 = scmp.eq.s32.totalorder %s15, 1
      %p87 = por %p85, %p86
      %p89 = scmp.ne.s32.totalorder %s72, %s88
      %p90 = scmp.eq.s32.totalorder %s15, 0
      %p91 = por %p89, %p90
      %s92 = ssub.s32 %s17, %s31
      %p93 = scmp.eq.s32.totalorder %s92, 0
      %s95 = sadd.s32 %s94, 1
      %s96 = scalar_select %p93, %s94, %s95
      %p99 = pneg %p93
      %p100 = scmp.eq.s32.totalorder %s9, 1
      %p101 = por %p99, %p100
      %p102 = scmp.ne.s32.totalorder %s94, %s97
      %p103 = scmp.eq.s32.totalorder %s9, 0
      %p104 = por %p102, %p103
      %p105 = scmp.ne.s32.totalorder %s94, %s97
      %p106 = scmp.eq.s32.totalorder %s14, 1
      %p107 = por %p105, %p106
      %p108 = scmp.ne.s32.totalorder %s97, %s98
      %p109 = scmp.eq.s32.totalorder %s14, 0
      %p110 = por %p108, %p109
      %p111 = scmp.ne.s32.totalorder %s97, %s98
      %p112 = scmp.eq.s32.totalorder %s15, 1
      %p113 = por %p111, %p112
      %p115 = scmp.ne.s32.totalorder %s98, %s114
      %p116 = scmp.eq.s32.totalorder %s15, 0
      %p117 = por %p115, %p116
      %s118 = ssub.s32 %s16, %s35
      %s119 = ssub.s32 %s17, %s31
      %s120 = sor.u32 %s118, %s119
      %p121 = scmp.eq.s32.totalorder %s120, 0
      %s123 = sadd.s32 %s122, 1
      %s124 = scalar_select %p121, %s122, %s123
      %p127 = pneg %p121
      %p128 = scmp.eq.s32.totalorder %s9, 1
      %p129 = por %p127, %p128
      %p130 = scmp.ne.s32.totalorder %s122, %s125
      %p131 = scmp.eq.s32.totalorder %s9, 0
      %p132 = por %p130, %p131
      %p133 = scmp.ne.s32.totalorder %s122, %s125
      %p134 = scmp.eq.s32.totalorder %s14, 1
      %p135 = por %p133, %p134
      %p136 = scmp.ne.s32.totalorder %s125, %s126
      %p137 = scmp.eq.s32.totalorder %s14, 0
      %p138 = por %p136, %p137
      %p139 = scmp.ne.s32.totalorder %s125, %s126
      %p140 = scmp.eq.s32.totalorder %s15, 1
      %p141 = por %p139, %p140
      %p143 = scmp.ne.s32.totalorder %s126, %s142
      %p144 = scmp.eq.s32.totalorder %s15, 0
      %p145 = por %p143, %p144
      %p146 = scmp.le.s32.totalorder 1, %s9
      %p147 = scmp.lt.s32.totalorder %s9, 3
      %p148 = pnand %p146, %p147
      %p149 = pneg %p148
      // Predicated region
      $region9: #{frequency_discriminator_forward.12} parent=5 // pred_check
        _
      $region10: #{frequency_discriminator_forward.12} parent=5 // pred_check_branch
        %151 = sbr.rel (%p148) target = $region12
      $region11: #{frequency_discriminator_forward.12} parent=5 // pred_region
        %s152 = ssub.s32 %s9, 1
        // Predicated region
        $region13: #{frequency_discriminator_forward.12} parent=11 // pred_check
          %p153 = pneg %p56
        $region14: #{frequency_discriminator_forward.12} parent=11 // pred_check_branch
          %155 = sbr.rel (%p153) target = $region16
        $region15: #{frequency_discriminator_forward.12} parent=11 // pred_region
          %s156 = smul.u32 9, %s21
          %p157 = scmp.lt.s32.totalorder %s19, 0
          %s158 = scalar_select %p157, %s19, 0
          %p159 = scmp.lt.s32.totalorder %s156, 8
          %s160 = scalar_select %p159, %s156, 8
          %s161 = smul.addr %s158, 9
          %s162 = sadd.s32 %s160, %s161
          %s163 = smul.addr %s162, 4
          %s164 = scalar_lea.vmem %s0, %s163
          %s165 = smul.u32 9, %s21
        $region16: #{frequency_discriminator_forward.12} parent=11 // pred_fallthru
          _
      $region12: #{frequency_discriminator_forward.12} parent=5 // pred_fallthru
        _
      %p166 = scmp.lt.s32.totalorder %s9, 2
      // Predicated region
      $region17: #{frequency_discriminator_forward.12} parent=5 // pred_check
        %p167 = pneg %p166
      $region18: #{frequency_discriminator_forward.12} parent=5 // pred_check_branch
        %169 = sbr.rel (%p167) target = $region20
      $region19: #{frequency_discriminator_forward.12} parent=5 // pred_region
        // Predicated region
        $region21: #{frequency_discriminator_forward.12} parent=19 // pred_check
          %p170 = pneg %p78
        $region22: #{frequency_discriminator_forward.12} parent=19 // pred_check_branch
          %172 = sbr.rel (%p170) target = $region24
        $region23: #{frequency_discriminator_forward.12} parent=19 // pred_region
          %s173 = sand.u32 %s68, 1
          %s174 = sand.u32 %s68, 1
          %s175 = smul.addr %s174, 576
          %s176 = scalar_lea.vmem [#allocation3], %s175
          %s177 = smul.u32 144, %s18
          %s178 = smul.addr %s177, 2
          %s179 = sadd.s32 %s17, %s178
          %s180 = smul.addr %s179, 4
          %s181 = scalar_lea.vmem %s1, %s180
          // Predicated region
          $region25: #{frequency_discriminator_forward.12} parent=23 // pred_check
            _
          $region26: #{frequency_discriminator_forward.12} parent=23 // pred_check_branch
            %183 = sbr.rel (0) target = $region28
          $region27: #{frequency_discriminator_forward.12} parent=23 // pred_region
            // Predicated region
            $region29: #{frequency_discriminator_forward.12} parent=27 // pred_check
              _
            $region30: #{frequency_discriminator_forward.12} parent=27 // pred_check_branch
              %185 = sbr.rel target = $region32
            $region31: #{frequency_discriminator_forward.12} parent=27 // pred_region
              // Predicated region
              $region44: #{frequency_discriminator_forward.12} parent=31 // pred_check
                _
              $region45: #{frequency_discriminator_forward.12} parent=31 // pred_check_branch
                %487 = sbr.rel (0) target = $region47
              $region46: #{frequency_discriminator_forward.12} parent=31 // pred_region
                loop: start=0, step=1, limit=1
                $region48: #{frequency_discriminator_forward.12} parent=46 // loop_pre_header
                  _
                $region49: #{frequency_discriminator_forward.12} parent=46 // loop_header
                  %s489 = sphi 0, %s493
                  %p490 = scmp.ge.s32.totalorder %s489, 1
                  %s494 = sphi %s181, %s181
                  %s495 = sphi %s176, %s176
                $region50: #{frequency_discriminator_forward.12} parent=46 // loop_header_branch
                  %492 = sbr.rel (%p490) target = $region54
                $region51: #{frequency_discriminator_forward.12} parent=46 // loop_body
                  _
                $region52: #{frequency_discriminator_forward.12} parent=46 // loop_footer
                  %s493 = sadd.s32 1, %s489
                $region53: #{frequency_discriminator_forward.12} parent=46 // loop_footer_branch
                  %488 = sbr.rel target = $region49
                $region54: #{frequency_discriminator_forward.12} parent=46 // loop_exit
                  _
                %s497 = ssub.s32 16, 1
                loop: start=0, step=1, limit=1
                $region55: #{frequency_discriminator_forward.12} parent=46 // loop_pre_header
                  _
                $region56: #{frequency_discriminator_forward.12} parent=46 // loop_header
                  %s499 = sphi 0, %s503
                  %p500 = scmp.ge.s32.totalorder %s499, 1
                  %s504 = sphi %s181, %s181
                  %s505 = sphi %s176, %s176
                $region57: #{frequency_discriminator_forward.12} parent=46 // loop_header_branch
                  %502 = sbr.rel (%p500) target = $region61
                $region58: #{frequency_discriminator_forward.12} parent=46 // loop_body
                  %v506 = vld [vmem:[%s504] sm:%s497]
                  %507 = vst [vmem:[%s505] sm:%s497] %v506
                  %v508 = vld [vmem:[%s504 + $0x8] sm:%s497]
                  %509 = vst [vmem:[%s505 + $0x4] sm:%s497] %v508
                  %v510 = vld [vmem:[%s504 + $0x10] sm:%s497]
                  %511 = vst [vmem:[%s505 + $0x8] sm:%s497] %v510
                  %v512 = vld [vmem:[%s504 + $0x18] sm:%s497]
                  %513 = vst [vmem:[%s505 + $0xc] sm:%s497] %v512
                  %v514 = vld [vmem:[%s504 + $0x20] sm:%s497]
                  %515 = vst [vmem:[%s505 + $0x10] sm:%s497] %v514
                  %v516 = vld [vmem:[%s504 + $0x28] sm:%s497]
                  %517 = vst [vmem:[%s505 + $0x14] sm:%s497] %v516
                  %v518 = vld [vmem:[%s504 + $0x30] sm:%s497]
                  %519 = vst [vmem:[%s505 + $0x18] sm:%s497] %v518
                  %v520 = vld [vmem:[%s504 + $0x38] sm:%s497]
                  %521 = vst [vmem:[%s505 + $0x1c] sm:%s497] %v520
                  %v522 = vld [vmem:[%s504 + $0x40] sm:%s497]
                  %523 = vst [vmem:[%s505 + $0x20] sm:%s497] %v522
                  %v524 = vld [vmem:[%s504 + $0x48] sm:%s497]
                  %525 = vst [vmem:[%s505 + $0x24] sm:%s497] %v524
                  %v526 = vld [vmem:[%s504 + $0x50] sm:%s497]
                  %527 = vst [vmem:[%s505 + $0x28] sm:%s497] %v526
                  %v528 = vld [vmem:[%s504 + $0x58] sm:%s497]
                  %529 = vst [vmem:[%s505 + $0x2c] sm:%s497] %v528
                  %v530 = vld [vmem:[%s504 + $0x60] sm:%s497]
                  %531 = vst [vmem:[%s505 + $0x30] sm:%s497] %v530
                  %v532 = vld [vmem:[%s504 + $0x68] sm:%s497]
                  %533 = vst [vmem:[%s505 + $0x34] sm:%s497] %v532
                  %v534 = vld [vmem:[%s504 + $0x70] sm:%s497]
                  %535 = vst [vmem:[%s505 + $0x38] sm:%s497] %v534
                  %v536 = vld [vmem:[%s504 + $0x78] sm:%s497]
                  %537 = vst [vmem:[%s505 + $0x3c] sm:%s497] %v536
                  %v538 = vld [vmem:[%s504 + $0x80] sm:%s497]
                  %539 = vst [vmem:[%s505 + $0x40] sm:%s497] %v538
                  %v540 = vld [vmem:[%s504 + $0x88] sm:%s497]
                  %541 = vst [vmem:[%s505 + $0x44] sm:%s497] %v540
                  %v542 = vld [vmem:[%s504 + $0x90] sm:%s497]
                  %543 = vst [vmem:[%s505 + $0x48] sm:%s497] %v542
                  %v544 = vld [vmem:[%s504 + $0x98] sm:%s497]
                  %545 = vst [vmem:[%s505 + $0x4c] sm:%s497] %v544
                  %v546 = vld [vmem:[%s504 + $0xa0] sm:%s497]
                  %547 = vst [vmem:[%s505 + $0x50] sm:%s497] %v546
                  %v548 = vld [vmem:[%s504 + $0xa8] sm:%s497]
                  %549 = vst [vmem:[%s505 + $0x54] sm:%s497] %v548
                  %v550 = vld [vmem:[%s504 + $0xb0] sm:%s497]
                  %551 = vst [vmem:[%s505 + $0x58] sm:%s497] %v550
                  %v552 = vld [vmem:[%s504 + $0xb8] sm:%s497]
                  %553 = vst [vmem:[%s505 + $0x5c] sm:%s497] %v552
                  %v554 = vld [vmem:[%s504 + $0xc0] sm:%s497]
                  %555 = vst [vmem:[%s505 + $0x60] sm:%s497] %v554
                  %v556 = vld [vmem:[%s504 + $0xc8] sm:%s497]
                  %557 = vst [vmem:[%s505 + $0x64] sm:%s497] %v556
                  %v558 = vld [vmem:[%s504 + $0xd0] sm:%s497]
                  %559 = vst [vmem:[%s505 + $0x68] sm:%s497] %v558
                  %v560 = vld [vmem:[%s504 + $0xd8] sm:%s497]
                  %561 = vst [vmem:[%s505 + $0x6c] sm:%s497] %v560
                  %v562 = vld [vmem:[%s504 + $0xe0] sm:%s497]
                  %563 = vst [vmem:[%s505 + $0x70] sm:%s497] %v562
                  %v564 = vld [vmem:[%s504 + $0xe8] sm:%s497]
                  %565 = vst [vmem:[%s505 + $0x74] sm:%s497] %v564
                  %v566 = vld [vmem:[%s504 + $0xf0] sm:%s497]
                  %567 = vst [vmem:[%s505 + $0x78] sm:%s497] %v566
                  %v568 = vld [vmem:[%s504 + $0xf8] sm:%s497]
                  %569 = vst [vmem:[%s505 + $0x7c] sm:%s497] %v568
                  %v570 = vld [vmem:[%s504 + $0x100] sm:%s497]
                  %571 = vst [vmem:[%s505 + $0x80] sm:%s497] %v570
                  %v572 = vld [vmem:[%s504 + $0x108] sm:%s497]
                  %573 = vst [vmem:[%s505 + $0x84] sm:%s497] %v572
                  %v574 = vld [vmem:[%s504 + $0x110] sm:%s497]
                  %575 = vst [vmem:[%s505 + $0x88] sm:%s497] %v574
                  %v576 = vld [vmem:[%s504 + $0x118] sm:%s497]
                  %577 = vst [vmem:[%s505 + $0x8c] sm:%s497] %v576
                  %v578 = vld [vmem:[%s504 + $0x120] sm:%s497]
                  %579 = vst [vmem:[%s505 + $0x90] sm:%s497] %v578
                  %v580 = vld [vmem:[%s504 + $0x128] sm:%s497]
                  %581 = vst [vmem:[%s505 + $0x94] sm:%s497] %v580
                  %v582 = vld [vmem:[%s504 + $0x130] sm:%s497]
                  %583 = vst [vmem:[%s505 + $0x98] sm:%s497] %v582
                  %v584 = vld [vmem:[%s504 + $0x138] sm:%s497]
                  %585 = vst [vmem:[%s505 + $0x9c] sm:%s497] %v584
                  %v586 = vld [vmem:[%s504 + $0x140] sm:%s497]
                  %587 = vst [vmem:[%s505 + $0xa0] sm:%s497] %v586
                  %v588 = vld [vmem:[%s504 + $0x148] sm:%s497]
                  %589 = vst [vmem:[%s505 + $0xa4] sm:%s497] %v588
                  %v590 = vld [vmem:[%s504 + $0x150] sm:%s497]
                  %591 = vst [vmem:[%s505 + $0xa8] sm:%s497] %v590
                  %v592 = vld [vmem:[%s504 + $0x158] sm:%s497]
                  %593 = vst [vmem:[%s505 + $0xac] sm:%s497] %v592
                  %v594 = vld [vmem:[%s504 + $0x160] sm:%s497]
                  %595 = vst [vmem:[%s505 + $0xb0] sm:%s497] %v594
                  %v596 = vld [vmem:[%s504 + $0x168] sm:%s497]
                  %597 = vst [vmem:[%s505 + $0xb4] sm:%s497] %v596
                  %v598 = vld [vmem:[%s504 + $0x170] sm:%s497]
                  %599 = vst [vmem:[%s505 + $0xb8] sm:%s497] %v598
                  %v600 = vld [vmem:[%s504 + $0x178] sm:%s497]
                  %601 = vst [vmem:[%s505 + $0xbc] sm:%s497] %v600
                  %v602 = vld [vmem:[%s504 + $0x180] sm:%s497]
                  %603 = vst [vmem:[%s505 + $0xc0] sm:%s497] %v602
                  %v604 = vld [vmem:[%s504 + $0x188] sm:%s497]
                  %605 = vst [vmem:[%s505 + $0xc4] sm:%s497] %v604
                  %v606 = vld [vmem:[%s504 + $0x190] sm:%s497]
                  %607 = vst [vmem:[%s505 + $0xc8] sm:%s497] %v606
                  %v608 = vld [vmem:[%s504 + $0x198] sm:%s497]
                  %609 = vst [vmem:[%s505 + $0xcc] sm:%s497] %v608
                  %v610 = vld [vmem:[%s504 + $0x1a0] sm:%s497]
                  %611 = vst [vmem:[%s505 + $0xd0] sm:%s497] %v610
                  %v612 = vld [vmem:[%s504 + $0x1a8] sm:%s497]
                  %613 = vst [vmem:[%s505 + $0xd4] sm:%s497] %v612
                  %v614 = vld [vmem:[%s504 + $0x1b0] sm:%s497]
                  %615 = vst [vmem:[%s505 + $0xd8] sm:%s497] %v614
                  %v616 = vld [vmem:[%s504 + $0x1b8] sm:%s497]
                  %617 = vst [vmem:[%s505 + $0xdc] sm:%s497] %v616
                  %v618 = vld [vmem:[%s504 + $0x1c0] sm:%s497]
                  %619 = vst [vmem:[%s505 + $0xe0] sm:%s497] %v618
                  %v620 = vld [vmem:[%s504 + $0x1c8] sm:%s497]
                  %621 = vst [vmem:[%s505 + $0xe4] sm:%s497] %v620
                  %v622 = vld [vmem:[%s504 + $0x1d0] sm:%s497]
                  %623 = vst [vmem:[%s505 + $0xe8] sm:%s497] %v622
                  %v624 = vld [vmem:[%s504 + $0x1d8] sm:%s497]
                  %625 = vst [vmem:[%s505 + $0xec] sm:%s497] %v624
                  %v626 = vld [vmem:[%s504 + $0x1e0] sm:%s497]
                  %627 = vst [vmem:[%s505 + $0xf0] sm:%s497] %v626
                  %v628 = vld [vmem:[%s504 + $0x1e8] sm:%s497]
                  %629 = vst [vmem:[%s505 + $0xf4] sm:%s497] %v628
                  %v630 = vld [vmem:[%s504 + $0x1f0] sm:%s497]
                  %631 = vst [vmem:[%s505 + $0xf8] sm:%s497] %v630
                  %v632 = vld [vmem:[%s504 + $0x1f8] sm:%s497]
                  %633 = vst [vmem:[%s505 + $0xfc] sm:%s497] %v632
                  %v634 = vld [vmem:[%s504 + $0x200] sm:%s497]
                  %635 = vst [vmem:[%s505 + $0x100] sm:%s497] %v634
                  %v636 = vld [vmem:[%s504 + $0x208] sm:%s497]
                  %637 = vst [vmem:[%s505 + $0x104] sm:%s497] %v636
                  %v638 = vld [vmem:[%s504 + $0x210] sm:%s497]
                  %639 = vst [vmem:[%s505 + $0x108] sm:%s497] %v638
                  %v640 = vld [vmem:[%s504 + $0x218] sm:%s497]
                  %641 = vst [vmem:[%s505 + $0x10c] sm:%s497] %v640
                  %v642 = vld [vmem:[%s504 + $0x220] sm:%s497]
                  %643 = vst [vmem:[%s505 + $0x110] sm:%s497] %v642
                  %v644 = vld [vmem:[%s504 + $0x228] sm:%s497]
                  %645 = vst [vmem:[%s505 + $0x114] sm:%s497] %v644
                  %v646 = vld [vmem:[%s504 + $0x230] sm:%s497]
                  %647 = vst [vmem:[%s505 + $0x118] sm:%s497] %v646
                  %v648 = vld [vmem:[%s504 + $0x238] sm:%s497]
                  %649 = vst [vmem:[%s505 + $0x11c] sm:%s497] %v648
                  %v650 = vld [vmem:[%s504 + $0x240] sm:%s497]
                  %651 = vst [vmem:[%s505 + $0x120] sm:%s497] %v650
                  %v652 = vld [vmem:[%s504 + $0x248] sm:%s497]
                  %653 = vst [vmem:[%s505 + $0x124] sm:%s497] %v652
                  %v654 = vld [vmem:[%s504 + $0x250] sm:%s497]
                  %655 = vst [vmem:[%s505 + $0x128] sm:%s497] %v654
                  %v656 = vld [vmem:[%s504 + $0x258] sm:%s497]
                  %657 = vst [vmem:[%s505 + $0x12c] sm:%s497] %v656
                  %v658 = vld [vmem:[%s504 + $0x260] sm:%s497]
                  %659 = vst [vmem:[%s505 + $0x130] sm:%s497] %v658
                  %v660 = vld [vmem:[%s504 + $0x268] sm:%s497]
                  %661 = vst [vmem:[%s505 + $0x134] sm:%s497] %v660
                  %v662 = vld [vmem:[%s504 + $0x270] sm:%s497]
                  %663 = vst [vmem:[%s505 + $0x138] sm:%s497] %v662
                  %v664 = vld [vmem:[%s504 + $0x278] sm:%s497]
                  %665 = vst [vmem:[%s505 + $0x13c] sm:%s497] %v664
                  %v666 = vld [vmem:[%s504 + $0x280] sm:%s497]
                  %667 = vst [vmem:[%s505 + $0x140] sm:%s497] %v666
                  %v668 = vld [vmem:[%s504 + $0x288] sm:%s497]
                  %669 = vst [vmem:[%s505 + $0x144] sm:%s497] %v668
                  %v670 = vld [vmem:[%s504 + $0x290] sm:%s497]
                  %671 = vst [vmem:[%s505 + $0x148] sm:%s497] %v670
                  %v672 = vld [vmem:[%s504 + $0x298] sm:%s497]
                  %673 = vst [vmem:[%s505 + $0x14c] sm:%s497] %v672
                  %v674 = vld [vmem:[%s504 + $0x2a0] sm:%s497]
                  %675 = vst [vmem:[%s505 + $0x150] sm:%s497] %v674
                  %v676 = vld [vmem:[%s504 + $0x2a8] sm:%s497]
                  %677 = vst [vmem:[%s505 + $0x154] sm:%s497] %v676
                  %v678 = vld [vmem:[%s504 + $0x2b0] sm:%s497]
                  %679 = vst [vmem:[%s505 + $0x158] sm:%s497] %v678
                  %v680 = vld [vmem:[%s504 + $0x2b8] sm:%s497]
                  %681 = vst [vmem:[%s505 + $0x15c] sm:%s497] %v680
                  %v682 = vld [vmem:[%s504 + $0x2c0] sm:%s497]
                  %683 = vst [vmem:[%s505 + $0x160] sm:%s497] %v682
                  %v684 = vld [vmem:[%s504 + $0x2c8] sm:%s497]
                  %685 = vst [vmem:[%s505 + $0x164] sm:%s497] %v684
                  %v686 = vld [vmem:[%s504 + $0x2d0] sm:%s497]
                  %687 = vst [vmem:[%s505 + $0x168] sm:%s497] %v686
                  %v688 = vld [vmem:[%s504 + $0x2d8] sm:%s497]
                  %689 = vst [vmem:[%s505 + $0x16c] sm:%s497] %v688
                  %v690 = vld [vmem:[%s504 + $0x2e0] sm:%s497]
                  %691 = vst [vmem:[%s505 + $0x170] sm:%s497] %v690
                  %v692 = vld [vmem:[%s504 + $0x2e8] sm:%s497]
                  %693 = vst [vmem:[%s505 + $0x174] sm:%s497] %v692
                  %v694 = vld [vmem:[%s504 + $0x2f0] sm:%s497]
                  %695 = vst [vmem:[%s505 + $0x178] sm:%s497] %v694
                  %v696 = vld [vmem:[%s504 + $0x2f8] sm:%s497]
                  %697 = vst [vmem:[%s505 + $0x17c] sm:%s497] %v696
                  %v698 = vld [vmem:[%s504 + $0x300] sm:%s497]
                  %699 = vst [vmem:[%s505 + $0x180] sm:%s497] %v698
                  %v700 = vld [vmem:[%s504 + $0x308] sm:%s497]
                  %701 = vst [vmem:[%s505 + $0x184] sm:%s497] %v700
                  %v702 = vld [vmem:[%s504 + $0x310] sm:%s497]
                  %703 = vst [vmem:[%s505 + $0x188] sm:%s497] %v702
                  %v704 = vld [vmem:[%s504 + $0x318] sm:%s497]
                  %705 = vst [vmem:[%s505 + $0x18c] sm:%s497] %v704
                  %v706 = vld [vmem:[%s504 + $0x320] sm:%s497]
                  %707 = vst [vmem:[%s505 + $0x190] sm:%s497] %v706
                  %v708 = vld [vmem:[%s504 + $0x328] sm:%s497]
                  %709 = vst [vmem:[%s505 + $0x194] sm:%s497] %v708
                  %v710 = vld [vmem:[%s504 + $0x330] sm:%s497]
                  %711 = vst [vmem:[%s505 + $0x198] sm:%s497] %v710
                  %v712 = vld [vmem:[%s504 + $0x338] sm:%s497]
                  %713 = vst [vmem:[%s505 + $0x19c] sm:%s497] %v712
                  %v714 = vld [vmem:[%s504 + $0x340] sm:%s497]
                  %715 = vst [vmem:[%s505 + $0x1a0] sm:%s497] %v714
                  %v716 = vld [vmem:[%s504 + $0x348] sm:%s497]
                  %717 = vst [vmem:[%s505 + $0x1a4] sm:%s497] %v716
                  %v718 = vld [vmem:[%s504 + $0x350] sm:%s497]
                  %719 = vst [vmem:[%s505 + $0x1a8] sm:%s497] %v718
                  %v720 = vld [vmem:[%s504 + $0x358] sm:%s497]
                  %721 = vst [vmem:[%s505 + $0x1ac] sm:%s497] %v720
                  %v722 = vld [vmem:[%s504 + $0x360] sm:%s497]
                  %723 = vst [vmem:[%s505 + $0x1b0] sm:%s497] %v722
                  %v724 = vld [vmem:[%s504 + $0x368] sm:%s497]
                  %725 = vst [vmem:[%s505 + $0x1b4] sm:%s497] %v724
                  %v726 = vld [vmem:[%s504 + $0x370] sm:%s497]
                  %727 = vst [vmem:[%s505 + $0x1b8] sm:%s497] %v726
                  %v728 = vld [vmem:[%s504 + $0x378] sm:%s497]
                  %729 = vst [vmem:[%s505 + $0x1bc] sm:%s497] %v728
                  %v730 = vld [vmem:[%s504 + $0x380] sm:%s497]
                  %731 = vst [vmem:[%s505 + $0x1c0] sm:%s497] %v730
                  %v732 = vld [vmem:[%s504 + $0x388] sm:%s497]
                  %733 = vst [vmem:[%s505 + $0x1c4] sm:%s497] %v732
                  %v734 = vld [vmem:[%s504 + $0x390] sm:%s497]
                  %735 = vst [vmem:[%s505 + $0x1c8] sm:%s497] %v734
                  %v736 = vld [vmem:[%s504 + $0x398] sm:%s497]
                  %737 = vst [vmem:[%s505 + $0x1cc] sm:%s497] %v736
                  %v738 = vld [vmem:[%s504 + $0x3a0] sm:%s497]
                  %739 = vst [vmem:[%s505 + $0x1d0] sm:%s497] %v738
                  %v740 = vld [vmem:[%s504 + $0x3a8] sm:%s497]
                  %741 = vst [vmem:[%s505 + $0x1d4] sm:%s497] %v740
                  %v742 = vld [vmem:[%s504 + $0x3b0] sm:%s497]
                  %743 = vst [vmem:[%s505 + $0x1d8] sm:%s497] %v742
                  %v744 = vld [vmem:[%s504 + $0x3b8] sm:%s497]
                  %745 = vst [vmem:[%s505 + $0x1dc] sm:%s497] %v744
                  %v746 = vld [vmem:[%s504 + $0x3c0] sm:%s497]
                  %747 = vst [vmem:[%s505 + $0x1e0] sm:%s497] %v746
                  %v748 = vld [vmem:[%s504 + $0x3c8] sm:%s497]
                  %749 = vst [vmem:[%s505 + $0x1e4] sm:%s497] %v748
                  %v750 = vld [vmem:[%s504 + $0x3d0] sm:%s497]
                  %751 = vst [vmem:[%s505 + $0x1e8] sm:%s497] %v750
                  %v752 = vld [vmem:[%s504 + $0x3d8] sm:%s497]
                  %753 = vst [vmem:[%s505 + $0x1ec] sm:%s497] %v752
                  %v754 = vld [vmem:[%s504 + $0x3e0] sm:%s497]
                  %755 = vst [vmem:[%s505 + $0x1f0] sm:%s497] %v754
                  %v756 = vld [vmem:[%s504 + $0x3e8] sm:%s497]
                  %757 = vst [vmem:[%s505 + $0x1f4] sm:%s497] %v756
                  %v758 = vld [vmem:[%s504 + $0x3f0] sm:%s497]
                  %759 = vst [vmem:[%s505 + $0x1f8] sm:%s497] %v758
                  %v760 = vld [vmem:[%s504 + $0x3f8] sm:%s497]
                  %761 = vst [vmem:[%s505 + $0x1fc] sm:%s497] %v760
                  %v762 = vld [vmem:[%s504 + $0x400] sm:%s497]
                  %763 = vst [vmem:[%s505 + $0x200] sm:%s497] %v762
                  %v764 = vld [vmem:[%s504 + $0x408] sm:%s497]
                  %765 = vst [vmem:[%s505 + $0x204] sm:%s497] %v764
                  %v766 = vld [vmem:[%s504 + $0x410] sm:%s497]
                  %767 = vst [vmem:[%s505 + $0x208] sm:%s497] %v766
                  %v768 = vld [vmem:[%s504 + $0x418] sm:%s497]
                  %769 = vst [vmem:[%s505 + $0x20c] sm:%s497] %v768
                  %v770 = vld [vmem:[%s504 + $0x420] sm:%s497]
                  %771 = vst [vmem:[%s505 + $0x210] sm:%s497] %v770
                  %v772 = vld [vmem:[%s504 + $0x428] sm:%s497]
                  %773 = vst [vmem:[%s505 + $0x214] sm:%s497] %v772
                  %v774 = vld [vmem:[%s504 + $0x430] sm:%s497]
                  %775 = vst [vmem:[%s505 + $0x218] sm:%s497] %v774
                  %v776 = vld [vmem:[%s504 + $0x438] sm:%s497]
                  %777 = vst [vmem:[%s505 + $0x21c] sm:%s497] %v776
                  %v778 = vld [vmem:[%s504 + $0x440] sm:%s497]
                  %779 = vst [vmem:[%s505 + $0x220] sm:%s497] %v778
                  %v780 = vld [vmem:[%s504 + $0x448] sm:%s497]
                  %781 = vst [vmem:[%s505 + $0x224] sm:%s497] %v780
                  %v782 = vld [vmem:[%s504 + $0x450] sm:%s497]
                  %783 = vst [vmem:[%s505 + $0x228] sm:%s497] %v782
                  %v784 = vld [vmem:[%s504 + $0x458] sm:%s497]
                  %785 = vst [vmem:[%s505 + $0x22c] sm:%s497] %v784
                  %v786 = vld [vmem:[%s504 + $0x460] sm:%s497]
                  %787 = vst [vmem:[%s505 + $0x230] sm:%s497] %v786
                  %v788 = vld [vmem:[%s504 + $0x468] sm:%s497]
                  %789 = vst [vmem:[%s505 + $0x234] sm:%s497] %v788
                  %v790 = vld [vmem:[%s504 + $0x470] sm:%s497]
                  %791 = vst [vmem:[%s505 + $0x238] sm:%s497] %v790
                  %v792 = vld [vmem:[%s504 + $0x478] sm:%s497]
                  %793 = vst [vmem:[%s505 + $0x23c] sm:%s497] %v792
                $region59: #{frequency_discriminator_forward.12} parent=46 // loop_footer
                  %s503 = sadd.s32 1, %s499
                $region60: #{frequency_discriminator_forward.12} parent=46 // loop_footer_branch
                  %498 = sbr.rel target = $region56
                $region61: #{frequency_discriminator_forward.12} parent=46 // loop_exit
                  _
              $region47: #{frequency_discriminator_forward.12} parent=31 // pred_fallthru
                _
            $region32: #{frequency_discriminator_forward.12} parent=27 // pred_fallthru
              _
            // Predicated region
            $region33: #{frequency_discriminator_forward.12} parent=27 // pred_check
              _
            $region34: #{frequency_discriminator_forward.12} parent=27 // pred_check_branch
              %187 = sbr.rel (0) target = $region36
            $region35: #{frequency_discriminator_forward.12} parent=27 // pred_region
              %s189 = ssub.s32 16, 1
              loop: start=0, step=1, limit=1
              $region37: #{frequency_discriminator_forward.12} parent=35 // loop_pre_header
                _
              $region38: #{frequency_discriminator_forward.12} parent=35 // loop_header
                %s191 = sphi 0, %s195
                %p192 = scmp.ge.s32.totalorder %s191, 1
                %s196 = sphi %s181, %s181
                %s197 = sphi %s176, %s176
              $region39: #{frequency_discriminator_forward.12} parent=35 // loop_header_branch
                %194 = sbr.rel (%p192) target = $region43
              $region40: #{frequency_discriminator_forward.12} parent=35 // loop_body
                %v198 = vld [vmem:[%s196] sm:%s189]
                %199 = vst [vmem:[%s197] sm:%s189] %v198
                %v200 = vld [vmem:[%s196 + $0x8] sm:%s189]
                %201 = vst [vmem:[%s197 + $0x4] sm:%s189] %v200
                %v202 = vld [vmem:[%s196 + $0x10] sm:%s189]
                %203 = vst [vmem:[%s197 + $0x8] sm:%s189] %v202
                %v204 = vld [vmem:[%s196 + $0x18] sm:%s189]
                %205 = vst [vmem:[%s197 + $0xc] sm:%s189] %v204
                %v206 = vld [vmem:[%s196 + $0x20] sm:%s189]
                %207 = vst [vmem:[%s197 + $0x10] sm:%s189] %v206
                %v208 = vld [vmem:[%s196 + $0x28] sm:%s189]
                %209 = vst [vmem:[%s197 + $0x14] sm:%s189] %v208
                %v210 = vld [vmem:[%s196 + $0x30] sm:%s189]
                %211 = vst [vmem:[%s197 + $0x18] sm:%s189] %v210
                %v212 = vld [vmem:[%s196 + $0x38] sm:%s189]
                %213 = vst [vmem:[%s197 + $0x1c] sm:%s189] %v212
                %v214 = vld [vmem:[%s196 + $0x40] sm:%s189]
                %215 = vst [vmem:[%s197 + $0x20] sm:%s189] %v214
                %v216 = vld [vmem:[%s196 + $0x48] sm:%s189]
                %217 = vst [vmem:[%s197 + $0x24] sm:%s189] %v216
                %v218 = vld [vmem:[%s196 + $0x50] sm:%s189]
                %219 = vst [vmem:[%s197 + $0x28] sm:%s189] %v218
                %v220 = vld [vmem:[%s196 + $0x58] sm:%s189]
                %221 = vst [vmem:[%s197 + $0x2c] sm:%s189] %v220
                %v222 = vld [vmem:[%s196 + $0x60] sm:%s189]
                %223 = vst [vmem:[%s197 + $0x30] sm:%s189] %v222
                %v224 = vld [vmem:[%s196 + $0x68] sm:%s189]
                %225 = vst [vmem:[%s197 + $0x34] sm:%s189] %v224
                %v226 = vld [vmem:[%s196 + $0x70] sm:%s189]
                %227 = vst [vmem:[%s197 + $0x38] sm:%s189] %v226
                %v228 = vld [vmem:[%s196 + $0x78] sm:%s189]
                %229 = vst [vmem:[%s197 + $0x3c] sm:%s189] %v228
                %v230 = vld [vmem:[%s196 + $0x80] sm:%s189]
                %231 = vst [vmem:[%s197 + $0x40] sm:%s189] %v230
                %v232 = vld [vmem:[%s196 + $0x88] sm:%s189]
                %233 = vst [vmem:[%s197 + $0x44] sm:%s189] %v232
                %v234 = vld [vmem:[%s196 + $0x90] sm:%s189]
                %235 = vst [vmem:[%s197 + $0x48] sm:%s189] %v234
                %v236 = vld [vmem:[%s196 + $0x98] sm:%s189]
                %237 = vst [vmem:[%s197 + $0x4c] sm:%s189] %v236
                %v238 = vld [vmem:[%s196 + $0xa0] sm:%s189]
                %239 = vst [vmem:[%s197 + $0x50] sm:%s189] %v238
                %v240 = vld [vmem:[%s196 + $0xa8] sm:%s189]
                %241 = vst [vmem:[%s197 + $0x54] sm:%s189] %v240
                %v242 = vld [vmem:[%s196 + $0xb0] sm:%s189]
                %243 = vst [vmem:[%s197 + $0x58] sm:%s189] %v242
                %v244 = vld [vmem:[%s196 + $0xb8] sm:%s189]
                %245 = vst [vmem:[%s197 + $0x5c] sm:%s189] %v244
                %v246 = vld [vmem:[%s196 + $0xc0] sm:%s189]
                %247 = vst [vmem:[%s197 + $0x60] sm:%s189] %v246
                %v248 = vld [vmem:[%s196 + $0xc8] sm:%s189]
                %249 = vst [vmem:[%s197 + $0x64] sm:%s189] %v248
                %v250 = vld [vmem:[%s196 + $0xd0] sm:%s189]
                %251 = vst [vmem:[%s197 + $0x68] sm:%s189] %v250
                %v252 = vld [vmem:[%s196 + $0xd8] sm:%s189]
                %253 = vst [vmem:[%s197 + $0x6c] sm:%s189] %v252
                %v254 = vld [vmem:[%s196 + $0xe0] sm:%s189]
                %255 = vst [vmem:[%s197 + $0x70] sm:%s189] %v254
                %v256 = vld [vmem:[%s196 + $0xe8] sm:%s189]
                %257 = vst [vmem:[%s197 + $0x74] sm:%s189] %v256
                %v258 = vld [vmem:[%s196 + $0xf0] sm:%s189]
                %259 = vst [vmem:[%s197 + $0x78] sm:%s189] %v258
                %v260 = vld [vmem:[%s196 + $0xf8] sm:%s189]
                %261 = vst [vmem:[%s197 + $0x7c] sm:%s189] %v260
                %v262 = vld [vmem:[%s196 + $0x100] sm:%s189]
                %263 = vst [vmem:[%s197 + $0x80] sm:%s189] %v262
                %v264 = vld [vmem:[%s196 + $0x108] sm:%s189]
                %265 = vst [vmem:[%s197 + $0x84] sm:%s189] %v264
                %v266 = vld [vmem:[%s196 + $0x110] sm:%s189]
                %267 = vst [vmem:[%s197 + $0x88] sm:%s189] %v266
                %v268 = vld [vmem:[%s196 + $0x118] sm:%s189]
                %269 = vst [vmem:[%s197 + $0x8c] sm:%s189] %v268
                %v270 = vld [vmem:[%s196 + $0x120] sm:%s189]
                %271 = vst [vmem:[%s197 + $0x90] sm:%s189] %v270
                %v272 = vld [vmem:[%s196 + $0x128] sm:%s189]
                %273 = vst [vmem:[%s197 + $0x94] sm:%s189] %v272
                %v274 = vld [vmem:[%s196 + $0x130] sm:%s189]
                %275 = vst [vmem:[%s197 + $0x98] sm:%s189] %v274
                %v276 = vld [vmem:[%s196 + $0x138] sm:%s189]
                %277 = vst [vmem:[%s197 + $0x9c] sm:%s189] %v276
                %v278 = vld [vmem:[%s196 + $0x140] sm:%s189]
                %279 = vst [vmem:[%s197 + $0xa0] sm:%s189] %v278
                %v280 = vld [vmem:[%s196 + $0x148] sm:%s189]
                %281 = vst [vmem:[%s197 + $0xa4] sm:%s189] %v280
                %v282 = vld [vmem:[%s196 + $0x150] sm:%s189]
                %283 = vst [vmem:[%s197 + $0xa8] sm:%s189] %v282
                %v284 = vld [vmem:[%s196 + $0x158] sm:%s189]
                %285 = vst [vmem:[%s197 + $0xac] sm:%s189] %v284
                %v286 = vld [vmem:[%s196 + $0x160] sm:%s189]
                %287 = vst [vmem:[%s197 + $0xb0] sm:%s189] %v286
                %v288 = vld [vmem:[%s196 + $0x168] sm:%s189]
                %289 = vst [vmem:[%s197 + $0xb4] sm:%s189] %v288
                %v290 = vld [vmem:[%s196 + $0x170] sm:%s189]
                %291 = vst [vmem:[%s197 + $0xb8] sm:%s189] %v290
                %v292 = vld [vmem:[%s196 + $0x178] sm:%s189]
                %293 = vst [vmem:[%s197 + $0xbc] sm:%s189] %v292
                %v294 = vld [vmem:[%s196 + $0x180] sm:%s189]
                %295 = vst [vmem:[%s197 + $0xc0] sm:%s189] %v294
                %v296 = vld [vmem:[%s196 + $0x188] sm:%s189]
                %297 = vst [vmem:[%s197 + $0xc4] sm:%s189] %v296
                %v298 = vld [vmem:[%s196 + $0x190] sm:%s189]
                %299 = vst [vmem:[%s197 + $0xc8] sm:%s189] %v298
                %v300 = vld [vmem:[%s196 + $0x198] sm:%s189]
                %301 = vst [vmem:[%s197 + $0xcc] sm:%s189] %v300
                %v302 = vld [vmem:[%s196 + $0x1a0] sm:%s189]
                %303 = vst [vmem:[%s197 + $0xd0] sm:%s189] %v302
                %v304 = vld [vmem:[%s196 + $0x1a8] sm:%s189]
                %305 = vst [vmem:[%s197 + $0xd4] sm:%s189] %v304
                %v306 = vld [vmem:[%s196 + $0x1b0] sm:%s189]
                %307 = vst [vmem:[%s197 + $0xd8] sm:%s189] %v306
                %v308 = vld [vmem:[%s196 + $0x1b8] sm:%s189]
                %309 = vst [vmem:[%s197 + $0xdc] sm:%s189] %v308
                %v310 = vld [vmem:[%s196 + $0x1c0] sm:%s189]
                %311 = vst [vmem:[%s197 + $0xe0] sm:%s189] %v310
                %v312 = vld [vmem:[%s196 + $0x1c8] sm:%s189]
                %313 = vst [vmem:[%s197 + $0xe4] sm:%s189] %v312
                %v314 = vld [vmem:[%s196 + $0x1d0] sm:%s189]
                %315 = vst [vmem:[%s197 + $0xe8] sm:%s189] %v314
                %v316 = vld [vmem:[%s196 + $0x1d8] sm:%s189]
                %317 = vst [vmem:[%s197 + $0xec] sm:%s189] %v316
                %v318 = vld [vmem:[%s196 + $0x1e0] sm:%s189]
                %319 = vst [vmem:[%s197 + $0xf0] sm:%s189] %v318
                %v320 = vld [vmem:[%s196 + $0x1e8] sm:%s189]
                %321 = vst [vmem:[%s197 + $0xf4] sm:%s189] %v320
                %v322 = vld [vmem:[%s196 + $0x1f0] sm:%s189]
                %323 = vst [vmem:[%s197 + $0xf8] sm:%s189] %v322
                %v324 = vld [vmem:[%s196 + $0x1f8] sm:%s189]
                %325 = vst [vmem:[%s197 + $0xfc] sm:%s189] %v324
                %v326 = vld [vmem:[%s196 + $0x200] sm:%s189]
                %327 = vst [vmem:[%s197 + $0x100] sm:%s189] %v326
                %v328 = vld [vmem:[%s196 + $0x208] sm:%s189]
                %329 = vst [vmem:[%s197 + $0x104] sm:%s189] %v328
                %v330 = vld [vmem:[%s196 + $0x210] sm:%s189]
                %331 = vst [vmem:[%s197 + $0x108] sm:%s189] %v330
                %v332 = vld [vmem:[%s196 + $0x218] sm:%s189]
                %333 = vst [vmem:[%s197 + $0x10c] sm:%s189] %v332
                %v334 = vld [vmem:[%s196 + $0x220] sm:%s189]
                %335 = vst [vmem:[%s197 + $0x110] sm:%s189] %v334
                %v336 = vld [vmem:[%s196 + $0x228] sm:%s189]
                %337 = vst [vmem:[%s197 + $0x114] sm:%s189] %v336
                %v338 = vld [vmem:[%s196 + $0x230] sm:%s189]
                %339 = vst [vmem:[%s197 + $0x118] sm:%s189] %v338
                %v340 = vld [vmem:[%s196 + $0x238] sm:%s189]
                %341 = vst [vmem:[%s197 + $0x11c] sm:%s189] %v340
                %v342 = vld [vmem:[%s196 + $0x240] sm:%s189]
                %343 = vst [vmem:[%s197 + $0x120] sm:%s189] %v342
                %v344 = vld [vmem:[%s196 + $0x248] sm:%s189]
                %345 = vst [vmem:[%s197 + $0x124] sm:%s189] %v344
                %v346 = vld [vmem:[%s196 + $0x250] sm:%s189]
                %347 = vst [vmem:[%s197 + $0x128] sm:%s189] %v346
                %v348 = vld [vmem:[%s196 + $0x258] sm:%s189]
                %349 = vst [vmem:[%s197 + $0x12c] sm:%s189] %v348
                %v350 = vld [vmem:[%s196 + $0x260] sm:%s189]
                %351 = vst [vmem:[%s197 + $0x130] sm:%s189] %v350
                %v352 = vld [vmem:[%s196 + $0x268] sm:%s189]
                %353 = vst [vmem:[%s197 + $0x134] sm:%s189] %v352
                %v354 = vld [vmem:[%s196 + $0x270] sm:%s189]
                %355 = vst [vmem:[%s197 + $0x138] sm:%s189] %v354
                %v356 = vld [vmem:[%s196 + $0x278] sm:%s189]
                %357 = vst [vmem:[%s197 + $0x13c] sm:%s189] %v356
                %v358 = vld [vmem:[%s196 + $0x280] sm:%s189]
                %359 = vst [vmem:[%s197 + $0x140] sm:%s189] %v358
                %v360 = vld [vmem:[%s196 + $0x288] sm:%s189]
                %361 = vst [vmem:[%s197 + $0x144] sm:%s189] %v360
                %v362 = vld [vmem:[%s196 + $0x290] sm:%s189]
                %363 = vst [vmem:[%s197 + $0x148] sm:%s189] %v362
                %v364 = vld [vmem:[%s196 + $0x298] sm:%s189]
                %365 = vst [vmem:[%s197 + $0x14c] sm:%s189] %v364
                %v366 = vld [vmem:[%s196 + $0x2a0] sm:%s189]
                %367 = vst [vmem:[%s197 + $0x150] sm:%s189] %v366
                %v368 = vld [vmem:[%s196 + $0x2a8] sm:%s189]
                %369 = vst [vmem:[%s197 + $0x154] sm:%s189] %v368
                %v370 = vld [vmem:[%s196 + $0x2b0] sm:%s189]
                %371 = vst [vmem:[%s197 + $0x158] sm:%s189] %v370
                %v372 = vld [vmem:[%s196 + $0x2b8] sm:%s189]
                %373 = vst [vmem:[%s197 + $0x15c] sm:%s189] %v372
                %v374 = vld [vmem:[%s196 + $0x2c0] sm:%s189]
                %375 = vst [vmem:[%s197 + $0x160] sm:%s189] %v374
                %v376 = vld [vmem:[%s196 + $0x2c8] sm:%s189]
                %377 = vst [vmem:[%s197 + $0x164] sm:%s189] %v376
                %v378 = vld [vmem:[%s196 + $0x2d0] sm:%s189]
                %379 = vst [vmem:[%s197 + $0x168] sm:%s189] %v378
                %v380 = vld [vmem:[%s196 + $0x2d8] sm:%s189]
                %381 = vst [vmem:[%s197 + $0x16c] sm:%s189] %v380
                %v382 = vld [vmem:[%s196 + $0x2e0] sm:%s189]
                %383 = vst [vmem:[%s197 + $0x170] sm:%s189] %v382
                %v384 = vld [vmem:[%s196 + $0x2e8] sm:%s189]
                %385 = vst [vmem:[%s197 + $0x174] sm:%s189] %v384
                %v386 = vld [vmem:[%s196 + $0x2f0] sm:%s189]
                %387 = vst [vmem:[%s197 + $0x178] sm:%s189] %v386
                %v388 = vld [vmem:[%s196 + $0x2f8] sm:%s189]
                %389 = vst [vmem:[%s197 + $0x17c] sm:%s189] %v388
                %v390 = vld [vmem:[%s196 + $0x300] sm:%s189]
                %391 = vst [vmem:[%s197 + $0x180] sm:%s189] %v390
                %v392 = vld [vmem:[%s196 + $0x308] sm:%s189]
                %393 = vst [vmem:[%s197 + $0x184] sm:%s189] %v392
                %v394 = vld [vmem:[%s196 + $0x310] sm:%s189]
                %395 = vst [vmem:[%s197 + $0x188] sm:%s189] %v394
                %v396 = vld [vmem:[%s196 + $0x318] sm:%s189]
                %397 = vst [vmem:[%s197 + $0x18c] sm:%s189] %v396
                %v398 = vld [vmem:[%s196 + $0x320] sm:%s189]
                %399 = vst [vmem:[%s197 + $0x190] sm:%s189] %v398
                %v400 = vld [vmem:[%s196 + $0x328] sm:%s189]
                %401 = vst [vmem:[%s197 + $0x194] sm:%s189] %v400
                %v402 = vld [vmem:[%s196 + $0x330] sm:%s189]
                %403 = vst [vmem:[%s197 + $0x198] sm:%s189] %v402
                %v404 = vld [vmem:[%s196 + $0x338] sm:%s189]
                %405 = vst [vmem:[%s197 + $0x19c] sm:%s189] %v404
                %v406 = vld [vmem:[%s196 + $0x340] sm:%s189]
                %407 = vst [vmem:[%s197 + $0x1a0] sm:%s189] %v406
                %v408 = vld [vmem:[%s196 + $0x348] sm:%s189]
                %409 = vst [vmem:[%s197 + $0x1a4] sm:%s189] %v408
                %v410 = vld [vmem:[%s196 + $0x350] sm:%s189]
                %411 = vst [vmem:[%s197 + $0x1a8] sm:%s189] %v410
                %v412 = vld [vmem:[%s196 + $0x358] sm:%s189]
                %413 = vst [vmem:[%s197 + $0x1ac] sm:%s189] %v412
                %v414 = vld [vmem:[%s196 + $0x360] sm:%s189]
                %415 = vst [vmem:[%s197 + $0x1b0] sm:%s189] %v414
                %v416 = vld [vmem:[%s196 + $0x368] sm:%s189]
                %417 = vst [vmem:[%s197 + $0x1b4] sm:%s189] %v416
                %v418 = vld [vmem:[%s196 + $0x370] sm:%s189]
                %419 = vst [vmem:[%s197 + $0x1b8] sm:%s189] %v418
                %v420 = vld [vmem:[%s196 + $0x378] sm:%s189]
                %421 = vst [vmem:[%s197 + $0x1bc] sm:%s189] %v420
                %v422 = vld [vmem:[%s196 + $0x380] sm:%s189]
                %423 = vst [vmem:[%s197 + $0x1c0] sm:%s189] %v422
                %v424 = vld [vmem:[%s196 + $0x388] sm:%s189]
                %425 = vst [vmem:[%s197 + $0x1c4] sm:%s189] %v424
                %v426 = vld [vmem:[%s196 + $0x390] sm:%s189]
                %427 = vst [vmem:[%s197 + $0x1c8] sm:%s189] %v426
                %v428 = vld [vmem:[%s196 + $0x398] sm:%s189]
                %429 = vst [vmem:[%s197 + $0x1cc] sm:%s189] %v428
                %v430 = vld [vmem:[%s196 + $0x3a0] sm:%s189]
                %431 = vst [vmem:[%s197 + $0x1d0] sm:%s189] %v430
                %v432 = vld [vmem:[%s196 + $0x3a8] sm:%s189]
                %433 = vst [vmem:[%s197 + $0x1d4] sm:%s189] %v432
                %v434 = vld [vmem:[%s196 + $0x3b0] sm:%s189]
                %435 = vst [vmem:[%s197 + $0x1d8] sm:%s189] %v434
                %v436 = vld [vmem:[%s196 + $0x3b8] sm:%s189]
                %437 = vst [vmem:[%s197 + $0x1dc] sm:%s189] %v436
                %v438 = vld [vmem:[%s196 + $0x3c0] sm:%s189]
                %439 = vst [vmem:[%s197 + $0x1e0] sm:%s189] %v438
                %v440 = vld [vmem:[%s196 + $0x3c8] sm:%s189]
                %441 = vst [vmem:[%s197 + $0x1e4] sm:%s189] %v440
                %v442 = vld [vmem:[%s196 + $0x3d0] sm:%s189]
                %443 = vst [vmem:[%s197 + $0x1e8] sm:%s189] %v442
                %v444 = vld [vmem:[%s196 + $0x3d8] sm:%s189]
                %445 = vst [vmem:[%s197 + $0x1ec] sm:%s189] %v444
                %v446 = vld [vmem:[%s196 + $0x3e0] sm:%s189]
                %447 = vst [vmem:[%s197 + $0x1f0] sm:%s189] %v446
                %v448 = vld [vmem:[%s196 + $0x3e8] sm:%s189]
                %449 = vst [vmem:[%s197 + $0x1f4] sm:%s189] %v448
                %v450 = vld [vmem:[%s196 + $0x3f0] sm:%s189]
                %451 = vst [vmem:[%s197 + $0x1f8] sm:%s189] %v450
                %v452 = vld [vmem:[%s196 + $0x3f8] sm:%s189]
                %453 = vst [vmem:[%s197 + $0x1fc] sm:%s189] %v452
                %v454 = vld [vmem:[%s196 + $0x400] sm:%s189]
                %455 = vst [vmem:[%s197 + $0x200] sm:%s189] %v454
                %v456 = vld [vmem:[%s196 + $0x408] sm:%s189]
                %457 = vst [vmem:[%s197 + $0x204] sm:%s189] %v456
                %v458 = vld [vmem:[%s196 + $0x410] sm:%s189]
                %459 = vst [vmem:[%s197 + $0x208] sm:%s189] %v458
                %v460 = vld [vmem:[%s196 + $0x418] sm:%s189]
                %461 = vst [vmem:[%s197 + $0x20c] sm:%s189] %v460
                %v462 = vld [vmem:[%s196 + $0x420] sm:%s189]
                %463 = vst [vmem:[%s197 + $0x210] sm:%s189] %v462
                %v464 = vld [vmem:[%s196 + $0x428] sm:%s189]
                %465 = vst [vmem:[%s197 + $0x214] sm:%s189] %v464
                %v466 = vld [vmem:[%s196 + $0x430] sm:%s189]
                %467 = vst [vmem:[%s197 + $0x218] sm:%s189] %v466
                %v468 = vld [vmem:[%s196 + $0x438] sm:%s189]
                %469 = vst [vmem:[%s197 + $0x21c] sm:%s189] %v468
                %v470 = vld [vmem:[%s196 + $0x440] sm:%s189]
                %471 = vst [vmem:[%s197 + $0x220] sm:%s189] %v470
                %v472 = vld [vmem:[%s196 + $0x448] sm:%s189]
                %473 = vst [vmem:[%s197 + $0x224] sm:%s189] %v472
                %v474 = vld [vmem:[%s196 + $0x450] sm:%s189]
                %475 = vst [vmem:[%s197 + $0x228] sm:%s189] %v474
                %v476 = vld [vmem:[%s196 + $0x458] sm:%s189]
                %477 = vst [vmem:[%s197 + $0x22c] sm:%s189] %v476
                %v478 = vld [vmem:[%s196 + $0x460] sm:%s189]
                %479 = vst [vmem:[%s197 + $0x230] sm:%s189] %v478
                %v480 = vld [vmem:[%s196 + $0x468] sm:%s189]
                %481 = vst [vmem:[%s197 + $0x234] sm:%s189] %v480
                %v482 = vld [vmem:[%s196 + $0x470] sm:%s189]
                %483 = vst [vmem:[%s197 + $0x238] sm:%s189] %v482
                %v484 = vld [vmem:[%s196 + $0x478] sm:%s189]
                %485 = vst [vmem:[%s197 + $0x23c] sm:%s189] %v484
              $region41: #{frequency_discriminator_forward.12} parent=35 // loop_footer
                %s195 = sadd.s32 1, %s191
              $region42: #{frequency_discriminator_forward.12} parent=35 // loop_footer_branch
                %190 = sbr.rel target = $region38
              $region43: #{frequency_discriminator_forward.12} parent=35 // loop_exit
                _
            $region36: #{frequency_discriminator_forward.12} parent=27 // pred_fallthru
              _
          $region28: #{frequency_discriminator_forward.12} parent=23 // pred_fallthru
            _
          %794 = vnop
        $region24: #{frequency_discriminator_forward.12} parent=19 // pred_fallthru
          _
        // Predicated region
        $region62: #{frequency_discriminator_forward.12} parent=19 // pred_check
          %p795 = pneg %p104
        $region63: #{frequency_discriminator_forward.12} parent=19 // pred_check_branch
          %797 = sbr.rel (%p795) target = $region65
        $region64: #{frequency_discriminator_forward.12} parent=19 // pred_region
          %p798 = scmp.lt.s32.totalorder %s17, 1
          %s799 = scalar_select %p798, %s17, 1
          %s800 = scalar_lea.vmem %s2, %s799
        $region65: #{frequency_discriminator_forward.12} parent=19 // pred_fallthru
          _
      $region20: #{frequency_discriminator_forward.12} parent=5 // pred_fallthru
        _
      %p801 = scmp.le.s32.totalorder 1, %s9
      %p802 = scmp.lt.s32.totalorder %s9, 3
      %p803 = pnand %p801, %p802
      %p804 = pneg %p803
      // Predicated region
      $region66: #{frequency_discriminator_forward.12} parent=5 // pred_check
        _
      $region67: #{frequency_discriminator_forward.12} parent=5 // pred_check_branch
        %806 = sbr.rel (%p803) target = $region69
      $region68: #{frequency_discriminator_forward.12} parent=5 // pred_region
        %s807 = ssub.s32 %s9, 1
        %s808 = sand.u32 %s71, 1
        %s809 = sand.u32 %s71, 1
        %s810 = smul.addr %s809, 576
        %s811 = scalar_lea.vmem [#allocation3], %s810
        // Predicated region
        $region70: #{frequency_discriminator_forward.12} parent=68 // pred_check
          %p812 = pneg %p84
        $region71: #{frequency_discriminator_forward.12} parent=68 // pred_check_branch
          %814 = sbr.rel (%p812) target = $region73
        $region72: #{frequency_discriminator_forward.12} parent=68 // pred_region
          _
        $region73: #{frequency_discriminator_forward.12} parent=68 // pred_fallthru
          _
        %s815 = smul.u32 9, %s21
        %p816 = scmp.lt.s32.totalorder %s19, 0
        %s817 = scalar_select %p816, %s19, 0
        %p818 = scmp.lt.s32.totalorder %s815, 8
        %s819 = scalar_select %p818, %s815, 8
        %s820 = smul.addr %s817, 9
        %s821 = sadd.s32 %s819, %s820
        %s822 = smul.addr %s821, 4
        %s823 = scalar_lea.vmem %s0, %s822
        %p824 = pneg %p56
        %p825 = pneg %p53
        %s826 = sand.u32 %s71, 1
        %s827 = sand.u32 %s71, 1
        %s828 = smul.addr %s827, 576
        %s829 = scalar_lea.vmem [#allocation3], %s828
        %p830 = pneg %p84
        %p831 = pneg %p81
        %p832 = scmp.lt.s32.totalorder %s20, 1
        %s833 = scalar_select %p832, %s20, 1
        %s834 = scalar_lea.vmem %s2, %s833
        %p835 = pneg %p110
        %p836 = pneg %p107
        %p837 = pneg %p138
        %p838 = pneg %p135
        %p839 = scmp.lt.s32.totalorder %s19, 0
        %s840 = scalar_select %p839, %s19, 0
        %p841 = scmp.lt.s32.totalorder %s20, 1
        %s842 = scalar_select %p841, %s20, 1
        %s843 = smul.addr %s840, 2
        %s844 = sadd.s32 %s842, %s843
        %s845 = smul.addr %s844, 4
        %s846 = scalar_lea.vmem %s3, %s845
        %s847 = smul.u32 9, %s21
        %p848 = scmp.lt.s32.totalorder %s19, 0
        %s849 = scalar_select %p848, %s19, 0
        %p850 = scmp.lt.s32.totalorder %s847, 8
        %s851 = scalar_select %p850, %s847, 8
        %s852 = smul.addr %s849, 9
        %s853 = sadd.s32 %s851, %s852
        %s854 = smul.addr %s853, 4
        %s855 = scalar_lea.vmem %s0, %s854
        %s856 = smul.u32 9, %s21
        %s857 = smul.u32 144, %s21
        %p858 = scmp.lt.s32.totalorder %s20, 1
        %s859 = scalar_select %p858, %s20, 1
        %s860 = scalar_lea.vmem %s2, %s859
        %p861 = scmp.lt.s32.totalorder %s19, 0
        %s862 = scalar_select %p861, %s19, 0
        %p863 = scmp.lt.s32.totalorder %s20, 1
        %s864 = scalar_select %p863, %s20, 1
        %s865 = smul.addr %s862, 2
        %s866 = sadd.s32 %s864, %s865
        %s867 = smul.addr %s866, 4
        %s868 = scalar_lea.vmem %s3, %s867
        %p869 = scmp.eq.s32.totalorder %s21, 0
        // Predicated region
        $region74: #{frequency_discriminator_forward.12} parent=68 // pred_check
          %p870 = pneg %p869
        $region75: #{frequency_discriminator_forward.12} parent=68 // pred_check_branch
          %872 = sbr.rel (%p870) target = $region77
        $region76: #{frequency_discriminator_forward.12} parent=68 // pred_region
          %v873 = vld [vmem:[%s860] sm:$0x1]
          %v875 = vperm.slane %v873, 0
          %877 = vst [vmem:[#allocation2] sm:$0xff] %v875
        $region77: #{frequency_discriminator_forward.12} parent=68 // pred_fallthru
          _
        %v878 = vld [vmem:[#allocation2] sm:$0xff]
        %v879 = vld [vmem:[%s855] sm:$0xff]
        %v880 = vld [vmem:[%s855 + $0x8] sm:$0xff]
        %v881 = vld [vmem:[%s855 + $0x10] sm:$0xff]
        %v882 = vld [vmem:[%s855 + $0x18] sm:$0xff]
        %v883 = vld [vmem:[%s855 + $0x20] sm:$0xf]
        %v884 = vld [vmem:[%s811] sm:$0xf]
        %v885 = vld [vmem:[%s811 + $0x4] sm:$0xf]
        %v886 = vld [vmem:[%s811 + $0x8] sm:$0xf]
        %v887 = vld [vmem:[%s811 + $0xc] sm:$0xf]
        %v888 = vld [vmem:[%s811 + $0x10] sm:$0xf]
        %v889 = vld [vmem:[%s811 + $0x14] sm:$0xf]
        %v890 = vld [vmem:[%s811 + $0x18] sm:$0xf]
        %v891 = vld [vmem:[%s811 + $0x1c] sm:$0xf]
        %v892 = vld [vmem:[%s811 + $0x20] sm:$0xf]
        %v893 = vld [vmem:[%s811 + $0x24] sm:$0xf]
        %v894 = vld [vmem:[%s811 + $0x28] sm:$0xf]
        %v895 = vld [vmem:[%s811 + $0x2c] sm:$0xf]
        %v896 = vld [vmem:[%s811 + $0x30] sm:$0xf]
        %v897 = vld [vmem:[%s811 + $0x34] sm:$0xf]
        %v898 = vld [vmem:[%s811 + $0x38] sm:$0xf]
        %v899 = vld [vmem:[%s811 + $0x3c] sm:$0xf]
        %v900 = vld [vmem:[%s811 + $0x40] sm:$0xf]
        %v901 = vld [vmem:[%s811 + $0x44] sm:$0xf]
        %v902 = vld [vmem:[%s811 + $0x48] sm:$0xf]
        %v903 = vld [vmem:[%s811 + $0x4c] sm:$0xf]
        %v904 = vld [vmem:[%s811 + $0x50] sm:$0xf]
        %v905 = vld [vmem:[%s811 + $0x54] sm:$0xf]
        %v906 = vld [vmem:[%s811 + $0x58] sm:$0xf]
        %v907 = vld [vmem:[%s811 + $0x5c] sm:$0xf]
        %v908 = vld [vmem:[%s811 + $0x60] sm:$0xf]
        %v909 = vld [vmem:[%s811 + $0x64] sm:$0xf]
        %v910 = vld [vmem:[%s811 + $0x68] sm:$0xf]
        %v911 = vld [vmem:[%s811 + $0x6c] sm:$0xf]
        %v912 = vld [vmem:[%s811 + $0x70] sm:$0xf]
        %v913 = vld [vmem:[%s811 + $0x74] sm:$0xf]
        %v914 = vld [vmem:[%s811 + $0x78] sm:$0xf]
        %v915 = vld [vmem:[%s811 + $0x7c] sm:$0xf]
        %v916 = vld [vmem:[%s811 + $0x80] sm:$0xf]
        %v917 = vld [vmem:[%s811 + $0x84] sm:$0xf]
        %v918 = vld [vmem:[%s811 + $0x88] sm:$0xf]
        %v919 = vld [vmem:[%s811 + $0x8c] sm:$0xf]
        %v920 = vld [vmem:[%s811 + $0x90] sm:$0xf]
        %v921 = vld [vmem:[%s811 + $0x94] sm:$0xf]
        %v922 = vld [vmem:[%s811 + $0x98] sm:$0xf]
        %v923 = vld [vmem:[%s811 + $0x9c] sm:$0xf]
        %v924 = vld [vmem:[%s811 + $0xa0] sm:$0xf]
        %v925 = vld [vmem:[%s811 + $0xa4] sm:$0xf]
        %v926 = vld [vmem:[%s811 + $0xa8] sm:$0xf]
        %v927 = vld [vmem:[%s811 + $0xac] sm:$0xf]
        %v928 = vld [vmem:[%s811 + $0xb0] sm:$0xf]
        %v929 = vld [vmem:[%s811 + $0xb4] sm:$0xf]
        %v930 = vld [vmem:[%s811 + $0xb8] sm:$0xf]
        %v931 = vld [vmem:[%s811 + $0xbc] sm:$0xf]
        %v932 = vld [vmem:[%s811 + $0xc0] sm:$0xf]
        %v933 = vld [vmem:[%s811 + $0xc4] sm:$0xf]
        %v934 = vld [vmem:[%s811 + $0xc8] sm:$0xf]
        %v935 = vld [vmem:[%s811 + $0xcc] sm:$0xf]
        %v936 = vld [vmem:[%s811 + $0xd0] sm:$0xf]
        %v937 = vld [vmem:[%s811 + $0xd4] sm:$0xf]
        %v938 = vld [vmem:[%s811 + $0xd8] sm:$0xf]
        %v939 = vld [vmem:[%s811 + $0xdc] sm:$0xf]
        %v940 = vld [vmem:[%s811 + $0xe0] sm:$0xf]
        %v941 = vld [vmem:[%s811 + $0xe4] sm:$0xf]
        %v942 = vld [vmem:[%s811 + $0xe8] sm:$0xf]
        %v943 = vld [vmem:[%s811 + $0xec] sm:$0xf]
        %v944 = vld [vmem:[%s811 + $0xf0] sm:$0xf]
        %v945 = vld [vmem:[%s811 + $0xf4] sm:$0xf]
        %v946 = vld [vmem:[%s811 + $0xf8] sm:$0xf]
        %v947 = vld [vmem:[%s811 + $0xfc] sm:$0xf]
        %v948 = vld [vmem:[%s811 + $0x100] sm:$0xf]
        %v949 = vld [vmem:[%s811 + $0x104] sm:$0xf]
        %v950 = vld [vmem:[%s811 + $0x108] sm:$0xf]
        %v951 = vld [vmem:[%s811 + $0x10c] sm:$0xf]
        %v952 = vld [vmem:[%s811 + $0x110] sm:$0xf]
        %v953 = vld [vmem:[%s811 + $0x114] sm:$0xf]
        %v954 = vld [vmem:[%s811 + $0x118] sm:$0xf]
        %v955 = vld [vmem:[%s811 + $0x11c] sm:$0xf]
        %v956 = vld [vmem:[%s811 + $0x120] sm:$0xf]
        %v957 = vld [vmem:[%s811 + $0x124] sm:$0xf]
        %v958 = vld [vmem:[%s811 + $0x128] sm:$0xf]
        %v959 = vld [vmem:[%s811 + $0x12c] sm:$0xf]
        %v960 = vld [vmem:[%s811 + $0x130] sm:$0xf]
        %v961 = vld [vmem:[%s811 + $0x134] sm:$0xf]
        %v962 = vld [vmem:[%s811 + $0x138] sm:$0xf]
        %v963 = vld [vmem:[%s811 + $0x13c] sm:$0xf]
        %v964 = vld [vmem:[%s811 + $0x140] sm:$0xf]
        %v965 = vld [vmem:[%s811 + $0x144] sm:$0xf]
        %v966 = vld [vmem:[%s811 + $0x148] sm:$0xf]
        %v967 = vld [vmem:[%s811 + $0x14c] sm:$0xf]
        %v968 = vld [vmem:[%s811 + $0x150] sm:$0xf]
        %v969 = vld [vmem:[%s811 + $0x154] sm:$0xf]
        %v970 = vld [vmem:[%s811 + $0x158] sm:$0xf]
        %v971 = vld [vmem:[%s811 + $0x15c] sm:$0xf]
        %v972 = vld [vmem:[%s811 + $0x160] sm:$0xf]
        %v973 = vld [vmem:[%s811 + $0x164] sm:$0xf]
        %v974 = vld [vmem:[%s811 + $0x168] sm:$0xf]
        %v975 = vld [vmem:[%s811 + $0x16c] sm:$0xf]
        %v976 = vld [vmem:[%s811 + $0x170] sm:$0xf]
        %v977 = vld [vmem:[%s811 + $0x174] sm:$0xf]
        %v978 = vld [vmem:[%s811 + $0x178] sm:$0xf]
        %v979 = vld [vmem:[%s811 + $0x17c] sm:$0xf]
        %v980 = vld [vmem:[%s811 + $0x180] sm:$0xf]
        %v981 = vld [vmem:[%s811 + $0x184] sm:$0xf]
        %v982 = vld [vmem:[%s811 + $0x188] sm:$0xf]
        %v983 = vld [vmem:[%s811 + $0x18c] sm:$0xf]
        %v984 = vld [vmem:[%s811 + $0x190] sm:$0xf]
        %v985 = vld [vmem:[%s811 + $0x194] sm:$0xf]
        %v986 = vld [vmem:[%s811 + $0x198] sm:$0xf]
        %v987 = vld [vmem:[%s811 + $0x19c] sm:$0xf]
        %v988 = vld [vmem:[%s811 + $0x1a0] sm:$0xf]
        %v989 = vld [vmem:[%s811 + $0x1a4] sm:$0xf]
        %v990 = vld [vmem:[%s811 + $0x1a8] sm:$0xf]
        %v991 = vld [vmem:[%s811 + $0x1ac] sm:$0xf]
        %v992 = vld [vmem:[%s811 + $0x1b0] sm:$0xf]
        %v993 = vld [vmem:[%s811 + $0x1b4] sm:$0xf]
        %v994 = vld [vmem:[%s811 + $0x1b8] sm:$0xf]
        %v995 = vld [vmem:[%s811 + $0x1bc] sm:$0xf]
        %v996 = vld [vmem:[%s811 + $0x1c0] sm:$0xf]
        %v997 = vld [vmem:[%s811 + $0x1c4] sm:$0xf]
        %v998 = vld [vmem:[%s811 + $0x1c8] sm:$0xf]
        %v999 = vld [vmem:[%s811 + $0x1cc] sm:$0xf]
        %v1000 = vld [vmem:[%s811 + $0x1d0] sm:$0xf]
        %v1001 = vld [vmem:[%s811 + $0x1d4] sm:$0xf]
        %v1002 = vld [vmem:[%s811 + $0x1d8] sm:$0xf]
        %v1003 = vld [vmem:[%s811 + $0x1dc] sm:$0xf]
        %v1004 = vld [vmem:[%s811 + $0x1e0] sm:$0xf]
        %v1005 = vld [vmem:[%s811 + $0x1e4] sm:$0xf]
        %v1006 = vld [vmem:[%s811 + $0x1e8] sm:$0xf]
        %v1007 = vld [vmem:[%s811 + $0x1ec] sm:$0xf]
        %v1008 = vld [vmem:[%s811 + $0x1f0] sm:$0xf]
        %v1009 = vld [vmem:[%s811 + $0x1f4] sm:$0xf]
        %v1010 = vld [vmem:[%s811 + $0x1f8] sm:$0xf]
        %v1011 = vld [vmem:[%s811 + $0x1fc] sm:$0xf]
        %v1012 = vld [vmem:[%s811 + $0x200] sm:$0xf]
        %v1013 = vld [vmem:[%s811 + $0x204] sm:$0xf]
        %v1014 = vld [vmem:[%s811 + $0x208] sm:$0xf]
        %v1015 = vld [vmem:[%s811 + $0x20c] sm:$0xf]
        %v1016 = vld [vmem:[%s811 + $0x210] sm:$0xf]
        %v1017 = vld [vmem:[%s811 + $0x214] sm:$0xf]
        %v1018 = vld [vmem:[%s811 + $0x218] sm:$0xf]
        %v1019 = vld [vmem:[%s811 + $0x21c] sm:$0xf]
        %v1020 = vld [vmem:[%s811 + $0x220] sm:$0xf]
        %v1021 = vld [vmem:[%s811 + $0x224] sm:$0xf]
        %v1022 = vld [vmem:[%s811 + $0x228] sm:$0xf]
        %v1023 = vld [vmem:[%s811 + $0x22c] sm:$0xf]
        %v1024 = vld [vmem:[%s811 + $0x230] sm:$0xf]
        %v1025 = vld [vmem:[%s811 + $0x234] sm:$0xf]
        %v1026 = vld [vmem:[%s811 + $0x238] sm:$0xf]
        %v1027 = vld [vmem:[%s811 + $0x23c] sm:$0xf]
        %v1033 = vunpack.c.l.b16 %v879
        %v1034 = vunpack.c.h.b16 %v879
        %v1035 = vunpack.c.l.b16 %v880
        %v1036 = vunpack.c.h.b16 %v880
        %v1037 = vunpack.c.l.b16 %v881
        %v1038 = vunpack.c.h.b16 %v881
        %v1039 = vunpack.c.l.b16 %v882
        %v1040 = vunpack.c.h.b16 %v882
        %v1041 = vunpack.c.l.b16 %v883
        %v1042 = vpack.c.b16 %v1033, %v1033
        %v1043 = vpack.c.b16 %v1034, %v1034
        %v1044 = vpack.c.b16 %v1035, %v1035
        %v1045 = vpack.c.b16 %v1036, %v1036
        %v1046 = vpack.c.b16 %v1037, %v1037
        %v1047 = vpack.c.b16 %v1038, %v1038
        %v1048 = vpack.c.b16 %v1039, %v1039
        %v1049 = vpack.c.b16 %v1040, %v1040
        %v1050 = vpack.c.b16 %v1041, %v1041
        %v1204 = vunpack.c.l.b16 %v884
        %v1205 = vunpack.c.l.b16 %v885
        %v1206 = vunpack.c.l.b16 %v886
        %v1207 = vunpack.c.l.b16 %v887
        %v1208 = vunpack.c.l.b16 %v888
        %v1209 = vunpack.c.l.b16 %v889
        %v1210 = vunpack.c.l.b16 %v890
        %v1211 = vunpack.c.l.b16 %v891
        %v1212 = vunpack.c.l.b16 %v892
        %v1213 = vunpack.c.l.b16 %v893
        %v1214 = vunpack.c.l.b16 %v894
        %v1215 = vunpack.c.l.b16 %v895
        %v1216 = vunpack.c.l.b16 %v896
        %v1217 = vunpack.c.l.b16 %v897
        %v1218 = vunpack.c.l.b16 %v898
        %v1219 = vunpack.c.l.b16 %v899
        %v1220 = vunpack.c.l.b16 %v900
        %v1221 = vunpack.c.l.b16 %v901
        %v1222 = vunpack.c.l.b16 %v902
        %v1223 = vunpack.c.l.b16 %v903
        %v1224 = vunpack.c.l.b16 %v904
        %v1225 = vunpack.c.l.b16 %v905
        %v1226 = vunpack.c.l.b16 %v906
        %v1227 = vunpack.c.l.b16 %v907
        %v1228 = vunpack.c.l.b16 %v908
        %v1229 = vunpack.c.l.b16 %v909
        %v1230 = vunpack.c.l.b16 %v910
        %v1231 = vunpack.c.l.b16 %v911
        %v1232 = vunpack.c.l.b16 %v912
        %v1233 = vunpack.c.l.b16 %v913
        %v1234 = vunpack.c.l.b16 %v914
        %v1235 = vunpack.c.l.b16 %v915
        %v1236 = vunpack.c.l.b16 %v916
        %v1237 = vunpack.c.l.b16 %v917
        %v1238 = vunpack.c.l.b16 %v918
        %v1239 = vunpack.c.l.b16 %v919
        %v1240 = vunpack.c.l.b16 %v920
        %v1241 = vunpack.c.l.b16 %v921
        %v1242 = vunpack.c.l.b16 %v922
        %v1243 = vunpack.c.l.b16 %v923
        %v1244 = vunpack.c.l.b16 %v924
        %v1245 = vunpack.c.l.b16 %v925
        %v1246 = vunpack.c.l.b16 %v926
        %v1247 = vunpack.c.l.b16 %v927
        %v1248 = vunpack.c.l.b16 %v928
        %v1249 = vunpack.c.l.b16 %v929
        %v1250 = vunpack.c.l.b16 %v930
        %v1251 = vunpack.c.l.b16 %v931
        %v1252 = vunpack.c.l.b16 %v932
        %v1253 = vunpack.c.l.b16 %v933
        %v1254 = vunpack.c.l.b16 %v934
        %v1255 = vunpack.c.l.b16 %v935
        %v1256 = vunpack.c.l.b16 %v936
        %v1257 = vunpack.c.l.b16 %v937
        %v1258 = vunpack.c.l.b16 %v938
        %v1259 = vunpack.c.l.b16 %v939
        %v1260 = vunpack.c.l.b16 %v940
        %v1261 = vunpack.c.l.b16 %v941
        %v1262 = vunpack.c.l.b16 %v942
        %v1263 = vunpack.c.l.b16 %v943
        %v1264 = vunpack.c.l.b16 %v944
        %v1265 = vunpack.c.l.b16 %v945
        %v1266 = vunpack.c.l.b16 %v946
        %v1267 = vunpack.c.l.b16 %v947
        %v1268 = vunpack.c.l.b16 %v948
        %v1269 = vunpack.c.l.b16 %v949
        %v1270 = vunpack.c.l.b16 %v950
        %v1271 = vunpack.c.l.b16 %v951
        %v1272 = vunpack.c.l.b16 %v952
        %v1273 = vunpack.c.l.b16 %v953
        %v1274 = vunpack.c.l.b16 %v954
        %v1275 = vunpack.c.l.b16 %v955
        %v1276 = vunpack.c.l.b16 %v956
        %v1277 = vunpack.c.l.b16 %v957
        %v1278 = vunpack.c.l.b16 %v958
        %v1279 = vunpack.c.l.b16 %v959
        %v1280 = vunpack.c.l.b16 %v960
        %v1281 = vunpack.c.l.b16 %v961
        %v1282 = vunpack.c.l.b16 %v962
        %v1283 = vunpack.c.l.b16 %v963
        %v1284 = vunpack.c.l.b16 %v964
        %v1285 = vunpack.c.l.b16 %v965
        %v1286 = vunpack.c.l.b16 %v966
        %v1287 = vunpack.c.l.b16 %v967
        %v1288 = vunpack.c.l.b16 %v968
        %v1289 = vunpack.c.l.b16 %v969
        %v1290 = vunpack.c.l.b16 %v970
        %v1291 = vunpack.c.l.b16 %v971
        %v1292 = vunpack.c.l.b16 %v972
        %v1293 = vunpack.c.l.b16 %v973
        %v1294 = vunpack.c.l.b16 %v974
        %v1295 = vunpack.c.l.b16 %v975
        %v1296 = vunpack.c.l.b16 %v976
        %v1297 = vunpack.c.l.b16 %v977
        %v1298 = vunpack.c.l.b16 %v978
        %v1299 = vunpack.c.l.b16 %v979
        %v1300 = vunpack.c.l.b16 %v980
        %v1301 = vunpack.c.l.b16 %v981
        %v1302 = vunpack.c.l.b16 %v982
        %v1303 = vunpack.c.l.b16 %v983
        %v1304 = vunpack.c.l.b16 %v984
        %v1305 = vunpack.c.l.b16 %v985
        %v1306 = vunpack.c.l.b16 %v986
        %v1307 = vunpack.c.l.b16 %v987
        %v1308 = vunpack.c.l.b16 %v988
        %v1309 = vunpack.c.l.b16 %v989
        %v1310 = vunpack.c.l.b16 %v990
        %v1311 = vunpack.c.l.b16 %v991
        %v1312 = vunpack.c.l.b16 %v992
        %v1313 = vunpack.c.l.b16 %v993
        %v1314 = vunpack.c.l.b16 %v994
        %v1315 = vunpack.c.l.b16 %v995
        %v1316 = vunpack.c.l.b16 %v996
        %v1317 = vunpack.c.l.b16 %v997
        %v1318 = vunpack.c.l.b16 %v998
        %v1319 = vunpack.c.l.b16 %v999
        %v1320 = vunpack.c.l.b16 %v1000
        %v1321 = vunpack.c.l.b16 %v1001
        %v1322 = vunpack.c.l.b16 %v1002
        %v1323 = vunpack.c.l.b16 %v1003
        %v1324 = vunpack.c.l.b16 %v1004
        %v1325 = vunpack.c.l.b16 %v1005
        %v1326 = vunpack.c.l.b16 %v1006
        %v1327 = vunpack.c.l.b16 %v1007
        %v1328 = vunpack.c.l.b16 %v1008
        %v1329 = vunpack.c.l.b16 %v1009
        %v1330 = vunpack.c.l.b16 %v1010
        %v1331 = vunpack.c.l.b16 %v1011
        %v1332 = vunpack.c.l.b16 %v1012
        %v1333 = vunpack.c.l.b16 %v1013
        %v1334 = vunpack.c.l.b16 %v1014
        %v1335 = vunpack.c.l.b16 %v1015
        %v1336 = vunpack.c.l.b16 %v1016
        %v1337 = vunpack.c.l.b16 %v1017
        %v1338 = vunpack.c.l.b16 %v1018
        %v1339 = vunpack.c.l.b16 %v1019
        %v1340 = vunpack.c.l.b16 %v1020
        %v1341 = vunpack.c.l.b16 %v1021
        %v1342 = vunpack.c.l.b16 %v1022
        %v1343 = vunpack.c.l.b16 %v1023
        %v1344 = vunpack.c.l.b16 %v1024
        %v1345 = vunpack.c.l.b16 %v1025
        %v1346 = vunpack.c.l.b16 %v1026
        %v1347 = vunpack.c.l.b16 %v1027
        %v1348 = vpack.c.b16 %v1205, %v1204
        %v1349 = vpack.c.b16 %v1207, %v1206
        %v1350 = vpack.c.b16 %v1209, %v1208
        %v1351 = vpack.c.b16 %v1211, %v1210
        %v1352 = vpack.c.b16 %v1213, %v1212
        %v1353 = vpack.c.b16 %v1215, %v1214
        %v1354 = vpack.c.b16 %v1217, %v1216
        %v1355 = vpack.c.b16 %v1219, %v1218
        %v1356 = vpack.c.b16 %v1221, %v1220
        %v1357 = vpack.c.b16 %v1223, %v1222
        %v1358 = vpack.c.b16 %v1225, %v1224
        %v1359 = vpack.c.b16 %v1227, %v1226
        %v1360 = vpack.c.b16 %v1229, %v1228
        %v1361 = vpack.c.b16 %v1231, %v1230
        %v1362 = vpack.c.b16 %v1233, %v1232
        %v1363 = vpack.c.b16 %v1235, %v1234
        %v1364 = vpack.c.b16 %v1237, %v1236
        %v1365 = vpack.c.b16 %v1239, %v1238
        %v1366 = vpack.c.b16 %v1241, %v1240
        %v1367 = vpack.c.b16 %v1243, %v1242
        %v1368 = vpack.c.b16 %v1245, %v1244
        %v1369 = vpack.c.b16 %v1247, %v1246
        %v1370 = vpack.c.b16 %v1249, %v1248
        %v1371 = vpack.c.b16 %v1251, %v1250
        %v1372 = vpack.c.b16 %v1253, %v1252
        %v1373 = vpack.c.b16 %v1255, %v1254
        %v1374 = vpack.c.b16 %v1257, %v1256
        %v1375 = vpack.c.b16 %v1259, %v1258
        %v1376 = vpack.c.b16 %v1261, %v1260
        %v1377 = vpack.c.b16 %v1263, %v1262
        %v1378 = vpack.c.b16 %v1265, %v1264
        %v1379 = vpack.c.b16 %v1267, %v1266
        %v1380 = vpack.c.b16 %v1269, %v1268
        %v1381 = vpack.c.b16 %v1271, %v1270
        %v1382 = vpack.c.b16 %v1273, %v1272
        %v1383 = vpack.c.b16 %v1275, %v1274
        %v1384 = vpack.c.b16 %v1277, %v1276
        %v1385 = vpack.c.b16 %v1279, %v1278
        %v1386 = vpack.c.b16 %v1281, %v1280
        %v1387 = vpack.c.b16 %v1283, %v1282
        %v1388 = vpack.c.b16 %v1285, %v1284
        %v1389 = vpack.c.b16 %v1287, %v1286
        %v1390 = vpack.c.b16 %v1289, %v1288
        %v1391 = vpack.c.b16 %v1291, %v1290
        %v1392 = vpack.c.b16 %v1293, %v1292
        %v1393 = vpack.c.b16 %v1295, %v1294
        %v1394 = vpack.c.b16 %v1297, %v1296
        %v1395 = vpack.c.b16 %v1299, %v1298
        %v1396 = vpack.c.b16 %v1301, %v1300
        %v1397 = vpack.c.b16 %v1303, %v1302
        %v1398 = vpack.c.b16 %v1305, %v1304
        %v1399 = vpack.c.b16 %v1307, %v1306
        %v1400 = vpack.c.b16 %v1309, %v1308
        %v1401 = vpack.c.b16 %v1311, %v1310
        %v1402 = vpack.c.b16 %v1313, %v1312
        %v1403 = vpack.c.b16 %v1315, %v1314
        %v1404 = vpack.c.b16 %v1317, %v1316
        %v1405 = vpack.c.b16 %v1319, %v1318
        %v1406 = vpack.c.b16 %v1321, %v1320
        %v1407 = vpack.c.b16 %v1323, %v1322
        %v1408 = vpack.c.b16 %v1325, %v1324
        %v1409 = vpack.c.b16 %v1327, %v1326
        %v1410 = vpack.c.b16 %v1329, %v1328
        %v1411 = vpack.c.b16 %v1331, %v1330
        %v1412 = vpack.c.b16 %v1333, %v1332
        %v1413 = vpack.c.b16 %v1335, %v1334
        %v1414 = vpack.c.b16 %v1337, %v1336
        %v1415 = vpack.c.b16 %v1339, %v1338
        %v1416 = vpack.c.b16 %v1341, %v1340
        %v1417 = vpack.c.b16 %v1343, %v1342
        %v1418 = vpack.c.b16 %v1345, %v1344
        %v1419 = vpack.c.b16 %v1347, %v1346
        %1492 = vmatpush.bf16.msra.mxu0 %v1355
        %1493 = vmatpush.bf16.msra.mxu0 %v1354
        %1494 = vmatpush.bf16.msra.mxu0 %v1353
        %1495 = vmatpush.bf16.msra.mxu0 %v1352
        %1496 = vmatpush.bf16.msra.mxu0 %v1351
        %1497 = vmatpush.bf16.msra.mxu0 %v1350
        %1498 = vmatpush.bf16.msra.mxu0 %v1349
        %1499 = vmatpush.bf16.msra.mxu0 %v1348
        %1500 = vmatmul.bf16.gmra.mxu0 %v1042
        %v1501 = vpop.f32.mrf.mxu0
        %v1502 = vadd.f32 0.0, %v1501
        %v1503 = vpop.f32.mrf.mxu0
        %1504 = vdwg.mxu0
        %1505 = vmatpush.bf16.msra.mxu0 %v1363
        %1506 = vmatpush.bf16.msra.mxu0 %v1362
        %1507 = vmatpush.bf16.msra.mxu0 %v1361
        %1508 = vmatpush.bf16.msra.mxu0 %v1360
        %1509 = vmatpush.bf16.msra.mxu0 %v1359
        %1510 = vmatpush.bf16.msra.mxu0 %v1358
        %1511 = vmatpush.bf16.msra.mxu0 %v1357
        %1512 = vmatpush.bf16.msra.mxu0 %v1356
        %1513 = vmatmul.bf16.gmra.mxu0 %v1043
        %v1514 = vpop.f32.mrf.mxu0
        %v1515 = vadd.f32 %v1502, %v1514
        %v1516 = vpop.f32.mrf.mxu0
        %1517 = vdwg.mxu0
        %1518 = vmatpush.bf16.msra.mxu0 %v1371
        %1519 = vmatpush.bf16.msra.mxu0 %v1370
        %1520 = vmatpush.bf16.msra.mxu0 %v1369
        %1521 = vmatpush.bf16.msra.mxu0 %v1368
        %1522 = vmatpush.bf16.msra.mxu0 %v1367
        %1523 = vmatpush.bf16.msra.mxu0 %v1366
        %1524 = vmatpush.bf16.msra.mxu0 %v1365
        %1525 = vmatpush.bf16.msra.mxu0 %v1364
        %1526 = vmatmul.bf16.gmra.mxu0 %v1044
        %v1527 = vpop.f32.mrf.mxu0
        %v1528 = vadd.f32 %v1515, %v1527
        %v1529 = vpop.f32.mrf.mxu0
        %1530 = vdwg.mxu0
        %1531 = vmatpush.bf16.msra.mxu0 %v1379
        %1532 = vmatpush.bf16.msra.mxu0 %v1378
        %1533 = vmatpush.bf16.msra.mxu0 %v1377
        %1534 = vmatpush.bf16.msra.mxu0 %v1376
        %1535 = vmatpush.bf16.msra.mxu0 %v1375
        %1536 = vmatpush.bf16.msra.mxu0 %v1374
        %1537 = vmatpush.bf16.msra.mxu0 %v1373
        %1538 = vmatpush.bf16.msra.mxu0 %v1372
        %1539 = vmatmul.bf16.gmra.mxu0 %v1045
        %v1540 = vpop.f32.mrf.mxu0
        %v1541 = vadd.f32 %v1528, %v1540
        %v1542 = vpop.f32.mrf.mxu0
        %1543 = vdwg.mxu0
        %1544 = vmatpush.bf16.msra.mxu0 %v1387
        %1545 = vmatpush.bf16.msra.mxu0 %v1386
        %1546 = vmatpush.bf16.msra.mxu0 %v1385
        %1547 = vmatpush.bf16.msra.mxu0 %v1384
        %1548 = vmatpush.bf16.msra.mxu0 %v1383
        %1549 = vmatpush.bf16.msra.mxu0 %v1382
        %1550 = vmatpush.bf16.msra.mxu0 %v1381
        %1551 = vmatpush.bf16.msra.mxu0 %v1380
        %1552 = vmatmul.bf16.gmra.mxu0 %v1046
        %v1553 = vpop.f32.mrf.mxu0
        %v1554 = vadd.f32 %v1541, %v1553
        %v1555 = vpop.f32.mrf.mxu0
        %1556 = vdwg.mxu0
        %1557 = vmatpush.bf16.msra.mxu0 %v1395
        %1558 = vmatpush.bf16.msra.mxu0 %v1394
        %1559 = vmatpush.bf16.msra.mxu0 %v1393
        %1560 = vmatpush.bf16.msra.mxu0 %v1392
        %1561 = vmatpush.bf16.msra.mxu0 %v1391
        %1562 = vmatpush.bf16.msra.mxu0 %v1390
        %1563 = vmatpush.bf16.msra.mxu0 %v1389
        %1564 = vmatpush.bf16.msra.mxu0 %v1388
        %1565 = vmatmul.bf16.gmra.mxu0 %v1047
        %v1566 = vpop.f32.mrf.mxu0
        %v1567 = vadd.f32 %v1554, %v1566
        %v1568 = vpop.f32.mrf.mxu0
        %1569 = vdwg.mxu0
        %1570 = vmatpush.bf16.msra.mxu0 %v1403
        %1571 = vmatpush.bf16.msra.mxu0 %v1402
        %1572 = vmatpush.bf16.msra.mxu0 %v1401
        %1573 = vmatpush.bf16.msra.mxu0 %v1400
        %1574 = vmatpush.bf16.msra.mxu0 %v1399
        %1575 = vmatpush.bf16.msra.mxu0 %v1398
        %1576 = vmatpush.bf16.msra.mxu0 %v1397
        %1577 = vmatpush.bf16.msra.mxu0 %v1396
        %1578 = vmatmul.bf16.gmra.mxu0 %v1048
        %v1579 = vpop.f32.mrf.mxu0
        %v1580 = vadd.f32 %v1567, %v1579
        %v1581 = vpop.f32.mrf.mxu0
        %1582 = vdwg.mxu0
        %1583 = vmatpush.bf16.msra.mxu0 %v1411
        %1584 = vmatpush.bf16.msra.mxu0 %v1410
        %1585 = vmatpush.bf16.msra.mxu0 %v1409
        %1586 = vmatpush.bf16.msra.mxu0 %v1408
        %1587 = vmatpush.bf16.msra.mxu0 %v1407
        %1588 = vmatpush.bf16.msra.mxu0 %v1406
        %1589 = vmatpush.bf16.msra.mxu0 %v1405
        %1590 = vmatpush.bf16.msra.mxu0 %v1404
        %1591 = vmatmul.bf16.gmra.mxu0 %v1049
        %v1592 = vpop.f32.mrf.mxu0
        %v1593 = vadd.f32 %v1580, %v1592
        %v1594 = vpop.f32.mrf.mxu0
        %1595 = vdwg.mxu0
        %1596 = vmatpush.bf16.msra.mxu0 %v1419
        %1597 = vmatpush.bf16.msra.mxu0 %v1418
        %1598 = vmatpush.bf16.msra.mxu0 %v1417
        %1599 = vmatpush.bf16.msra.mxu0 %v1416
        %1600 = vmatpush.bf16.msra.mxu0 %v1415
        %1601 = vmatpush.bf16.msra.mxu0 %v1414
        %1602 = vmatpush.bf16.msra.mxu0 %v1413
        %1603 = vmatpush.bf16.msra.mxu0 %v1412
        %1604 = vmatmul.bf16.gmra.mxu0 %v1050
        %v1605 = vpop.f32.mrf.mxu0
        %v1606 = vadd.f32 %v1593, %v1605
        %v1607 = vpop.f32.mrf.mxu0
        %1608 = vdwg.mxu0
        %v1609 = vadd.f32 %v878, %v1606
        %1610 = vst [vmem:[#allocation2] sm:$0xff] %v1609
        // Predicated region
        $region78: #{frequency_discriminator_forward.12} parent=68 // pred_check
          %p1611 = pneg %p869
        $region79: #{frequency_discriminator_forward.12} parent=68 // pred_check_branch
          %1613 = sbr.rel (%p1611) target = $region81
        $region80: #{frequency_discriminator_forward.12} parent=68 // pred_region
          %v1614 = vld [vmem:[#allocation2] sm:$0xff]
          %vm1615 = vcmp.ge.f32.partialorder %v1614, 0.0
          %v1616 = vmul.f32 %v1614, 0.2
          %v1617 = vsel %vm1615, %v1614, %v1616
          %v1618 = vpack.c.bf16 %v1617, %v1617
          %1619 = vst [vmem:[%s868] sm:$0xf] %v1618
        $region81: #{frequency_discriminator_forward.12} parent=68 // pred_fallthru
          _
        %p1620 = scmp.lt.s32.totalorder %s19, 0
        %s1621 = scalar_select %p1620, %s19, 0
        %p1622 = scmp.lt.s32.totalorder %s20, 1
        %s1623 = scalar_select %p1622, %s20, 1
        %s1624 = smul.addr %s1621, 2
        %s1625 = sadd.s32 %s1623, %s1624
        %s1626 = smul.addr %s1625, 4
        %s1627 = scalar_lea.vmem %s3, %s1626
        // Predicated region
        $region82: #{frequency_discriminator_forward.12} parent=68 // pred_check
          %p1628 = pneg %p135
        $region83: #{frequency_discriminator_forward.12} parent=68 // pred_check_branch
          %1630 = sbr.rel (%p1628) target = $region85
        $region84: #{frequency_discriminator_forward.12} parent=68 // pred_region
          _
        $region85: #{frequency_discriminator_forward.12} parent=68 // pred_fallthru
          _
      $region69: #{frequency_discriminator_forward.12} parent=5 // pred_fallthru
        _
      %p1631 = scmp.le.s32.totalorder 2, %s9
      // Predicated region
      $region86: #{frequency_discriminator_forward.12} parent=5 // pred_check
        %p1632 = pneg %p1631
      $region87: #{frequency_discriminator_forward.12} parent=5 // pred_check_branch
        %1634 = sbr.rel (%p1632) target = $region89
      $region88: #{frequency_discriminator_forward.12} parent=5 // pred_region
        %s1635 = ssub.s32 %s9, 2
        // Predicated region
        $region90: #{frequency_discriminator_forward.12} parent=88 // pred_check
          %p1636 = pneg %p141
        $region91: #{frequency_discriminator_forward.12} parent=88 // pred_check_branch
          %1638 = sbr.rel (%p1636) target = $region93
        $region92: #{frequency_discriminator_forward.12} parent=88 // pred_region
          %p1639 = scmp.lt.s32.totalorder %s22, 0
          %s1640 = scalar_select %p1639, %s22, 0
          %p1641 = scmp.lt.s32.totalorder %s23, 1
          %s1642 = scalar_select %p1641, %s23, 1
          %s1643 = smul.addr %s1640, 2
          %s1644 = sadd.s32 %s1642, %s1643
          %s1645 = smul.addr %s1644, 4
          %s1646 = scalar_lea.vmem %s3, %s1645
        $region93: #{frequency_discriminator_forward.12} parent=88 // pred_fallthru
          _
      $region89: #{frequency_discriminator_forward.12} parent=5 // pred_fallthru
        _
    $region6: #{frequency_discriminator_forward.12} parent=1 // loop_footer
      %s13 = sadd.s32 1, %s9
    $region7: #{frequency_discriminator_forward.12} parent=1 // loop_footer_branch
      %8 = sbr.rel target = $region3
    $region8: #{frequency_discriminator_forward.12} parent=1 // loop_exit
      _

// kernel: frequency_discriminator_forward.13
$region0: #{frequency_discriminator_forward.13}
  #allocation0 [shape = 'u32[]', space=smem, size = 0x4, offset = 0x4, fixed_abs, tag = 'smem constant byte address 0x4 - core index']
  #allocation1 [shape = 'u32[72,128]{1,0:T(1,128)}', space=vmem, size = 0x9000, scoped, tag = 'internal scratch']
  #allocation2 [shape = 'f32[8,128]{1,0:T(8,128)}', space=vmem, size = 0x1000, scoped, tag = 'scratch operand']
  %s0 = inlined_call_operand.vmem [shape: bf16[8,2304], index: 0, kind: input, shape index: {}]
  %s1 = inlined_call_operand.vmem [shape: bf16[2304,128], index: 1, kind: input, shape index: {}]
  %s2 = inlined_call_operand.vmem [shape: f32[1,128], index: 2, kind: input, shape index: {}]
  %s3 = inlined_call_operand.vmem [shape: f32[8,128], index: 3, kind: output, shape index: {}]
  %s4 = sld [smem:[#allocation0]]
  $region53: #{frequency_discriminator_forward.13} parent=0
    _
  %s6 = ssub.s32 1, %s4
  %s7 = scalar_select 0, %s6, %s4
  loop: start=0, step=1, limit=11
  $region2: #{frequency_discriminator_forward.13} parent=0 // loop_pre_header
    _
  $region3: #{frequency_discriminator_forward.13} parent=0 // loop_header
    %s9 = sphi 0, %s13
    %p10 = scmp.ge.s32.totalorder %s9, 11
    %s16 = sphi 0, %s35
    %s17 = sphi 0, %s31
    %s18 = sphi 0, %s27
    %s19 = sphi 0, %s16
    %s20 = sphi 0, %s17
    %s21 = sphi 0, %s18
    %s22 = sphi 0, %s19
    %s23 = sphi 0, %s20
    %s24 = sphi 0, %s21
    %s40 = sphi 0, %s42
    %s43 = sphi 0, %s40
    %s44 = sphi 0, %s43
    %s60 = sphi 0, %s44
    %s68 = sphi 0, %s70
    %s71 = sphi 0, %s68
    %s72 = sphi 0, %s71
    %s88 = sphi 0, %s72
    %s94 = sphi 0, %s96
    %s97 = sphi 0, %s94
    %s98 = sphi 0, %s97
    %s114 = sphi 0, %s98
    %s122 = sphi 0, %s124
    %s125 = sphi 0, %s122
    %s126 = sphi 0, %s125
    %s142 = sphi 0, %s126
  $region4: #{frequency_discriminator_forward.13} parent=0 // loop_header_branch
    %12 = sbr.rel (%p10) target = $region8
  $region5: #{frequency_discriminator_forward.13} parent=0 // loop_body
    %s14 = ssub.s32 %s9, 1
    %s15 = ssub.s32 %s9, 2
    %s25 = sadd.s32 1, %s18
    %p26 = scmp.ge.s32.totalorder %s25, 9
    %s27 = scalar_select %p26, 0, %s25
    %s28 = sadd.s32 1, %s17
    %s29 = scalar_select %p26, %s28, %s17
    %p30 = scmp.ge.s32.totalorder %s29, 1
    %s31 = scalar_select %p30, 0, %s29
    %s32 = sadd.s32 1, %s16
    %s33 = scalar_select %p30, %s32, %s16
    %p34 = scmp.ge.s32.totalorder %s33, 1
    %s35 = scalar_select %p34, 0, %s33
    %s36 = ssub.s32 %s16, %s35
    %s37 = ssub.s32 %s18, %s27
    %s38 = sor.u32 %s36, %s37
    %p39 = scmp.eq.s32.totalorder %s38, 0
    %s41 = sadd.s32 %s40, 1
    %s42 = scalar_select %p39, %s40, %s41
    %p45 = pneg %p39
    %p46 = scmp.eq.s32.totalorder %s9, 8
    %p47 = por %p45, %p46
    %p48 = scmp.ne.s32.totalorder %s40, %s43
    %p49 = scmp.eq.s32.totalorder %s9, 0
    %p50 = por %p48, %p49
    %p51 = scmp.ne.s32.totalorder %s40, %s43
    %p52 = scmp.eq.s32.totalorder %s14, 8
    %p53 = por %p51, %p52
    %p54 = scmp.ne.s32.totalorder %s43, %s44
    %p55 = scmp.eq.s32.totalorder %s14, 0
    %p56 = por %p54, %p55
    %p57 = scmp.ne.s32.totalorder %s43, %s44
    %p58 = scmp.eq.s32.totalorder %s15, 8
    %p59 = por %p57, %p58
    %p61 = scmp.ne.s32.totalorder %s44, %s60
    %p62 = scmp.eq.s32.totalorder %s15, 0
    %p63 = por %p61, %p62
    %s64 = ssub.s32 %s18, %s27
    %s65 = ssub.s32 %s17, %s31
    %s66 = sor.u32 %s64, %s65
    %p67 = scmp.eq.s32.totalorder %s66, 0
    %s69 = sadd.s32 %s68, 1
    %s70 = scalar_select %p67, %s68, %s69
    %p73 = pneg %p67
    %p74 = scmp.eq.s32.totalorder %s9, 8
    %p75 = por %p73, %p74
    %p76 = scmp.ne.s32.totalorder %s68, %s71
    %p77 = scmp.eq.s32.totalorder %s9, 0
    %p78 = por %p76, %p77
    %p79 = scmp.ne.s32.totalorder %s68, %s71
    %p80 = scmp.eq.s32.totalorder %s14, 8
    %p81 = por %p79, %p80
    %p82 = scmp.ne.s32.totalorder %s71, %s72
    %p83 = scmp.eq.s32.totalorder %s14, 0
    %p84 = por %p82, %p83
    %p85 = scmp.ne.s32.totalorder %s71, %s72
    %p86 = scmp.eq.s32.totalorder %s15, 8
    %p87 = por %p85, %p86
    %p89 = scmp.ne.s32.totalorder %s72, %s88
    %p90 = scmp.eq.s32.totalorder %s15, 0
    %p91 = por %p89, %p90
    %s92 = ssub.s32 %s17, %s31
    %p93 = scmp.eq.s32.totalorder %s92, 0
    %s95 = sadd.s32 %s94, 1
    %s96 = scalar_select %p93, %s94, %s95
    %p99 = pneg %p93
    %p100 = scmp.eq.s32.totalorder %s9, 8
    %p101 = por %p99, %p100
    %p102 = scmp.ne.s32.totalorder %s94, %s97
    %p103 = scmp.eq.s32.totalorder %s9, 0
    %p104 = por %p102, %p103
    %p105 = scmp.ne.s32.totalorder %s94, %s97
    %p106 = scmp.eq.s32.totalorder %s14, 8
    %p107 = por %p105, %p106
    %p108 = scmp.ne.s32.totalorder %s97, %s98
    %p109 = scmp.eq.s32.totalorder %s14, 0
    %p110 = por %p108, %p109
    %p111 = scmp.ne.s32.totalorder %s97, %s98
    %p112 = scmp.eq.s32.totalorder %s15, 8
    %p113 = por %p111, %p112
    %p115 = scmp.ne.s32.totalorder %s98, %s114
    %p116 = scmp.eq.s32.totalorder %s15, 0
    %p117 = por %p115, %p116
    %s118 = ssub.s32 %s16, %s35
    %s119 = ssub.s32 %s17, %s31
    %s120 = sor.u32 %s118, %s119
    %p121 = scmp.eq.s32.totalorder %s120, 0
    %s123 = sadd.s32 %s122, 1
    %s124 = scalar_select %p121, %s122, %s123
    %p127 = pneg %p121
    %p128 = scmp.eq.s32.totalorder %s9, 8
    %p129 = por %p127, %p128
    %p130 = scmp.ne.s32.totalorder %s122, %s125
    %p131 = scmp.eq.s32.totalorder %s9, 0
    %p132 = por %p130, %p131
    %p133 = scmp.ne.s32.totalorder %s122, %s125
    %p134 = scmp.eq.s32.totalorder %s14, 8
    %p135 = por %p133, %p134
    %p136 = scmp.ne.s32.totalorder %s125, %s126
    %p137 = scmp.eq.s32.totalorder %s14, 0
    %p138 = por %p136, %p137
    %p139 = scmp.ne.s32.totalorder %s125, %s126
    %p140 = scmp.eq.s32.totalorder %s15, 8
    %p141 = por %p139, %p140
    %p143 = scmp.ne.s32.totalorder %s126, %s142
    %p144 = scmp.eq.s32.totalorder %s15, 0
    %p145 = por %p143, %p144
    %p146 = scmp.le.s32.totalorder 1, %s9
    %p147 = scmp.lt.s32.totalorder %s9, 10
    %p148 = pnand %p146, %p147
    %p149 = pneg %p148
    // Predicated region
    $region9: #{frequency_discriminator_forward.13} parent=5 // pred_check
      _
    $region10: #{frequency_discriminator_forward.13} parent=5 // pred_check_branch
      %151 = sbr.rel (%p148) target = $region12
    $region11: #{frequency_discriminator_forward.13} parent=5 // pred_region
      %s152 = ssub.s32 %s9, 1
      // Predicated region
      $region13: #{frequency_discriminator_forward.13} parent=11 // pred_check
        %p153 = pneg %p110
      $region14: #{frequency_discriminator_forward.13} parent=11 // pred_check_branch
        %155 = sbr.rel (%p153) target = $region16
      $region15: #{frequency_discriminator_forward.13} parent=11 // pred_region
        %p156 = scmp.lt.s32.totalorder %s20, 0
        %s157 = scalar_select %p156, %s20, 0
        %s158 = scalar_lea.vmem %s2, %s157
      $region16: #{frequency_discriminator_forward.13} parent=11 // pred_fallthru
        _
    $region12: #{frequency_discriminator_forward.13} parent=5 // pred_fallthru
      _
    %p159 = scmp.lt.s32.totalorder %s9, 9
    // Predicated region
    $region17: #{frequency_discriminator_forward.13} parent=5 // pred_check
      %p160 = pneg %p159
    $region18: #{frequency_discriminator_forward.13} parent=5 // pred_check_branch
      %162 = sbr.rel (%p160) target = $region20
    $region19: #{frequency_discriminator_forward.13} parent=5 // pred_region
      // Predicated region
      $region21: #{frequency_discriminator_forward.13} parent=19 // pred_check
        %p163 = pneg %p50
      $region22: #{frequency_discriminator_forward.13} parent=19 // pred_check_branch
        %165 = sbr.rel (%p163) target = $region24
      $region23: #{frequency_discriminator_forward.13} parent=19 // pred_region
        %s166 = smul.u32 2, %s18
        %p167 = scmp.lt.s32.totalorder %s16, 0
        %s168 = scalar_select %p167, %s16, 0
        %p169 = scmp.lt.s32.totalorder %s166, 17
        %s170 = scalar_select %p169, %s166, 17
        %s171 = smul.addr %s168, 18
        %s172 = sadd.s32 %s170, %s171
        %s173 = smul.addr %s172, 4
        %s174 = scalar_lea.vmem %s0, %s173
        %s175 = smul.u32 2, %s18
      $region24: #{frequency_discriminator_forward.13} parent=19 // pred_fallthru
        _
      // Predicated region
      $region25: #{frequency_discriminator_forward.13} parent=19 // pred_check
        %p176 = pneg %p78
      $region26: #{frequency_discriminator_forward.13} parent=19 // pred_check_branch
        %178 = sbr.rel (%p176) target = $region28
      $region27: #{frequency_discriminator_forward.13} parent=19 // pred_region
        %s179 = smul.u32 32, %s18
        %p180 = scmp.lt.s32.totalorder %s179, 287
        %s181 = scalar_select %p180, %s179, 287
        %p182 = scmp.lt.s32.totalorder %s17, 0
        %s183 = scalar_select %p182, %s17, 0
        %s184 = sadd.s32 %s183, %s181
        %s185 = smul.addr %s184, 4
        %s186 = scalar_lea.vmem %s1, %s185
        %s187 = smul.u32 32, %s18
      $region28: #{frequency_discriminator_forward.13} parent=19 // pred_fallthru
        _
    $region20: #{frequency_discriminator_forward.13} parent=5 // pred_fallthru
      _
    %p188 = scmp.le.s32.totalorder 1, %s9
    %p189 = scmp.lt.s32.totalorder %s9, 10
    %p190 = pnand %p188, %p189
    %p191 = pneg %p190
    // Predicated region
    $region29: #{frequency_discriminator_forward.13} parent=5 // pred_check
      _
    $region30: #{frequency_discriminator_forward.13} parent=5 // pred_check_branch
      %193 = sbr.rel (%p190) target = $region32
    $region31: #{frequency_discriminator_forward.13} parent=5 // pred_region
      %s194 = ssub.s32 %s9, 1
      %s195 = smul.u32 2, %s21
      %p196 = scmp.lt.s32.totalorder %s19, 0
      %s197 = scalar_select %p196, %s19, 0
      %p198 = scmp.lt.s32.totalorder %s195, 17
      %s199 = scalar_select %p198, %s195, 17
      %s200 = smul.addr %s197, 18
      %s201 = sadd.s32 %s199, %s200
      %s202 = smul.addr %s201, 4
      %s203 = scalar_lea.vmem %s0, %s202
      %p204 = pneg %p56
      %p205 = pneg %p53
      %s206 = smul.u32 32, %s21
      %p207 = scmp.lt.s32.totalorder %s206, 287
      %s208 = scalar_select %p207, %s206, 287
      %p209 = scmp.lt.s32.totalorder %s20, 0
      %s210 = scalar_select %p209, %s20, 0
      %s211 = sadd.s32 %s210, %s208
      %s212 = smul.addr %s211, 4
      %s213 = scalar_lea.vmem %s1, %s212
      %p214 = pneg %p84
      %p215 = pneg %p81
      %p216 = scmp.lt.s32.totalorder %s20, 0
      %s217 = scalar_select %p216, %s20, 0
      %s218 = scalar_lea.vmem %s2, %s217
      %p219 = pneg %p110
      %p220 = pneg %p107
      %p221 = pneg %p138
      %p222 = pneg %p135
      %p223 = scmp.lt.s32.totalorder %s19, 0
      %s224 = scalar_select %p223, %s19, 0
      %p225 = scmp.lt.s32.totalorder %s20, 0
      %s226 = scalar_select %p225, %s20, 0
      %s227 = sadd.s32 %s226, %s224
      %s228 = smul.addr %s227, 8
      %s229 = scalar_lea.vmem %s3, %s228
      %s230 = smul.u32 2, %s21
      %p231 = scmp.lt.s32.totalorder %s19, 0
      %s232 = scalar_select %p231, %s19, 0
      %p233 = scmp.lt.s32.totalorder %s230, 17
      %s234 = scalar_select %p233, %s230, 17
      %s235 = smul.addr %s232, 18
      %s236 = sadd.s32 %s234, %s235
      %s237 = smul.addr %s236, 4
      %s238 = scalar_lea.vmem %s0, %s237
      %s239 = smul.u32 2, %s21
      %s240 = smul.u32 32, %s21
      %p241 = scmp.lt.s32.totalorder %s240, 287
      %s242 = scalar_select %p241, %s240, 287
      %p243 = scmp.lt.s32.totalorder %s20, 0
      %s244 = scalar_select %p243, %s20, 0
      %s245 = sadd.s32 %s244, %s242
      %s246 = smul.addr %s245, 4
      %s247 = scalar_lea.vmem %s1, %s246
      %s248 = smul.u32 32, %s21
      %p249 = scmp.lt.s32.totalorder %s20, 0
      %s250 = scalar_select %p249, %s20, 0
      %s251 = scalar_lea.vmem %s2, %s250
      %p252 = scmp.lt.s32.totalorder %s19, 0
      %s253 = scalar_select %p252, %s19, 0
      %p254 = scmp.lt.s32.totalorder %s20, 0
      %s255 = scalar_select %p254, %s20, 0
      %s256 = sadd.s32 %s255, %s253
      %s257 = smul.addr %s256, 8
      %s258 = scalar_lea.vmem %s3, %s257
      %p259 = scmp.eq.s32.totalorder %s21, 0
      // Predicated region
      $region33: #{frequency_discriminator_forward.13} parent=31 // pred_check
        %p260 = pneg %p259
      $region34: #{frequency_discriminator_forward.13} parent=31 // pred_check_branch
        %262 = sbr.rel (%p260) target = $region36
      $region35: #{frequency_discriminator_forward.13} parent=31 // pred_region
        %v263 = vld [vmem:[%s251] sm:$0x1]
        %v265 = vperm.slane %v263, 0
        %267 = vst [vmem:[#allocation2] sm:$0xff] %v265
      $region36: #{frequency_discriminator_forward.13} parent=31 // pred_fallthru
        _
      %v268 = vld [vmem:[#allocation2] sm:$0xff]
      %v269 = vld [vmem:[%s238] sm:$0xff]
      %v270 = vld [vmem:[%s247] sm:$0xf]
      %v271 = vld [vmem:[%s247 + $0x4] sm:$0xf]
      %v272 = vld [vmem:[%s247 + $0x8] sm:$0xf]
      %v273 = vld [vmem:[%s247 + $0xc] sm:$0xf]
      %v274 = vld [vmem:[%s247 + $0x10] sm:$0xf]
      %v275 = vld [vmem:[%s247 + $0x14] sm:$0xf]
      %v276 = vld [vmem:[%s247 + $0x18] sm:$0xf]
      %v277 = vld [vmem:[%s247 + $0x1c] sm:$0xf]
      %v278 = vld [vmem:[%s247 + $0x20] sm:$0xf]
      %v279 = vld [vmem:[%s247 + $0x24] sm:$0xf]
      %v280 = vld [vmem:[%s247 + $0x28] sm:$0xf]
      %v281 = vld [vmem:[%s247 + $0x2c] sm:$0xf]
      %v282 = vld [vmem:[%s247 + $0x30] sm:$0xf]
      %v283 = vld [vmem:[%s247 + $0x34] sm:$0xf]
      %v284 = vld [vmem:[%s247 + $0x38] sm:$0xf]
      %v285 = vld [vmem:[%s247 + $0x3c] sm:$0xf]
      %v286 = vld [vmem:[%s247 + $0x40] sm:$0xf]
      %v287 = vld [vmem:[%s247 + $0x44] sm:$0xf]
      %v288 = vld [vmem:[%s247 + $0x48] sm:$0xf]
      %v289 = vld [vmem:[%s247 + $0x4c] sm:$0xf]
      %v290 = vld [vmem:[%s247 + $0x50] sm:$0xf]
      %v291 = vld [vmem:[%s247 + $0x54] sm:$0xf]
      %v292 = vld [vmem:[%s247 + $0x58] sm:$0xf]
      %v293 = vld [vmem:[%s247 + $0x5c] sm:$0xf]
      %v294 = vld [vmem:[%s247 + $0x60] sm:$0xf]
      %v295 = vld [vmem:[%s247 + $0x64] sm:$0xf]
      %v296 = vld [vmem:[%s247 + $0x68] sm:$0xf]
      %v297 = vld [vmem:[%s247 + $0x6c] sm:$0xf]
      %v298 = vld [vmem:[%s247 + $0x70] sm:$0xf]
      %v299 = vld [vmem:[%s247 + $0x74] sm:$0xf]
      %v300 = vld [vmem:[%s247 + $0x78] sm:$0xf]
      %v301 = vld [vmem:[%s247 + $0x7c] sm:$0xf]
      %v303 = vunpack.c.l.b16 %v269
      %v304 = vunpack.c.h.b16 %v269
      %v305 = vpack.c.b16 %v303, %v303
      %v306 = vpack.c.b16 %v304, %v304
      %v341 = vunpack.c.l.b16 %v270
      %v342 = vunpack.c.l.b16 %v271
      %v343 = vunpack.c.l.b16 %v272
      %v344 = vunpack.c.l.b16 %v273
      %v345 = vunpack.c.l.b16 %v274
      %v346 = vunpack.c.l.b16 %v275
      %v347 = vunpack.c.l.b16 %v276
      %v348 = vunpack.c.l.b16 %v277
      %v349 = vunpack.c.l.b16 %v278
      %v350 = vunpack.c.l.b16 %v279
      %v351 = vunpack.c.l.b16 %v280
      %v352 = vunpack.c.l.b16 %v281
      %v353 = vunpack.c.l.b16 %v282
      %v354 = vunpack.c.l.b16 %v283
      %v355 = vunpack.c.l.b16 %v284
      %v356 = vunpack.c.l.b16 %v285
      %v357 = vunpack.c.l.b16 %v286
      %v358 = vunpack.c.l.b16 %v287
      %v359 = vunpack.c.l.b16 %v288
      %v360 = vunpack.c.l.b16 %v289
      %v361 = vunpack.c.l.b16 %v290
      %v362 = vunpack.c.l.b16 %v291
      %v363 = vunpack.c.l.b16 %v292
      %v364 = vunpack.c.l.b16 %v293
      %v365 = vunpack.c.l.b16 %v294
      %v366 = vunpack.c.l.b16 %v295
      %v367 = vunpack.c.l.b16 %v296
      %v368 = vunpack.c.l.b16 %v297
      %v369 = vunpack.c.l.b16 %v298
      %v370 = vunpack.c.l.b16 %v299
      %v371 = vunpack.c.l.b16 %v300
      %v372 = vunpack.c.l.b16 %v301
      %v373 = vpack.c.b16 %v342, %v341
      %v374 = vpack.c.b16 %v344, %v343
      %v375 = vpack.c.b16 %v346, %v345
      %v376 = vpack.c.b16 %v348, %v347
      %v377 = vpack.c.b16 %v350, %v349
      %v378 = vpack.c.b16 %v352, %v351
      %v379 = vpack.c.b16 %v354, %v353
      %v380 = vpack.c.b16 %v356, %v355
      %v381 = vpack.c.b16 %v358, %v357
      %v382 = vpack.c.b16 %v360, %v359
      %v383 = vpack.c.b16 %v362, %v361
      %v384 = vpack.c.b16 %v364, %v363
      %v385 = vpack.c.b16 %v366, %v365
      %v386 = vpack.c.b16 %v368, %v367
      %v387 = vpack.c.b16 %v370, %v369
      %v388 = vpack.c.b16 %v372, %v371
      %405 = vmatpush.bf16.msra.mxu0 %v380
      %406 = vmatpush.bf16.msra.mxu0 %v379
      %407 = vmatpush.bf16.msra.mxu0 %v378
      %408 = vmatpush.bf16.msra.mxu0 %v377
      %409 = vmatpush.bf16.msra.mxu0 %v376
      %410 = vmatpush.bf16.msra.mxu0 %v375
      %411 = vmatpush.bf16.msra.mxu0 %v374
      %412 = vmatpush.bf16.msra.mxu0 %v373
      %413 = vmatmul.bf16.gmra.mxu0 %v305
      %v414 = vpop.f32.mrf.mxu0
      %v415 = vadd.f32 0.0, %v414
      %v416 = vpop.f32.mrf.mxu0
      %417 = vdwg.mxu0
      %418 = vmatpush.bf16.msra.mxu0 %v388
      %419 = vmatpush.bf16.msra.mxu0 %v387
      %420 = vmatpush.bf16.msra.mxu0 %v386
      %421 = vmatpush.bf16.msra.mxu0 %v385
      %422 = vmatpush.bf16.msra.mxu0 %v384
      %423 = vmatpush.bf16.msra.mxu0 %v383
      %424 = vmatpush.bf16.msra.mxu0 %v382
      %425 = vmatpush.bf16.msra.mxu0 %v381
      %426 = vmatmul.bf16.gmra.mxu0 %v306
      %v427 = vpop.f32.mrf.mxu0
      %v428 = vadd.f32 %v415, %v427
      %v429 = vpop.f32.mrf.mxu0
      %430 = vdwg.mxu0
      %v431 = vadd.f32 %v268, %v428
      %432 = vst [vmem:[#allocation2] sm:$0xff] %v431
      %p433 = scmp.eq.s32.totalorder %s21, 8
      // Predicated region
      $region37: #{frequency_discriminator_forward.13} parent=31 // pred_check
        %p434 = pneg %p433
      $region38: #{frequency_discriminator_forward.13} parent=31 // pred_check_branch
        %436 = sbr.rel (%p434) target = $region40
      $region39: #{frequency_discriminator_forward.13} parent=31 // pred_region
        %v437 = vld [vmem:[#allocation2] sm:$0xff]
        %438 = vst [vmem:[%s258] sm:$0xff] %v437
      $region40: #{frequency_discriminator_forward.13} parent=31 // pred_fallthru
        _
      %p439 = scmp.lt.s32.totalorder %s19, 0
      %s440 = scalar_select %p439, %s19, 0
      %p441 = scmp.lt.s32.totalorder %s20, 0
      %s442 = scalar_select %p441, %s20, 0
      %s443 = sadd.s32 %s442, %s440
      %s444 = smul.addr %s443, 8
      %s445 = scalar_lea.vmem %s3, %s444
      // Predicated region
      $region41: #{frequency_discriminator_forward.13} parent=31 // pred_check
        %p446 = pneg %p135
      $region42: #{frequency_discriminator_forward.13} parent=31 // pred_check_branch
        %448 = sbr.rel (%p446) target = $region44
      $region43: #{frequency_discriminator_forward.13} parent=31 // pred_region
        _
      $region44: #{frequency_discriminator_forward.13} parent=31 // pred_fallthru
        _
      // Predicated region
      $region45: #{frequency_discriminator_forward.13} parent=31 // pred_check
        %p449 = pneg %p135
      $region46: #{frequency_discriminator_forward.13} parent=31 // pred_check_branch
        %451 = sbr.rel (%p449) target = $region48
      $region47: #{frequency_discriminator_forward.13} parent=31 // pred_region
        %p452 = scmp.lt.s32.totalorder %s19, 0
        %s453 = scalar_select %p452, %s19, 0
        %p454 = scmp.lt.s32.totalorder %s20, 0
        %s455 = scalar_select %p454, %s20, 0
        %s456 = sadd.s32 %s455, %s453
        %s457 = smul.addr %s456, 8
        %s458 = scalar_lea.vmem %s3, %s457
      $region48: #{frequency_discriminator_forward.13} parent=31 // pred_fallthru
        _
    $region32: #{frequency_discriminator_forward.13} parent=5 // pred_fallthru
      _
    %p459 = scmp.le.s32.totalorder 2, %s9
    // Predicated region
    $region49: #{frequency_discriminator_forward.13} parent=5 // pred_check
      %p460 = pneg %p459
    $region50: #{frequency_discriminator_forward.13} parent=5 // pred_check_branch
      %462 = sbr.rel (%p460) target = $region52
    $region51: #{frequency_discriminator_forward.13} parent=5 // pred_region
      %s463 = ssub.s32 %s9, 2
    $region52: #{frequency_discriminator_forward.13} parent=5 // pred_fallthru
      _
  $region6: #{frequency_discriminator_forward.13} parent=0 // loop_footer
    %s13 = sadd.s32 1, %s9
  $region7: #{frequency_discriminator_forward.13} parent=0 // loop_footer_branch
    %8 = sbr.rel target = $region3
  $region8: #{frequency_discriminator_forward.13} parent=0 // loop_exit
    _

</llo_original>
